<compile_context>
chip_gen: v7x
topology: tpu7x:2x2x1
jax: 0.10.0
libtpu: 0.0.40
codegen_flags: <defaults>
</compile_context>

<pallas_src>
import numpy as np
import jax
import jax.numpy as jnp
from jax import lax
from jax.experimental import pallas as pl
from jax.experimental.pallas import tpu as pltpu  # noqa: F401  (TPU backend)

# ---------------------------------------------------------------------------
# Model / data configuration (ncars): n = [1, 8, 16, 16, 16, 32, 32, 32, 32]
# fuse channels: 1 -> 16 -> 32 -> 32 -> 32 ; pooling_outputs = 32
# ---------------------------------------------------------------------------
IMG_W, IMG_H = 120.0, 100.0          # input_shape[:2]
VOXEL = 16.0                         # pooling_dm_dims = (16, 16)
NX, NY = 8, 7                        # ceil(120/16)=8, ceil(100/16)=7
NUM_GRIDS = NX * NY                  # 8 * 7 = 56
CHANNELS = [1, 16, 32, 32, 32]
POOL_OUT = CHANNELS[-1]              # 32
NUM_OUTPUTS = 2
BN_EPS = 1e-5

N_NODES = 128
N_EDGES = 256
BATCH_SIZE = 2

POOL_STRIDE = 128                    # lanes per batch element in pooled layout
G_PAD = BATCH_SIZE * POOL_STRIDE     # 256 pooled lanes (vreg-aligned per batch)

_NEG = -1e30                         # masked-max sentinel
_EMPTY_THRESH = -1e29                # "segment was empty" detection threshold


# ---------------------------------------------------------------------------
# Small helpers used inside the kernel
# ---------------------------------------------------------------------------
def _vpu_small_k_matmul(a, b):
    """(M, K) @ (K, N) for tiny K (1 or 2) as broadcast multiply-adds (VPU)."""
    out = a[:, 0:1] * b[0:1, :]
    for i in range(1, a.shape[1]):
        out = out + a[:, i:i + 1] * b[i:i + 1, :]
    return out


def _mm(a, b):
    """Matmul dispatcher: MXU for real contractions, VPU for K<=2."""
    if a.shape[1] <= 2:
        return _vpu_small_k_matmul(a, b)
    return jnp.dot(a, b, preferred_element_type=jnp.float32)


# ---------------------------------------------------------------------------
# The single fused kernel: 4x (conv + BN + ReLU) -> voxel max-pool -> FC
# ---------------------------------------------------------------------------
def _graph_res_kernel(x_ref, pos_ref, srcpad_ref, vbias_ref, poolpad_ref,
                      pbias_ref,
                      wx1_ref, wp1_ref, sh1_ref,
                      wx2_ref, wp2_ref, sh2_ref,
                      wx3_ref, wp3_ref, sh3_ref,
                      wx4_ref, wp4_ref, sh4_ref,
                      wfc_ref, out_ref):
    n = x_ref.shape[1]                    # 128 nodes (lanes)
    d_max = srcpad_ref.shape[0]           # padded max in-degree
    p_max = poolpad_ref.shape[0]          # padded max nodes per voxel
    g_pad = poolpad_ref.shape[1]          # 256 pooled lanes

    pos_t = pos_ref[...]                  # (2, N)  f32
    src_pad = srcpad_ref[...]             # (D, N)  int32 (N == "no edge")
    vbias = vbias_ref[...]                # (D, N)  f32: 0 valid / -1e30 invalid

    # --- per-slot gather one-hots, built ONCE and reused by all 4 layers ----
    node_iota = lax.broadcasted_iota(jnp.int32, (n, n), 0)        # (N_src, N_dst)
    gathers = []                                                   # D x (N, N) f32
    vbias_rows = []                                                # D x (1, N) f32
    for d in range(d_max):
        gathers.append((node_iota == src_pad[d:d + 1, :]).astype(jnp.float32))
        vbias_rows.append(vbias[d:d + 1, :])

    def conv_bn_relu(h_t, wx, wp, shift):
        # h_t: (Cin, N); wx: (Cout, Cin) (BN scale folded); wp: (Cout, 2); shift: (Cout, 1)
        wp_pos = _vpu_small_k_matmul(wp, pos_t)                    # (Cout, N) = Wp @ pos_i
        u = _mm(wx, h_t) + wp_pos                                  # (Cout, N) = Wx@h + Wp@pos
        # msg for slot d of node i:  u[:, src_d(i)] - Wp@pos_i  (gather = MXU matmul)
        acc = None
        for d in range(d_max):
            cand = (jnp.dot(u, gathers[d], preferred_element_type=jnp.float32)
                    - wp_pos + vbias_rows[d])                      # (Cout, N)
            acc = cand if acc is None else jnp.maximum(acc, cand)
        # hoisted epilogue: empty segment -> 0, + BN shift, ReLU (lane-dense)
        agg = jnp.where(acc > _EMPTY_THRESH, acc, 0.0)
        return jnp.maximum(agg + shift, 0.0)

    h_t = x_ref[...]                                               # (1, N)
    h_t = conv_bn_relu(h_t, wx1_ref[...], wp1_ref[...], sh1_ref[...])
    h_t = conv_bn_relu(h_t, wx2_ref[...], wp2_ref[...], sh2_ref[...])
    h_t = conv_bn_relu(h_t, wx3_ref[...], wp3_ref[...], sh3_ref[...])
    h_t = conv_bn_relu(h_t, wx4_ref[...], wp4_ref[...], sh4_ref[...])   # (32, N)

    # ---- MaxPoolingX over the 8x7 grid of 16x16 voxels, per batch element ----
    pool_pad = poolpad_ref[...]                                    # (Dp, 256) int32
    pbias = pbias_ref[...]                                         # (Dp, 256) f32
    node_iota_g = lax.broadcasted_iota(jnp.int32, (n, g_pad), 0)   # (N, 256)
    pooled = None
    for dp in range(p_max):
        oh = (node_iota_g == pool_pad[dp:dp + 1, :]).astype(jnp.float32)   # (N, 256)
        gathered = jnp.dot(h_t, oh, preferred_element_type=jnp.float32)    # (32, 256)
        cand = gathered + pbias[dp:dp + 1, :]
        pooled = cand if pooled is None else jnp.maximum(pooled, cand)
    pooled = jnp.where(pooled > _EMPTY_THRESH, pooled, 0.0)        # empty voxel -> 0

    # ---- final FC (bias=False) + single merged (2, 2) store ----
    # wfc is pre-tiled to (NUM_OUTPUTS*32, 256): same 56 voxel columns replicated
    # at lanes [0,56) and [128,184), zeros elsewhere -> all slices vreg-aligned.
    wfc = wfc_ref[...]
    row_iota = lax.broadcasted_iota(jnp.int32, (BATCH_SIZE, NUM_OUTPUTS), 0)
    col_iota = lax.broadcasted_iota(jnp.int32, (BATCH_SIZE, NUM_OUTPUTS), 1)
    out = jnp.zeros((BATCH_SIZE, NUM_OUTPUTS), jnp.float32)
    for o in range(NUM_OUTPUTS):
        w_o = wfc[o * POOL_OUT:(o + 1) * POOL_OUT, :]              # (32, 256)
        t = pooled * w_o                                           # (32, 256)
        for b in range(BATCH_SIZE):
            tb = t[:, b * POOL_STRIDE:(b + 1) * POOL_STRIDE]       # aligned (32, 128)
            s = jnp.sum(tb, axis=1, keepdims=True)                 # (32, 1)
            v = jnp.sum(s, axis=0, keepdims=True)                  # (1, 1)
            out = jnp.where((row_iota == b) & (col_iota == o), v, out)
    out_ref[...] = out                                             # one store


# ---------------------------------------------------------------------------
# Wrapper: one-time weight + graph preparation, single pallas_call forward
# ---------------------------------------------------------------------------
def prepare_params(params):
    """Fold eval-mode BN scale into conv weights and pre-reorganize all weights
    ONCE (hoisted out of the forward path)."""
    prepared = []
    for (w, scale, shift) in params["convs"]:
        # max-aggregation commutes with the scaling only if scale > 0
        assert float(jnp.min(scale)) > 0.0, "BN scale must be positive to fold into W"
        c_out, k = w.shape
        c_in = k - 2
        w_scaled = scale[:, None] * w                              # (Cout, Cin+2)
        wx = jnp.asarray(w_scaled[:, :c_in], jnp.float32)          # (Cout, Cin)
        wp = jnp.asarray(w_scaled[:, c_in:], jnp.float32)          # (Cout, 2)
        sh = jnp.asarray(shift.reshape(c_out, 1), jnp.float32)     # (Cout, 1)
        prepared.append((wx, wp, sh))
    # fc weight: (num_outputs, 56*32) with flat index g*32 + c
    #   -> (num_outputs*32, 56) with row o*32 + c, col g
    wfc = params["fc"].reshape(NUM_OUTPUTS, NUM_GRIDS, POOL_OUT)   # [o, g, c]
    wfc = jnp.transpose(wfc, (0, 2, 1)).reshape(NUM_OUTPUTS * POOL_OUT, NUM_GRIDS)
    # tile into the batch-aligned 256-lane pooled layout (zeros elsewhere)
    wfc_tiled = jnp.zeros((NUM_OUTPUTS * POOL_OUT, G_PAD), jnp.float32)
    for b in range(BATCH_SIZE):
        wfc_tiled = wfc_tiled.at[:, b * POOL_STRIDE:b * POOL_STRIDE + NUM_GRIDS].set(wfc)
    return {"convs": prepared, "fc": jnp.asarray(wfc_tiled, jnp.float32)}


def prepare_graph(pos, batch, edge_index):
    """Host-side (numpy) graph prep: degree-padded incoming-edge source table
    for the conv scatter-max, and node-padded voxel membership for MaxPoolingX.
    This is index plumbing (the 'sort edges by dst' step), done once per graph."""
    pos_np = np.asarray(pos)
    batch_np = np.asarray(batch).astype(np.int32)
    ei = np.asarray(edge_index).astype(np.int64)
    src, dst = ei[0], ei[1]
    n = pos_np.shape[0]

    # --- conv aggregation: d-th incoming edge's source node, per dst node ---
    incoming = [[] for _ in range(n)]
    for e in range(src.shape[0]):
        incoming[int(dst[e])].append(int(src[e]))
    d_max = max(1, max(len(lst) for lst in incoming))
    src_pad = np.full((d_max, n), n, dtype=np.int32)               # n == "no edge"
    vbias = np.full((d_max, n), _NEG, dtype=np.float32)
    for node, lst in enumerate(incoming):
        for d, s in enumerate(lst):
            src_pad[d, node] = s
            vbias[d, node] = 0.0

    # --- MaxPoolingX: nodes per (batch, voxel) cluster, x-fastest raster -----
    cx = np.clip(np.floor(pos_np[:, 0] / VOXEL).astype(np.int32), 0, NX - 1)
    cy = np.clip(np.floor(pos_np[:, 1] / VOXEL).astype(np.int32), 0, NY - 1)
    cluster = batch_np * NUM_GRIDS + cy * NX + cx                  # (N,)
    members = [[] for _ in range(BATCH_SIZE * NUM_GRIDS)]
    for node in range(n):
        members[int(cluster[node])].append(node)
    p_max = max(1, max(len(lst) for lst in members))
    pool_pad = np.full((p_max, G_PAD), n, dtype=np.int32)          # n == "empty slot"
    pbias = np.full((p_max, G_PAD), _NEG, dtype=np.float32)
    for g_idx, lst in enumerate(members):
        b = g_idx // NUM_GRIDS
        lg = g_idx % NUM_GRIDS
        col = b * POOL_STRIDE + lg
        for d, node in enumerate(lst):
            pool_pad[d, col] = node
            pbias[d, col] = 0.0

    return (jnp.asarray(src_pad), jnp.asarray(vbias),
            jnp.asarray(pool_pad), jnp.asarray(pbias))


@jax.jit
def graph_res_forward(prep, x, pos, src_pad, vbias, pool_pad, pbias):
    # tiny transposed views (layout plumbing); everything else happens in-kernel
    x_t = jnp.transpose(x.astype(jnp.float32))                 # (1, N)
    pos_t = jnp.transpose(pos[:, :2].astype(jnp.float32))      # (2, N)

    (wx1, wp1, sh1), (wx2, wp2, sh2), (wx3, wp3, sh3), (wx4, wp4, sh4) = prep["convs"]

    return pl.pallas_call(
        _graph_res_kernel,
        out_shape=jax.ShapeDtypeStruct((BATCH_SIZE, NUM_OUTPUTS), jnp.float32),
    )(x_t, pos_t, src_pad, vbias, pool_pad, pbias,
      wx1, wp1, sh1, wx2, wp2, sh2, wx3, wp3, sh3, wx4, wp4, sh4,
      prep["fc"])


# ---------------------------------------------------------------------------
# Pure-JAX reference (original, un-folded parameter format)
# ---------------------------------------------------------------------------
def _voxel_cluster(pos2, batch):
    cell_x = jnp.clip(jnp.floor(pos2[:, 0] / VOXEL).astype(jnp.int32), 0, NX - 1)
    cell_y = jnp.clip(jnp.floor(pos2[:, 1] / VOXEL).astype(jnp.int32), 0, NY - 1)
    cluster = cell_y * NX + cell_x
    return batch.astype(jnp.int32) * NUM_GRIDS + cluster


def reference_forward(params, x, pos, batch, edge_index):
    src, dst = edge_index[0], edge_index[1]
    pos2 = pos[:, :2]
    rel = pos2[src] - pos2[dst]
    n = x.shape[0]
    h = x.astype(jnp.float32)
    hp = jax.lax.Precision.HIGHEST
    for (w, scale, shift) in params["convs"]:
        feat = jnp.concatenate([h[src], rel], axis=1)
        msg = jnp.dot(feat, w.T, precision=hp)
        agg = jax.ops.segment_max(msg, dst, num_segments=n)
        agg = jnp.where(jnp.isneginf(agg), 0.0, agg)
        h = jnp.maximum(agg * scale[None, :] + shift[None, :], 0.0)
    gcluster = _voxel_cluster(pos2, batch)
    pooled = jax.ops.segment_max(h, gcluster,
                                 num_segments=BATCH_SIZE * NUM_GRIDS)
    pooled = jnp.where(jnp.isneginf(pooled), 0.0, pooled)
    x_flat = pooled.reshape(BATCH_SIZE, NUM_GRIDS * POOL_OUT)
    return jnp.dot(x_flat, params["fc"].T, precision=hp)


# ---------------------------------------------------------------------------
# Deterministic parameter + input construction
# ---------------------------------------------------------------------------
def make_params(key):
    convs = []
    for cin, cout in zip(CHANNELS[:-1], CHANNELS[1:]):
        key, kw, kg, kb, km, kv = jax.random.split(key, 6)
        w = jax.random.normal(kw, (cout, cin + 2), jnp.float32) * 0.02
        gamma = jax.random.uniform(kg, (cout,), jnp.float32, 0.5, 1.5)
        beta = jax.random.normal(kb, (cout,), jnp.float32) * 0.1
        mean = jax.random.normal(km, (cout,), jnp.float32) * 0.1
        var = jax.random.uniform(kv, (cout,), jnp.float32, 0.5, 1.5)
        scale = gamma / jnp.sqrt(var + BN_EPS)       # fused eval-mode BN
        shift = beta - mean * scale
        convs.append((w, scale, shift))
    key, kf = jax.random.split(key)
    w_fc = jax.random.normal(
        kf, (NUM_OUTPUTS, POOL_OUT * NUM_GRIDS), jnp.float32) * 0.02
    return {"convs": convs, "fc": w_fc}, key


def make_inputs(key):
    key, kx, kp, kt = jax.random.split(key, 4)
    x = jax.random.uniform(kx, (N_NODES, 1), jnp.float32)
    pos_xy = jax.random.uniform(kp, (N_NODES, 2), jnp.float32) * jnp.array(
        [IMG_W, IMG_H], jnp.float32)
    pos_t = jax.random.uniform(kt, (N_NODES, 1), jnp.float32)
    pos = jnp.concatenate([pos_xy, pos_t], axis=1)            # (N, 3)
    batch = jnp.concatenate([
        jnp.zeros((N_NODES // 2,), jnp.int32),
        jnp.ones((N_NODES // 2,), jnp.int32)])
    half = N_EDGES // 2
    key, k1, k2, k3, k4 = jax.random.split(key, 5)
    src0 = jax.random.randint(k1, (half,), 0, N_NODES // 2)
    dst0 = jax.random.randint(k2, (half,), 0, N_NODES // 2)
    src1 = jax.random.randint(k3, (half,), N_NODES // 2, N_NODES)
    dst1 = jax.random.randint(k4, (half,), N_NODES // 2, N_NODES)
    edge_index = jnp.stack([
        jnp.concatenate([src0, src1]),
        jnp.concatenate([dst0, dst1])]).astype(jnp.int32)     # (2, E)
    return x, pos, batch, edge_index


if __name__ == "__main__":
    key = jax.random.PRNGKey(0)
    params, key = make_params(key)
    x, pos, batch, edge_index = make_inputs(key)

    prep = prepare_params(params)
    src_pad, vbias, pool_pad, pbias = prepare_graph(pos, batch, edge_index)

    out = graph_res_forward(prep, x, pos, src_pad, vbias, pool_pad, pbias)
    out = jax.block_until_ready(out)

    ref = reference_forward(params, x, pos, batch, edge_index)
    ref = jax.block_until_ready(ref)

    assert out.shape == (BATCH_SIZE, NUM_OUTPUTS), out.shape
    if not jnp.allclose(out, ref, rtol=5e-2, atol=5e-2):
        raise AssertionError(
            f"mismatch vs reference:\n{out}\nvs\n{ref}")
    print("KERNEL_OK")
</pallas_src>

<mosaic_0001>
module attributes {stable_mosaic.version = 11 : i64} {
  func.func @_graph_res_kernel(%arg0: memref<1x128xf32, #tpu.memory_space<vmem>>, %arg1: memref<2x128xf32, #tpu.memory_space<vmem>>, %arg2: memref<5x128xi32, #tpu.memory_space<vmem>>, %arg3: memref<5x128xf32, #tpu.memory_space<vmem>>, %arg4: memref<5x256xi32, #tpu.memory_space<vmem>>, %arg5: memref<5x256xf32, #tpu.memory_space<vmem>>, %arg6: memref<16x1xf32, #tpu.memory_space<vmem>>, %arg7: memref<16x2xf32, #tpu.memory_space<vmem>>, %arg8: memref<16x1xf32, #tpu.memory_space<vmem>>, %arg9: memref<32x16xf32, #tpu.memory_space<vmem>>, %arg10: memref<32x2xf32, #tpu.memory_space<vmem>>, %arg11: memref<32x1xf32, #tpu.memory_space<vmem>>, %arg12: memref<32x32xf32, #tpu.memory_space<vmem>>, %arg13: memref<32x2xf32, #tpu.memory_space<vmem>>, %arg14: memref<32x1xf32, #tpu.memory_space<vmem>>, %arg15: memref<32x32xf32, #tpu.memory_space<vmem>>, %arg16: memref<32x2xf32, #tpu.memory_space<vmem>>, %arg17: memref<32x1xf32, #tpu.memory_space<vmem>>, %arg18: memref<64x256xf32, #tpu.memory_space<vmem>>, %arg19: memref<2x2xf32, #tpu.memory_space<vmem>>) attributes {dimension_semantics = [], scalar_prefetch = 0 : i64, scratch_operands = 0 : i64, tpu.core_type = #tpu.core_type<tc>} {
    %c0 = arith.constant 0 : index
    %c0_0 = arith.constant 0 : index
    %0 = vector.load %arg1[%c0, %c0_0] : memref<2x128xf32, #tpu.memory_space<vmem>>, vector<2x128xf32>
    %c0_1 = arith.constant 0 : index
    %c0_2 = arith.constant 0 : index
    %1 = vector.load %arg2[%c0_1, %c0_2] : memref<5x128xi32, #tpu.memory_space<vmem>>, vector<5x128xi32>
    %c0_3 = arith.constant 0 : index
    %c0_4 = arith.constant 0 : index
    %2 = vector.load %arg3[%c0_3, %c0_4] : memref<5x128xf32, #tpu.memory_space<vmem>>, vector<5x128xf32>
    %3 = tpu.iota {dimensions = array<i32: 0>} : vector<128x128xi32>
    %4 = vector.extract_strided_slice %1 {offsets = [0, 0], sizes = [1, 128], strides = [1, 1]} : vector<5x128xi32> to vector<1x128xi32>
    %5 = vector.broadcast %4 : vector<1x128xi32> to vector<128x128xi32>
    %6 = arith.cmpi eq, %3, %5 : vector<128x128xi32>
    %7 = arith.extui %6 : vector<128x128xi1> to vector<128x128xi32>
    %8 = arith.sitofp %7 : vector<128x128xi32> to vector<128x128xf32>
    %9 = vector.extract_strided_slice %2 {offsets = [0, 0], sizes = [1, 128], strides = [1, 1]} : vector<5x128xf32> to vector<1x128xf32>
    %10 = vector.extract_strided_slice %1 {offsets = [1, 0], sizes = [1, 128], strides = [1, 1]} : vector<5x128xi32> to vector<1x128xi32>
    %11 = vector.broadcast %10 : vector<1x128xi32> to vector<128x128xi32>
    %12 = arith.cmpi eq, %3, %11 : vector<128x128xi32>
    %13 = arith.extui %12 : vector<128x128xi1> to vector<128x128xi32>
    %14 = arith.sitofp %13 : vector<128x128xi32> to vector<128x128xf32>
    %15 = vector.extract_strided_slice %2 {offsets = [1, 0], sizes = [1, 128], strides = [1, 1]} : vector<5x128xf32> to vector<1x128xf32>
    %16 = vector.extract_strided_slice %1 {offsets = [2, 0], sizes = [1, 128], strides = [1, 1]} : vector<5x128xi32> to vector<1x128xi32>
    %17 = vector.broadcast %16 : vector<1x128xi32> to vector<128x128xi32>
    %18 = arith.cmpi eq, %3, %17 : vector<128x128xi32>
    %19 = arith.extui %18 : vector<128x128xi1> to vector<128x128xi32>
    %20 = arith.sitofp %19 : vector<128x128xi32> to vector<128x128xf32>
    %21 = vector.extract_strided_slice %2 {offsets = [2, 0], sizes = [1, 128], strides = [1, 1]} : vector<5x128xf32> to vector<1x128xf32>
    %22 = vector.extract_strided_slice %1 {offsets = [3, 0], sizes = [1, 128], strides = [1, 1]} : vector<5x128xi32> to vector<1x128xi32>
    %23 = vector.broadcast %22 : vector<1x128xi32> to vector<128x128xi32>
    %24 = arith.cmpi eq, %3, %23 : vector<128x128xi32>
    %25 = arith.extui %24 : vector<128x128xi1> to vector<128x128xi32>
    %26 = arith.sitofp %25 : vector<128x128xi32> to vector<128x128xf32>
    %27 = vector.extract_strided_slice %2 {offsets = [3, 0], sizes = [1, 128], strides = [1, 1]} : vector<5x128xf32> to vector<1x128xf32>
    %28 = vector.extract_strided_slice %1 {offsets = [4, 0], sizes = [1, 128], strides = [1, 1]} : vector<5x128xi32> to vector<1x128xi32>
    %29 = vector.broadcast %28 : vector<1x128xi32> to vector<128x128xi32>
    %30 = arith.cmpi eq, %3, %29 : vector<128x128xi32>
    %31 = arith.extui %30 : vector<128x128xi1> to vector<128x128xi32>
    %32 = arith.sitofp %31 : vector<128x128xi32> to vector<128x128xf32>
    %33 = vector.extract_strided_slice %2 {offsets = [4, 0], sizes = [1, 128], strides = [1, 1]} : vector<5x128xf32> to vector<1x128xf32>
    %c0_5 = arith.constant 0 : index
    %c0_6 = arith.constant 0 : index
    %34 = vector.load %arg0[%c0_5, %c0_6] : memref<1x128xf32, #tpu.memory_space<vmem>>, vector<1x128xf32>
    %c0_7 = arith.constant 0 : index
    %c0_8 = arith.constant 0 : index
    %35 = vector.load %arg6[%c0_7, %c0_8] : memref<16x1xf32, #tpu.memory_space<vmem>>, vector<16x1xf32>
    %c0_9 = arith.constant 0 : index
    %c0_10 = arith.constant 0 : index
    %36 = vector.load %arg7[%c0_9, %c0_10] : memref<16x2xf32, #tpu.memory_space<vmem>>, vector<16x2xf32>
    %c0_11 = arith.constant 0 : index
    %c0_12 = arith.constant 0 : index
    %37 = vector.load %arg8[%c0_11, %c0_12] : memref<16x1xf32, #tpu.memory_space<vmem>>, vector<16x1xf32>
    %38 = vector.extract_strided_slice %36 {offsets = [0, 0], sizes = [16, 1], strides = [1, 1]} : vector<16x2xf32> to vector<16x1xf32>
    %39 = vector.extract_strided_slice %0 {offsets = [0, 0], sizes = [1, 128], strides = [1, 1]} : vector<2x128xf32> to vector<1x128xf32>
    %40 = vector.broadcast %38 : vector<16x1xf32> to vector<16x128xf32>
    %41 = vector.broadcast %39 : vector<1x128xf32> to vector<16x128xf32>
    %42 = arith.mulf %40, %41 : vector<16x128xf32>
    %43 = vector.extract_strided_slice %36 {offsets = [0, 1], sizes = [16, 1], strides = [1, 1]} : vector<16x2xf32> to vector<16x1xf32>
    %44 = vector.extract_strided_slice %0 {offsets = [1, 0], sizes = [1, 128], strides = [1, 1]} : vector<2x128xf32> to vector<1x128xf32>
    %45 = vector.broadcast %43 : vector<16x1xf32> to vector<16x128xf32>
    %46 = vector.broadcast %44 : vector<1x128xf32> to vector<16x128xf32>
    %47 = arith.mulf %45, %46 : vector<16x128xf32>
    %48 = arith.addf %42, %47 : vector<16x128xf32>
    %49 = vector.broadcast %35 : vector<16x1xf32> to vector<16x128xf32>
    %50 = vector.broadcast %34 : vector<1x128xf32> to vector<16x128xf32>
    %51 = arith.mulf %49, %50 : vector<16x128xf32>
    %52 = arith.addf %51, %48 : vector<16x128xf32>
    %cst = arith.constant dense<0.000000e+00> : vector<16x128xf32>
    %53 = tpu.matmul %52, %8, %cst {dimension_numbers = #tpu.dot_dimension_numbers<[1], [0], [0], [1], [0, 0, 1, 1], [], []>} : vector<16x128xf32>, vector<128x128xf32>, vector<16x128xf32> -> vector<16x128xf32>
    %54 = arith.subf %53, %48 : vector<16x128xf32>
    %55 = vector.broadcast %9 : vector<1x128xf32> to vector<16x128xf32>
    %56 = arith.addf %54, %55 : vector<16x128xf32>
    %cst_13 = arith.constant dense<0.000000e+00> : vector<16x128xf32>
    %57 = tpu.matmul %52, %14, %cst_13 {dimension_numbers = #tpu.dot_dimension_numbers<[1], [0], [0], [1], [0, 0, 1, 1], [], []>} : vector<16x128xf32>, vector<128x128xf32>, vector<16x128xf32> -> vector<16x128xf32>
    %58 = arith.subf %57, %48 : vector<16x128xf32>
    %59 = vector.broadcast %15 : vector<1x128xf32> to vector<16x128xf32>
    %60 = arith.addf %58, %59 : vector<16x128xf32>
    %61 = arith.maximumf %56, %60 : vector<16x128xf32>
    %cst_14 = arith.constant dense<0.000000e+00> : vector<16x128xf32>
    %62 = tpu.matmul %52, %20, %cst_14 {dimension_numbers = #tpu.dot_dimension_numbers<[1], [0], [0], [1], [0, 0, 1, 1], [], []>} : vector<16x128xf32>, vector<128x128xf32>, vector<16x128xf32> -> vector<16x128xf32>
    %63 = arith.subf %62, %48 : vector<16x128xf32>
    %64 = vector.broadcast %21 : vector<1x128xf32> to vector<16x128xf32>
    %65 = arith.addf %63, %64 : vector<16x128xf32>
    %66 = arith.maximumf %61, %65 : vector<16x128xf32>
    %cst_15 = arith.constant dense<0.000000e+00> : vector<16x128xf32>
    %67 = tpu.matmul %52, %26, %cst_15 {dimension_numbers = #tpu.dot_dimension_numbers<[1], [0], [0], [1], [0, 0, 1, 1], [], []>} : vector<16x128xf32>, vector<128x128xf32>, vector<16x128xf32> -> vector<16x128xf32>
    %68 = arith.subf %67, %48 : vector<16x128xf32>
    %69 = vector.broadcast %27 : vector<1x128xf32> to vector<16x128xf32>
    %70 = arith.addf %68, %69 : vector<16x128xf32>
    %71 = arith.maximumf %66, %70 : vector<16x128xf32>
    %cst_16 = arith.constant dense<0.000000e+00> : vector<16x128xf32>
    %72 = tpu.matmul %52, %32, %cst_16 {dimension_numbers = #tpu.dot_dimension_numbers<[1], [0], [0], [1], [0, 0, 1, 1], [], []>} : vector<16x128xf32>, vector<128x128xf32>, vector<16x128xf32> -> vector<16x128xf32>
    %73 = arith.subf %72, %48 : vector<16x128xf32>
    %74 = vector.broadcast %33 : vector<1x128xf32> to vector<16x128xf32>
    %75 = arith.addf %73, %74 : vector<16x128xf32>
    %76 = arith.maximumf %71, %75 : vector<16x128xf32>
    %cst_17 = arith.constant -1.000000e+29 : f32
    %77 = vector.broadcast %cst_17 : f32 to vector<16x128xf32>
    %78 = arith.cmpf ogt, %76, %77 : vector<16x128xf32>
    %cst_18 = arith.constant 0.000000e+00 : f32
    %79 = vector.broadcast %cst_18 : f32 to vector<16x128xf32>
    %80 = arith.select %78, %76, %79 : vector<16x128xi1>, vector<16x128xf32>
    %81 = vector.broadcast %37 : vector<16x1xf32> to vector<16x128xf32>
    %82 = arith.addf %80, %81 : vector<16x128xf32>
    %cst_19 = arith.constant 0.000000e+00 : f32
    %83 = vector.broadcast %cst_19 : f32 to vector<16x128xf32>
    %84 = arith.maximumf %82, %83 : vector<16x128xf32>
    %c0_20 = arith.constant 0 : index
    %c0_21 = arith.constant 0 : index
    %85 = vector.load %arg9[%c0_20, %c0_21] : memref<32x16xf32, #tpu.memory_space<vmem>>, vector<32x16xf32>
    %c0_22 = arith.constant 0 : index
    %c0_23 = arith.constant 0 : index
    %86 = vector.load %arg10[%c0_22, %c0_23] : memref<32x2xf32, #tpu.memory_space<vmem>>, vector<32x2xf32>
    %c0_24 = arith.constant 0 : index
    %c0_25 = arith.constant 0 : index
    %87 = vector.load %arg11[%c0_24, %c0_25] : memref<32x1xf32, #tpu.memory_space<vmem>>, vector<32x1xf32>
    %88 = vector.extract_strided_slice %86 {offsets = [0, 0], sizes = [32, 1], strides = [1, 1]} : vector<32x2xf32> to vector<32x1xf32>
    %89 = vector.extract_strided_slice %0 {offsets = [0, 0], sizes = [1, 128], strides = [1, 1]} : vector<2x128xf32> to vector<1x128xf32>
    %90 = vector.broadcast %88 : vector<32x1xf32> to vector<32x128xf32>
    %91 = vector.broadcast %89 : vector<1x128xf32> to vector<32x128xf32>
    %92 = arith.mulf %90, %91 : vector<32x128xf32>
    %93 = vector.extract_strided_slice %86 {offsets = [0, 1], sizes = [32, 1], strides = [1, 1]} : vector<32x2xf32> to vector<32x1xf32>
    %94 = vector.extract_strided_slice %0 {offsets = [1, 0], sizes = [1, 128], strides = [1, 1]} : vector<2x128xf32> to vector<1x128xf32>
    %95 = vector.broadcast %93 : vector<32x1xf32> to vector<32x128xf32>
    %96 = vector.broadcast %94 : vector<1x128xf32> to vector<32x128xf32>
    %97 = arith.mulf %95, %96 : vector<32x128xf32>
    %98 = arith.addf %92, %97 : vector<32x128xf32>
    %cst_26 = arith.constant dense<0.000000e+00> : vector<32x128xf32>
    %99 = tpu.matmul %85, %84, %cst_26 {dimension_numbers = #tpu.dot_dimension_numbers<[1], [0], [0], [1], [0, 0, 1, 1], [], []>} : vector<32x16xf32>, vector<16x128xf32>, vector<32x128xf32> -> vector<32x128xf32>
    %100 = arith.addf %99, %98 : vector<32x128xf32>
    %cst_27 = arith.constant dense<0.000000e+00> : vector<32x128xf32>
    %101 = tpu.matmul %100, %8, %cst_27 {dimension_numbers = #tpu.dot_dimension_numbers<[1], [0], [0], [1], [0, 0, 1, 1], [], []>} : vector<32x128xf32>, vector<128x128xf32>, vector<32x128xf32> -> vector<32x128xf32>
    %102 = arith.subf %101, %98 : vector<32x128xf32>
    %103 = vector.broadcast %9 : vector<1x128xf32> to vector<32x128xf32>
    %104 = arith.addf %102, %103 : vector<32x128xf32>
    %cst_28 = arith.constant dense<0.000000e+00> : vector<32x128xf32>
    %105 = tpu.matmul %100, %14, %cst_28 {dimension_numbers = #tpu.dot_dimension_numbers<[1], [0], [0], [1], [0, 0, 1, 1], [], []>} : vector<32x128xf32>, vector<128x128xf32>, vector<32x128xf32> -> vector<32x128xf32>
    %106 = arith.subf %105, %98 : vector<32x128xf32>
    %107 = vector.broadcast %15 : vector<1x128xf32> to vector<32x128xf32>
    %108 = arith.addf %106, %107 : vector<32x128xf32>
    %109 = arith.maximumf %104, %108 : vector<32x128xf32>
    %cst_29 = arith.constant dense<0.000000e+00> : vector<32x128xf32>
    %110 = tpu.matmul %100, %20, %cst_29 {dimension_numbers = #tpu.dot_dimension_numbers<[1], [0], [0], [1], [0, 0, 1, 1], [], []>} : vector<32x128xf32>, vector<128x128xf32>, vector<32x128xf32> -> vector<32x128xf32>
    %111 = arith.subf %110, %98 : vector<32x128xf32>
    %112 = vector.broadcast %21 : vector<1x128xf32> to vector<32x128xf32>
    %113 = arith.addf %111, %112 : vector<32x128xf32>
    %114 = arith.maximumf %109, %113 : vector<32x128xf32>
    %cst_30 = arith.constant dense<0.000000e+00> : vector<32x128xf32>
    %115 = tpu.matmul %100, %26, %cst_30 {dimension_numbers = #tpu.dot_dimension_numbers<[1], [0], [0], [1], [0, 0, 1, 1], [], []>} : vector<32x128xf32>, vector<128x128xf32>, vector<32x128xf32> -> vector<32x128xf32>
    %116 = arith.subf %115, %98 : vector<32x128xf32>
    %117 = vector.broadcast %27 : vector<1x128xf32> to vector<32x128xf32>
    %118 = arith.addf %116, %117 : vector<32x128xf32>
    %119 = arith.maximumf %114, %118 : vector<32x128xf32>
    %cst_31 = arith.constant dense<0.000000e+00> : vector<32x128xf32>
    %120 = tpu.matmul %100, %32, %cst_31 {dimension_numbers = #tpu.dot_dimension_numbers<[1], [0], [0], [1], [0, 0, 1, 1], [], []>} : vector<32x128xf32>, vector<128x128xf32>, vector<32x128xf32> -> vector<32x128xf32>
    %121 = arith.subf %120, %98 : vector<32x128xf32>
    %122 = vector.broadcast %33 : vector<1x128xf32> to vector<32x128xf32>
    %123 = arith.addf %121, %122 : vector<32x128xf32>
    %124 = arith.maximumf %119, %123 : vector<32x128xf32>
    %cst_32 = arith.constant -1.000000e+29 : f32
    %125 = vector.broadcast %cst_32 : f32 to vector<32x128xf32>
    %126 = arith.cmpf ogt, %124, %125 : vector<32x128xf32>
    %cst_33 = arith.constant 0.000000e+00 : f32
    %127 = vector.broadcast %cst_33 : f32 to vector<32x128xf32>
    %128 = arith.select %126, %124, %127 : vector<32x128xi1>, vector<32x128xf32>
    %129 = vector.broadcast %87 : vector<32x1xf32> to vector<32x128xf32>
    %130 = arith.addf %128, %129 : vector<32x128xf32>
    %cst_34 = arith.constant 0.000000e+00 : f32
    %131 = vector.broadcast %cst_34 : f32 to vector<32x128xf32>
    %132 = arith.maximumf %130, %131 : vector<32x128xf32>
    %c0_35 = arith.constant 0 : index
    %c0_36 = arith.constant 0 : index
    %133 = vector.load %arg12[%c0_35, %c0_36] : memref<32x32xf32, #tpu.memory_space<vmem>>, vector<32x32xf32>
    %c0_37 = arith.constant 0 : index
    %c0_38 = arith.constant 0 : index
    %134 = vector.load %arg13[%c0_37, %c0_38] : memref<32x2xf32, #tpu.memory_space<vmem>>, vector<32x2xf32>
    %c0_39 = arith.constant 0 : index
    %c0_40 = arith.constant 0 : index
    %135 = vector.load %arg14[%c0_39, %c0_40] : memref<32x1xf32, #tpu.memory_space<vmem>>, vector<32x1xf32>
    %136 = vector.extract_strided_slice %134 {offsets = [0, 0], sizes = [32, 1], strides = [1, 1]} : vector<32x2xf32> to vector<32x1xf32>
    %137 = vector.extract_strided_slice %0 {offsets = [0, 0], sizes = [1, 128], strides = [1, 1]} : vector<2x128xf32> to vector<1x128xf32>
    %138 = vector.broadcast %136 : vector<32x1xf32> to vector<32x128xf32>
    %139 = vector.broadcast %137 : vector<1x128xf32> to vector<32x128xf32>
    %140 = arith.mulf %138, %139 : vector<32x128xf32>
    %141 = vector.extract_strided_slice %134 {offsets = [0, 1], sizes = [32, 1], strides = [1, 1]} : vector<32x2xf32> to vector<32x1xf32>
    %142 = vector.extract_strided_slice %0 {offsets = [1, 0], sizes = [1, 128], strides = [1, 1]} : vector<2x128xf32> to vector<1x128xf32>
    %143 = vector.broadcast %141 : vector<32x1xf32> to vector<32x128xf32>
    %144 = vector.broadcast %142 : vector<1x128xf32> to vector<32x128xf32>
    %145 = arith.mulf %143, %144 : vector<32x128xf32>
    %146 = arith.addf %140, %145 : vector<32x128xf32>
    %cst_41 = arith.constant dense<0.000000e+00> : vector<32x128xf32>
    %147 = tpu.matmul %133, %132, %cst_41 {dimension_numbers = #tpu.dot_dimension_numbers<[1], [0], [0], [1], [0, 0, 1, 1], [], []>} : vector<32x32xf32>, vector<32x128xf32>, vector<32x128xf32> -> vector<32x128xf32>
    %148 = arith.addf %147, %146 : vector<32x128xf32>
    %cst_42 = arith.constant dense<0.000000e+00> : vector<32x128xf32>
    %149 = tpu.matmul %148, %8, %cst_42 {dimension_numbers = #tpu.dot_dimension_numbers<[1], [0], [0], [1], [0, 0, 1, 1], [], []>} : vector<32x128xf32>, vector<128x128xf32>, vector<32x128xf32> -> vector<32x128xf32>
    %150 = arith.subf %149, %146 : vector<32x128xf32>
    %151 = vector.broadcast %9 : vector<1x128xf32> to vector<32x128xf32>
    %152 = arith.addf %150, %151 : vector<32x128xf32>
    %cst_43 = arith.constant dense<0.000000e+00> : vector<32x128xf32>
    %153 = tpu.matmul %148, %14, %cst_43 {dimension_numbers = #tpu.dot_dimension_numbers<[1], [0], [0], [1], [0, 0, 1, 1], [], []>} : vector<32x128xf32>, vector<128x128xf32>, vector<32x128xf32> -> vector<32x128xf32>
    %154 = arith.subf %153, %146 : vector<32x128xf32>
    %155 = vector.broadcast %15 : vector<1x128xf32> to vector<32x128xf32>
    %156 = arith.addf %154, %155 : vector<32x128xf32>
    %157 = arith.maximumf %152, %156 : vector<32x128xf32>
    %cst_44 = arith.constant dense<0.000000e+00> : vector<32x128xf32>
    %158 = tpu.matmul %148, %20, %cst_44 {dimension_numbers = #tpu.dot_dimension_numbers<[1], [0], [0], [1], [0, 0, 1, 1], [], []>} : vector<32x128xf32>, vector<128x128xf32>, vector<32x128xf32> -> vector<32x128xf32>
    %159 = arith.subf %158, %146 : vector<32x128xf32>
    %160 = vector.broadcast %21 : vector<1x128xf32> to vector<32x128xf32>
    %161 = arith.addf %159, %160 : vector<32x128xf32>
    %162 = arith.maximumf %157, %161 : vector<32x128xf32>
    %cst_45 = arith.constant dense<0.000000e+00> : vector<32x128xf32>
    %163 = tpu.matmul %148, %26, %cst_45 {dimension_numbers = #tpu.dot_dimension_numbers<[1], [0], [0], [1], [0, 0, 1, 1], [], []>} : vector<32x128xf32>, vector<128x128xf32>, vector<32x128xf32> -> vector<32x128xf32>
    %164 = arith.subf %163, %146 : vector<32x128xf32>
    %165 = vector.broadcast %27 : vector<1x128xf32> to vector<32x128xf32>
    %166 = arith.addf %164, %165 : vector<32x128xf32>
    %167 = arith.maximumf %162, %166 : vector<32x128xf32>
    %cst_46 = arith.constant dense<0.000000e+00> : vector<32x128xf32>
    %168 = tpu.matmul %148, %32, %cst_46 {dimension_numbers = #tpu.dot_dimension_numbers<[1], [0], [0], [1], [0, 0, 1, 1], [], []>} : vector<32x128xf32>, vector<128x128xf32>, vector<32x128xf32> -> vector<32x128xf32>
    %169 = arith.subf %168, %146 : vector<32x128xf32>
    %170 = vector.broadcast %33 : vector<1x128xf32> to vector<32x128xf32>
    %171 = arith.addf %169, %170 : vector<32x128xf32>
    %172 = arith.maximumf %167, %171 : vector<32x128xf32>
    %cst_47 = arith.constant -1.000000e+29 : f32
    %173 = vector.broadcast %cst_47 : f32 to vector<32x128xf32>
    %174 = arith.cmpf ogt, %172, %173 : vector<32x128xf32>
    %cst_48 = arith.constant 0.000000e+00 : f32
    %175 = vector.broadcast %cst_48 : f32 to vector<32x128xf32>
    %176 = arith.select %174, %172, %175 : vector<32x128xi1>, vector<32x128xf32>
    %177 = vector.broadcast %135 : vector<32x1xf32> to vector<32x128xf32>
    %178 = arith.addf %176, %177 : vector<32x128xf32>
    %cst_49 = arith.constant 0.000000e+00 : f32
    %179 = vector.broadcast %cst_49 : f32 to vector<32x128xf32>
    %180 = arith.maximumf %178, %179 : vector<32x128xf32>
    %c0_50 = arith.constant 0 : index
    %c0_51 = arith.constant 0 : index
    %181 = vector.load %arg15[%c0_50, %c0_51] : memref<32x32xf32, #tpu.memory_space<vmem>>, vector<32x32xf32>
    %c0_52 = arith.constant 0 : index
    %c0_53 = arith.constant 0 : index
    %182 = vector.load %arg16[%c0_52, %c0_53] : memref<32x2xf32, #tpu.memory_space<vmem>>, vector<32x2xf32>
    %c0_54 = arith.constant 0 : index
    %c0_55 = arith.constant 0 : index
    %183 = vector.load %arg17[%c0_54, %c0_55] : memref<32x1xf32, #tpu.memory_space<vmem>>, vector<32x1xf32>
    %184 = vector.extract_strided_slice %182 {offsets = [0, 0], sizes = [32, 1], strides = [1, 1]} : vector<32x2xf32> to vector<32x1xf32>
    %185 = vector.extract_strided_slice %0 {offsets = [0, 0], sizes = [1, 128], strides = [1, 1]} : vector<2x128xf32> to vector<1x128xf32>
    %186 = vector.broadcast %184 : vector<32x1xf32> to vector<32x128xf32>
    %187 = vector.broadcast %185 : vector<1x128xf32> to vector<32x128xf32>
    %188 = arith.mulf %186, %187 : vector<32x128xf32>
    %189 = vector.extract_strided_slice %182 {offsets = [0, 1], sizes = [32, 1], strides = [1, 1]} : vector<32x2xf32> to vector<32x1xf32>
    %190 = vector.extract_strided_slice %0 {offsets = [1, 0], sizes = [1, 128], strides = [1, 1]} : vector<2x128xf32> to vector<1x128xf32>
    %191 = vector.broadcast %189 : vector<32x1xf32> to vector<32x128xf32>
    %192 = vector.broadcast %190 : vector<1x128xf32> to vector<32x128xf32>
    %193 = arith.mulf %191, %192 : vector<32x128xf32>
    %194 = arith.addf %188, %193 : vector<32x128xf32>
    %cst_56 = arith.constant dense<0.000000e+00> : vector<32x128xf32>
    %195 = tpu.matmul %181, %180, %cst_56 {dimension_numbers = #tpu.dot_dimension_numbers<[1], [0], [0], [1], [0, 0, 1, 1], [], []>} : vector<32x32xf32>, vector<32x128xf32>, vector<32x128xf32> -> vector<32x128xf32>
    %196 = arith.addf %195, %194 : vector<32x128xf32>
    %cst_57 = arith.constant dense<0.000000e+00> : vector<32x128xf32>
    %197 = tpu.matmul %196, %8, %cst_57 {dimension_numbers = #tpu.dot_dimension_numbers<[1], [0], [0], [1], [0, 0, 1, 1], [], []>} : vector<32x128xf32>, vector<128x128xf32>, vector<32x128xf32> -> vector<32x128xf32>
    %198 = arith.subf %197, %194 : vector<32x128xf32>
    %199 = vector.broadcast %9 : vector<1x128xf32> to vector<32x128xf32>
    %200 = arith.addf %198, %199 : vector<32x128xf32>
    %cst_58 = arith.constant dense<0.000000e+00> : vector<32x128xf32>
    %201 = tpu.matmul %196, %14, %cst_58 {dimension_numbers = #tpu.dot_dimension_numbers<[1], [0], [0], [1], [0, 0, 1, 1], [], []>} : vector<32x128xf32>, vector<128x128xf32>, vector<32x128xf32> -> vector<32x128xf32>
    %202 = arith.subf %201, %194 : vector<32x128xf32>
    %203 = vector.broadcast %15 : vector<1x128xf32> to vector<32x128xf32>
    %204 = arith.addf %202, %203 : vector<32x128xf32>
    %205 = arith.maximumf %200, %204 : vector<32x128xf32>
    %cst_59 = arith.constant dense<0.000000e+00> : vector<32x128xf32>
    %206 = tpu.matmul %196, %20, %cst_59 {dimension_numbers = #tpu.dot_dimension_numbers<[1], [0], [0], [1], [0, 0, 1, 1], [], []>} : vector<32x128xf32>, vector<128x128xf32>, vector<32x128xf32> -> vector<32x128xf32>
    %207 = arith.subf %206, %194 : vector<32x128xf32>
    %208 = vector.broadcast %21 : vector<1x128xf32> to vector<32x128xf32>
    %209 = arith.addf %207, %208 : vector<32x128xf32>
    %210 = arith.maximumf %205, %209 : vector<32x128xf32>
    %cst_60 = arith.constant dense<0.000000e+00> : vector<32x128xf32>
    %211 = tpu.matmul %196, %26, %cst_60 {dimension_numbers = #tpu.dot_dimension_numbers<[1], [0], [0], [1], [0, 0, 1, 1], [], []>} : vector<32x128xf32>, vector<128x128xf32>, vector<32x128xf32> -> vector<32x128xf32>
    %212 = arith.subf %211, %194 : vector<32x128xf32>
    %213 = vector.broadcast %27 : vector<1x128xf32> to vector<32x128xf32>
    %214 = arith.addf %212, %213 : vector<32x128xf32>
    %215 = arith.maximumf %210, %214 : vector<32x128xf32>
    %cst_61 = arith.constant dense<0.000000e+00> : vector<32x128xf32>
    %216 = tpu.matmul %196, %32, %cst_61 {dimension_numbers = #tpu.dot_dimension_numbers<[1], [0], [0], [1], [0, 0, 1, 1], [], []>} : vector<32x128xf32>, vector<128x128xf32>, vector<32x128xf32> -> vector<32x128xf32>
    %217 = arith.subf %216, %194 : vector<32x128xf32>
    %218 = vector.broadcast %33 : vector<1x128xf32> to vector<32x128xf32>
    %219 = arith.addf %217, %218 : vector<32x128xf32>
    %220 = arith.maximumf %215, %219 : vector<32x128xf32>
    %cst_62 = arith.constant -1.000000e+29 : f32
    %221 = vector.broadcast %cst_62 : f32 to vector<32x128xf32>
    %222 = arith.cmpf ogt, %220, %221 : vector<32x128xf32>
    %cst_63 = arith.constant 0.000000e+00 : f32
    %223 = vector.broadcast %cst_63 : f32 to vector<32x128xf32>
    %224 = arith.select %222, %220, %223 : vector<32x128xi1>, vector<32x128xf32>
    %225 = vector.broadcast %183 : vector<32x1xf32> to vector<32x128xf32>
    %226 = arith.addf %224, %225 : vector<32x128xf32>
    %cst_64 = arith.constant 0.000000e+00 : f32
    %227 = vector.broadcast %cst_64 : f32 to vector<32x128xf32>
    %228 = arith.maximumf %226, %227 : vector<32x128xf32>
    %c0_65 = arith.constant 0 : index
    %c0_66 = arith.constant 0 : index
    %229 = vector.load %arg4[%c0_65, %c0_66] : memref<5x256xi32, #tpu.memory_space<vmem>>, vector<5x256xi32>
    %c0_67 = arith.constant 0 : index
    %c0_68 = arith.constant 0 : index
    %230 = vector.load %arg5[%c0_67, %c0_68] : memref<5x256xf32, #tpu.memory_space<vmem>>, vector<5x256xf32>
    %231 = tpu.iota {dimensions = array<i32: 0>} : vector<128x256xi32>
    %232 = vector.extract_strided_slice %229 {offsets = [0, 0], sizes = [1, 256], strides = [1, 1]} : vector<5x256xi32> to vector<1x256xi32>
    %233 = vector.broadcast %232 : vector<1x256xi32> to vector<128x256xi32>
    %234 = arith.cmpi eq, %231, %233 : vector<128x256xi32>
    %235 = arith.extui %234 : vector<128x256xi1> to vector<128x256xi32>
    %236 = arith.sitofp %235 : vector<128x256xi32> to vector<128x256xf32>
    %cst_69 = arith.constant dense<0.000000e+00> : vector<32x256xf32>
    %237 = tpu.matmul %228, %236, %cst_69 {dimension_numbers = #tpu.dot_dimension_numbers<[1], [0], [0], [1], [0, 0, 1, 1], [], []>} : vector<32x128xf32>, vector<128x256xf32>, vector<32x256xf32> -> vector<32x256xf32>
    %238 = vector.extract_strided_slice %230 {offsets = [0, 0], sizes = [1, 256], strides = [1, 1]} : vector<5x256xf32> to vector<1x256xf32>
    %239 = vector.broadcast %238 : vector<1x256xf32> to vector<32x256xf32>
    %240 = arith.addf %237, %239 : vector<32x256xf32>
    %241 = vector.extract_strided_slice %229 {offsets = [1, 0], sizes = [1, 256], strides = [1, 1]} : vector<5x256xi32> to vector<1x256xi32>
    %242 = vector.broadcast %241 : vector<1x256xi32> to vector<128x256xi32>
    %243 = arith.cmpi eq, %231, %242 : vector<128x256xi32>
    %244 = arith.extui %243 : vector<128x256xi1> to vector<128x256xi32>
    %245 = arith.sitofp %244 : vector<128x256xi32> to vector<128x256xf32>
    %cst_70 = arith.constant dense<0.000000e+00> : vector<32x256xf32>
    %246 = tpu.matmul %228, %245, %cst_70 {dimension_numbers = #tpu.dot_dimension_numbers<[1], [0], [0], [1], [0, 0, 1, 1], [], []>} : vector<32x128xf32>, vector<128x256xf32>, vector<32x256xf32> -> vector<32x256xf32>
    %247 = vector.extract_strided_slice %230 {offsets = [1, 0], sizes = [1, 256], strides = [1, 1]} : vector<5x256xf32> to vector<1x256xf32>
    %248 = vector.broadcast %247 : vector<1x256xf32> to vector<32x256xf32>
    %249 = arith.addf %246, %248 : vector<32x256xf32>
    %250 = arith.maximumf %240, %249 : vector<32x256xf32>
    %251 = vector.extract_strided_slice %229 {offsets = [2, 0], sizes = [1, 256], strides = [1, 1]} : vector<5x256xi32> to vector<1x256xi32>
    %252 = vector.broadcast %251 : vector<1x256xi32> to vector<128x256xi32>
    %253 = arith.cmpi eq, %231, %252 : vector<128x256xi32>
    %254 = arith.extui %253 : vector<128x256xi1> to vector<128x256xi32>
    %255 = arith.sitofp %254 : vector<128x256xi32> to vector<128x256xf32>
    %cst_71 = arith.constant dense<0.000000e+00> : vector<32x256xf32>
    %256 = tpu.matmul %228, %255, %cst_71 {dimension_numbers = #tpu.dot_dimension_numbers<[1], [0], [0], [1], [0, 0, 1, 1], [], []>} : vector<32x128xf32>, vector<128x256xf32>, vector<32x256xf32> -> vector<32x256xf32>
    %257 = vector.extract_strided_slice %230 {offsets = [2, 0], sizes = [1, 256], strides = [1, 1]} : vector<5x256xf32> to vector<1x256xf32>
    %258 = vector.broadcast %257 : vector<1x256xf32> to vector<32x256xf32>
    %259 = arith.addf %256, %258 : vector<32x256xf32>
    %260 = arith.maximumf %250, %259 : vector<32x256xf32>
    %261 = vector.extract_strided_slice %229 {offsets = [3, 0], sizes = [1, 256], strides = [1, 1]} : vector<5x256xi32> to vector<1x256xi32>
    %262 = vector.broadcast %261 : vector<1x256xi32> to vector<128x256xi32>
    %263 = arith.cmpi eq, %231, %262 : vector<128x256xi32>
    %264 = arith.extui %263 : vector<128x256xi1> to vector<128x256xi32>
    %265 = arith.sitofp %264 : vector<128x256xi32> to vector<128x256xf32>
    %cst_72 = arith.constant dense<0.000000e+00> : vector<32x256xf32>
    %266 = tpu.matmul %228, %265, %cst_72 {dimension_numbers = #tpu.dot_dimension_numbers<[1], [0], [0], [1], [0, 0, 1, 1], [], []>} : vector<32x128xf32>, vector<128x256xf32>, vector<32x256xf32> -> vector<32x256xf32>
    %267 = vector.extract_strided_slice %230 {offsets = [3, 0], sizes = [1, 256], strides = [1, 1]} : vector<5x256xf32> to vector<1x256xf32>
    %268 = vector.broadcast %267 : vector<1x256xf32> to vector<32x256xf32>
    %269 = arith.addf %266, %268 : vector<32x256xf32>
    %270 = arith.maximumf %260, %269 : vector<32x256xf32>
    %271 = vector.extract_strided_slice %229 {offsets = [4, 0], sizes = [1, 256], strides = [1, 1]} : vector<5x256xi32> to vector<1x256xi32>
    %272 = vector.broadcast %271 : vector<1x256xi32> to vector<128x256xi32>
    %273 = arith.cmpi eq, %231, %272 : vector<128x256xi32>
    %274 = arith.extui %273 : vector<128x256xi1> to vector<128x256xi32>
    %275 = arith.sitofp %274 : vector<128x256xi32> to vector<128x256xf32>
    %cst_73 = arith.constant dense<0.000000e+00> : vector<32x256xf32>
    %276 = tpu.matmul %228, %275, %cst_73 {dimension_numbers = #tpu.dot_dimension_numbers<[1], [0], [0], [1], [0, 0, 1, 1], [], []>} : vector<32x128xf32>, vector<128x256xf32>, vector<32x256xf32> -> vector<32x256xf32>
    %277 = vector.extract_strided_slice %230 {offsets = [4, 0], sizes = [1, 256], strides = [1, 1]} : vector<5x256xf32> to vector<1x256xf32>
    %278 = vector.broadcast %277 : vector<1x256xf32> to vector<32x256xf32>
    %279 = arith.addf %276, %278 : vector<32x256xf32>
    %280 = arith.maximumf %270, %279 : vector<32x256xf32>
    %cst_74 = arith.constant -1.000000e+29 : f32
    %281 = vector.broadcast %cst_74 : f32 to vector<32x256xf32>
    %282 = arith.cmpf ogt, %280, %281 : vector<32x256xf32>
    %cst_75 = arith.constant 0.000000e+00 : f32
    %283 = vector.broadcast %cst_75 : f32 to vector<32x256xf32>
    %284 = arith.select %282, %280, %283 : vector<32x256xi1>, vector<32x256xf32>
    %c0_76 = arith.constant 0 : index
    %c0_77 = arith.constant 0 : index
    %285 = vector.load %arg18[%c0_76, %c0_77] : memref<64x256xf32, #tpu.memory_space<vmem>>, vector<64x256xf32>
    %286 = tpu.iota {dimensions = array<i32: 0>} : vector<2x2xi32>
    %287 = tpu.iota {dimensions = array<i32: 1>} : vector<2x2xi32>
    %cst_78 = arith.constant 0.000000e+00 : f32
    %288 = vector.broadcast %cst_78 : f32 to vector<2x2xf32>
    %289 = vector.extract_strided_slice %285 {offsets = [0, 0], sizes = [32, 256], strides = [1, 1]} : vector<64x256xf32> to vector<32x256xf32>
    %290 = arith.mulf %284, %289 : vector<32x256xf32>
    %291 = vector.extract_strided_slice %290 {offsets = [0, 0], sizes = [32, 128], strides = [1, 1]} : vector<32x256xf32> to vector<32x128xf32>
    %cst_79 = arith.constant dense<0.000000e+00> : vector<32xf32>
    %292 = vector.multi_reduction <add>, %291, %cst_79 [1] : vector<32x128xf32> to vector<32xf32>
    %293 = vector.shape_cast %292 : vector<32xf32> to vector<32x1xf32>
    %cst_80 = arith.constant dense<0.000000e+00> : vector<1xf32>
    %294 = vector.multi_reduction <add>, %293, %cst_80 [0] : vector<32x1xf32> to vector<1xf32>
    %295 = vector.shape_cast %294 : vector<1xf32> to vector<1x1xf32>
    %c0_i32 = arith.constant 0 : i32
    %296 = vector.broadcast %c0_i32 : i32 to vector<2x2xi32>
    %297 = arith.cmpi eq, %286, %296 : vector<2x2xi32>
    %c0_i32_81 = arith.constant 0 : i32
    %298 = vector.broadcast %c0_i32_81 : i32 to vector<2x2xi32>
    %299 = arith.cmpi eq, %287, %298 : vector<2x2xi32>
    %300 = arith.andi %297, %299 : vector<2x2xi1>
    %301 = vector.shape_cast %295 : vector<1x1xf32> to vector<1x1xf32>
    %302 = vector.broadcast %301 : vector<1x1xf32> to vector<2x2xf32>
    %303 = arith.select %300, %302, %288 : vector<2x2xi1>, vector<2x2xf32>
    %304 = vector.extract_strided_slice %290 {offsets = [0, 128], sizes = [32, 128], strides = [1, 1]} : vector<32x256xf32> to vector<32x128xf32>
    %cst_82 = arith.constant dense<0.000000e+00> : vector<32xf32>
    %305 = vector.multi_reduction <add>, %304, %cst_82 [1] : vector<32x128xf32> to vector<32xf32>
    %306 = vector.shape_cast %305 : vector<32xf32> to vector<32x1xf32>
    %cst_83 = arith.constant dense<0.000000e+00> : vector<1xf32>
    %307 = vector.multi_reduction <add>, %306, %cst_83 [0] : vector<32x1xf32> to vector<1xf32>
    %308 = vector.shape_cast %307 : vector<1xf32> to vector<1x1xf32>
    %c1_i32 = arith.constant 1 : i32
    %309 = vector.broadcast %c1_i32 : i32 to vector<2x2xi32>
    %310 = arith.cmpi eq, %286, %309 : vector<2x2xi32>
    %c0_i32_84 = arith.constant 0 : i32
    %311 = vector.broadcast %c0_i32_84 : i32 to vector<2x2xi32>
    %312 = arith.cmpi eq, %287, %311 : vector<2x2xi32>
    %313 = arith.andi %310, %312 : vector<2x2xi1>
    %314 = vector.shape_cast %308 : vector<1x1xf32> to vector<1x1xf32>
    %315 = vector.broadcast %314 : vector<1x1xf32> to vector<2x2xf32>
    %316 = arith.select %313, %315, %303 : vector<2x2xi1>, vector<2x2xf32>
    %317 = vector.extract_strided_slice %285 {offsets = [32, 0], sizes = [32, 256], strides = [1, 1]} : vector<64x256xf32> to vector<32x256xf32>
    %318 = arith.mulf %284, %317 : vector<32x256xf32>
    %319 = vector.extract_strided_slice %318 {offsets = [0, 0], sizes = [32, 128], strides = [1, 1]} : vector<32x256xf32> to vector<32x128xf32>
    %cst_85 = arith.constant dense<0.000000e+00> : vector<32xf32>
    %320 = vector.multi_reduction <add>, %319, %cst_85 [1] : vector<32x128xf32> to vector<32xf32>
    %321 = vector.shape_cast %320 : vector<32xf32> to vector<32x1xf32>
    %cst_86 = arith.constant dense<0.000000e+00> : vector<1xf32>
    %322 = vector.multi_reduction <add>, %321, %cst_86 [0] : vector<32x1xf32> to vector<1xf32>
    %323 = vector.shape_cast %322 : vector<1xf32> to vector<1x1xf32>
    %c0_i32_87 = arith.constant 0 : i32
    %324 = vector.broadcast %c0_i32_87 : i32 to vector<2x2xi32>
    %325 = arith.cmpi eq, %286, %324 : vector<2x2xi32>
    %c1_i32_88 = arith.constant 1 : i32
    %326 = vector.broadcast %c1_i32_88 : i32 to vector<2x2xi32>
    %327 = arith.cmpi eq, %287, %326 : vector<2x2xi32>
    %328 = arith.andi %325, %327 : vector<2x2xi1>
    %329 = vector.shape_cast %323 : vector<1x1xf32> to vector<1x1xf32>
    %330 = vector.broadcast %329 : vector<1x1xf32> to vector<2x2xf32>
    %331 = arith.select %328, %330, %316 : vector<2x2xi1>, vector<2x2xf32>
    %332 = vector.extract_strided_slice %318 {offsets = [0, 128], sizes = [32, 128], strides = [1, 1]} : vector<32x256xf32> to vector<32x128xf32>
    %cst_89 = arith.constant dense<0.000000e+00> : vector<32xf32>
    %333 = vector.multi_reduction <add>, %332, %cst_89 [1] : vector<32x128xf32> to vector<32xf32>
    %334 = vector.shape_cast %333 : vector<32xf32> to vector<32x1xf32>
    %cst_90 = arith.constant dense<0.000000e+00> : vector<1xf32>
    %335 = vector.multi_reduction <add>, %334, %cst_90 [0] : vector<32x1xf32> to vector<1xf32>
    %336 = vector.shape_cast %335 : vector<1xf32> to vector<1x1xf32>
    %c1_i32_91 = arith.constant 1 : i32
    %337 = vector.broadcast %c1_i32_91 : i32 to vector<2x2xi32>
    %338 = arith.cmpi eq, %286, %337 : vector<2x2xi32>
    %c1_i32_92 = arith.constant 1 : i32
    %339 = vector.broadcast %c1_i32_92 : i32 to vector<2x2xi32>
    %340 = arith.cmpi eq, %287, %339 : vector<2x2xi32>
    %341 = arith.andi %338, %340 : vector<2x2xi1>
    %342 = vector.shape_cast %336 : vector<1x1xf32> to vector<1x1xf32>
    %343 = vector.broadcast %342 : vector<1x1xf32> to vector<2x2xf32>
    %344 = arith.select %341, %343, %331 : vector<2x2xi1>, vector<2x2xf32>
    %c0_93 = arith.constant 0 : index
    %c0_94 = arith.constant 0 : index
    %345 = vector.load %arg19[%c0_93, %c0_94] : memref<2x2xf32, #tpu.memory_space<vmem>>, vector<2x2xf32>
    tpu.vector_store %arg19[%c0_93, %c0_94], %344 {strides = array<i32>} : memref<2x2xf32, #tpu.memory_space<vmem>>, vector<2x2xf32>,
    return
  }
}

</mosaic_0001>

<llo_original>
// kernel: graph_res_forward.1
$region0: #{graph_res_forward.1}
  #allocation0 [shape = 'u32[]', space=smem, size = 0x4, offset = 0x4, fixed_abs, tag = 'smem constant byte address 0x4 - core index']
  #allocation1 [shape = 'u32[144,128]{1,0:T(1,128)}', space=vmem, size = 0x12000, scoped, tag = 'internal scratch']
  %s0 = inlined_call_operand.vmem [shape: f32[1,128], index: 0, kind: input, shape index: {}]
  %s1 = inlined_call_operand.vmem [shape: f32[2,128], index: 1, kind: input, shape index: {}]
  %s2 = inlined_call_operand.vmem [shape: s32[5,128], index: 2, kind: input, shape index: {}]
  %s3 = inlined_call_operand.vmem [shape: f32[5,128], index: 3, kind: input, shape index: {}]
  %s4 = inlined_call_operand.vmem [shape: s32[5,256], index: 4, kind: input, shape index: {}]
  %s5 = inlined_call_operand.vmem [shape: f32[5,256], index: 5, kind: input, shape index: {}]
  %s6 = inlined_call_operand.vmem [shape: f32[16,1], index: 6, kind: input, shape index: {}]
  %s7 = inlined_call_operand.vmem [shape: f32[16,2], index: 7, kind: input, shape index: {}]
  %s8 = inlined_call_operand.vmem [shape: f32[16,1], index: 8, kind: input, shape index: {}]
  %s9 = inlined_call_operand.vmem [shape: f32[32,16], index: 9, kind: input, shape index: {}]
  %s10 = inlined_call_operand.vmem [shape: f32[32,2], index: 10, kind: input, shape index: {}]
  %s11 = inlined_call_operand.vmem [shape: f32[32,1], index: 11, kind: input, shape index: {}]
  %s12 = inlined_call_operand.vmem [shape: f32[32,32], index: 12, kind: input, shape index: {}]
  %s13 = inlined_call_operand.vmem [shape: f32[32,2], index: 13, kind: input, shape index: {}]
  %s14 = inlined_call_operand.vmem [shape: f32[32,1], index: 14, kind: input, shape index: {}]
  %s15 = inlined_call_operand.vmem [shape: f32[32,32], index: 15, kind: input, shape index: {}]
  %s16 = inlined_call_operand.vmem [shape: f32[32,2], index: 16, kind: input, shape index: {}]
  %s17 = inlined_call_operand.vmem [shape: f32[32,1], index: 17, kind: input, shape index: {}]
  %s18 = inlined_call_operand.vmem [shape: f32[64,256], index: 18, kind: input, shape index: {}]
  %s19 = inlined_call_operand.hbm [shape: f32[2,2], index: 19, kind: output, shape index: {}]
  %s20 = sld [smem:[#allocation0]]
  $region86: #{graph_res_forward.1} parent=0
    _
  %s22 = ssub.s32 1, %s20
  %s23 = scalar_select 0, %s22, %s20
  $region1: #{graph_res_forward.1} parent=0
    #allocation2 [shape = 'u8[1024]{0}', space=vmem, size = 0x400, scoped, tag = 'output window, operand 0, single buffered']
    #allocation3 [shape = 's32[1]{0}', space=sflag, size = 0x4, scoped, tag = 'scoped memory for graph_res_forward.1']
    %24 = vsyncpa [#allocation3], 0
    // Predicated region
    $region2: #{graph_res_forward.1} parent=1 // pred_check
      _
    $region3: #{graph_res_forward.1} parent=1 // pred_check_branch
      %26 = sbr.rel (0) target = $region5
    $region4: #{graph_res_forward.1} parent=1 // pred_region
      _
    $region5: #{graph_res_forward.1} parent=1 // pred_fallthru
      _
    // Predicated region
    $region6: #{graph_res_forward.1} parent=1 // pred_check
      _
    $region7: #{graph_res_forward.1} parent=1 // pred_check_branch
      %28 = sbr.rel (0) target = $region9
    $region8: #{graph_res_forward.1} parent=1 // pred_region
      _
    $region9: #{graph_res_forward.1} parent=1 // pred_fallthru
      _
    // Predicated region
    $region10: #{graph_res_forward.1} parent=1 // pred_check
      _
    $region11: #{graph_res_forward.1} parent=1 // pred_check_branch
      %30 = sbr.rel (0) target = $region13
    $region12: #{graph_res_forward.1} parent=1 // pred_region
      _
    $region13: #{graph_res_forward.1} parent=1 // pred_fallthru
      _
    // Predicated region
    $region14: #{graph_res_forward.1} parent=1 // pred_check
      _
    $region15: #{graph_res_forward.1} parent=1 // pred_check_branch
      %32 = sbr.rel (0) target = $region17
    $region16: #{graph_res_forward.1} parent=1 // pred_region
      _
    $region17: #{graph_res_forward.1} parent=1 // pred_fallthru
      _
    // Predicated region
    $region18: #{graph_res_forward.1} parent=1 // pred_check
      _
    $region19: #{graph_res_forward.1} parent=1 // pred_check_branch
      %34 = sbr.rel (0) target = $region21
    $region20: #{graph_res_forward.1} parent=1 // pred_region
      _
    $region21: #{graph_res_forward.1} parent=1 // pred_fallthru
      _
    // Predicated region
    $region22: #{graph_res_forward.1} parent=1 // pred_check
      _
    $region23: #{graph_res_forward.1} parent=1 // pred_check_branch
      %36 = sbr.rel (0) target = $region25
    $region24: #{graph_res_forward.1} parent=1 // pred_region
      _
    $region25: #{graph_res_forward.1} parent=1 // pred_fallthru
      _
    // Predicated region
    $region26: #{graph_res_forward.1} parent=1 // pred_check
      _
    $region27: #{graph_res_forward.1} parent=1 // pred_check_branch
      %38 = sbr.rel (0) target = $region29
    $region28: #{graph_res_forward.1} parent=1 // pred_region
      _
    $region29: #{graph_res_forward.1} parent=1 // pred_fallthru
      _
    // Predicated region
    $region30: #{graph_res_forward.1} parent=1 // pred_check
      _
    $region31: #{graph_res_forward.1} parent=1 // pred_check_branch
      %40 = sbr.rel (0) target = $region33
    $region32: #{graph_res_forward.1} parent=1 // pred_region
      _
    $region33: #{graph_res_forward.1} parent=1 // pred_fallthru
      _
    // Predicated region
    $region34: #{graph_res_forward.1} parent=1 // pred_check
      _
    $region35: #{graph_res_forward.1} parent=1 // pred_check_branch
      %42 = sbr.rel (0) target = $region37
    $region36: #{graph_res_forward.1} parent=1 // pred_region
      _
    $region37: #{graph_res_forward.1} parent=1 // pred_fallthru
      _
    // Predicated region
    $region38: #{graph_res_forward.1} parent=1 // pred_check
      _
    $region39: #{graph_res_forward.1} parent=1 // pred_check_branch
      %44 = sbr.rel (0) target = $region41
    $region40: #{graph_res_forward.1} parent=1 // pred_region
      _
    $region41: #{graph_res_forward.1} parent=1 // pred_fallthru
      _
    // Predicated region
    $region42: #{graph_res_forward.1} parent=1 // pred_check
      _
    $region43: #{graph_res_forward.1} parent=1 // pred_check_branch
      %46 = sbr.rel (0) target = $region45
    $region44: #{graph_res_forward.1} parent=1 // pred_region
      _
    $region45: #{graph_res_forward.1} parent=1 // pred_fallthru
      _
    // Predicated region
    $region46: #{graph_res_forward.1} parent=1 // pred_check
      _
    $region47: #{graph_res_forward.1} parent=1 // pred_check_branch
      %48 = sbr.rel (0) target = $region49
    $region48: #{graph_res_forward.1} parent=1 // pred_region
      _
    $region49: #{graph_res_forward.1} parent=1 // pred_fallthru
      _
    // Predicated region
    $region50: #{graph_res_forward.1} parent=1 // pred_check
      _
    $region51: #{graph_res_forward.1} parent=1 // pred_check_branch
      %50 = sbr.rel (0) target = $region53
    $region52: #{graph_res_forward.1} parent=1 // pred_region
      _
    $region53: #{graph_res_forward.1} parent=1 // pred_fallthru
      _
    // Predicated region
    $region54: #{graph_res_forward.1} parent=1 // pred_check
      _
    $region55: #{graph_res_forward.1} parent=1 // pred_check_branch
      %52 = sbr.rel (0) target = $region57
    $region56: #{graph_res_forward.1} parent=1 // pred_region
      _
    $region57: #{graph_res_forward.1} parent=1 // pred_fallthru
      _
    // Predicated region
    $region58: #{graph_res_forward.1} parent=1 // pred_check
      _
    $region59: #{graph_res_forward.1} parent=1 // pred_check_branch
      %54 = sbr.rel (0) target = $region61
    $region60: #{graph_res_forward.1} parent=1 // pred_region
      _
    $region61: #{graph_res_forward.1} parent=1 // pred_fallthru
      _
    // Predicated region
    $region62: #{graph_res_forward.1} parent=1 // pred_check
      _
    $region63: #{graph_res_forward.1} parent=1 // pred_check_branch
      %56 = sbr.rel (0) target = $region65
    $region64: #{graph_res_forward.1} parent=1 // pred_region
      _
    $region65: #{graph_res_forward.1} parent=1 // pred_fallthru
      _
    // Predicated region
    $region66: #{graph_res_forward.1} parent=1 // pred_check
      _
    $region67: #{graph_res_forward.1} parent=1 // pred_check_branch
      %58 = sbr.rel (0) target = $region69
    $region68: #{graph_res_forward.1} parent=1 // pred_region
      _
    $region69: #{graph_res_forward.1} parent=1 // pred_fallthru
      _
    // Predicated region
    $region70: #{graph_res_forward.1} parent=1 // pred_check
      _
    $region71: #{graph_res_forward.1} parent=1 // pred_check_branch
      %60 = sbr.rel (0) target = $region73
    $region72: #{graph_res_forward.1} parent=1 // pred_region
      _
    $region73: #{graph_res_forward.1} parent=1 // pred_fallthru
      _
    // Predicated region
    $region74: #{graph_res_forward.1} parent=1 // pred_check
      _
    $region75: #{graph_res_forward.1} parent=1 // pred_check_branch
      %62 = sbr.rel (0) target = $region77
    $region76: #{graph_res_forward.1} parent=1 // pred_region
      _
    $region77: #{graph_res_forward.1} parent=1 // pred_fallthru
      _
    %v63 = vld [vmem:[%s1] sm:$0x3]
    %v64 = vld [vmem:[%s2] sm:$0x1f]
    %v65 = vld [vmem:[%s3] sm:$0x1f]
    %v66 = vlaneseq
    %v67 = vshrl.u32 %v66, 7
    %v68 = vadd.s32 %v67, 8
    %v69 = vadd.s32 %v67, 16
    %v70 = vadd.s32 %v67, 24
    %v71 = vadd.s32 %v67, 32
    %v72 = vadd.s32 %v67, 40
    %v73 = vadd.s32 %v67, 48
    %v74 = vadd.s32 %v67, 56
    %v75 = vadd.s32 %v67, 64
    %v76 = vadd.s32 %v67, 72
    %v77 = vadd.s32 %v67, 80
    %v78 = vadd.s32 %v67, 88
    %v79 = vadd.s32 %v67, 96
    %v80 = vadd.s32 %v67, 104
    %v81 = vadd.s32 %v67, 112
    %v82 = vadd.s32 %v67, 120
    %v83 = vlaneseq
    %v84 = vshrl.u32 %v83, 7
    %v85 = vsub.s32 0, %v84
    %v86 = vrot.slane %v64, %v85
    %vm87 = vcmp.eq.s32.totalorder %v67, %v86
    %vm88 = vcmp.eq.s32.totalorder %v68, %v86
    %vm89 = vcmp.eq.s32.totalorder %v69, %v86
    %vm90 = vcmp.eq.s32.totalorder %v70, %v86
    %vm91 = vcmp.eq.s32.totalorder %v71, %v86
    %vm92 = vcmp.eq.s32.totalorder %v72, %v86
    %vm93 = vcmp.eq.s32.totalorder %v73, %v86
    %vm94 = vcmp.eq.s32.totalorder %v74, %v86
    %vm95 = vcmp.eq.s32.totalorder %v75, %v86
    %vm96 = vcmp.eq.s32.totalorder %v76, %v86
    %vm97 = vcmp.eq.s32.totalorder %v77, %v86
    %vm98 = vcmp.eq.s32.totalorder %v78, %v86
    %vm99 = vcmp.eq.s32.totalorder %v79, %v86
    %vm100 = vcmp.eq.s32.totalorder %v80, %v86
    %vm101 = vcmp.eq.s32.totalorder %v81, %v86
    %vm102 = vcmp.eq.s32.totalorder %v82, %v86
    %v103 = vsel %vm87, 1, 0
    %v104 = vsel %vm88, 1, 0
    %v105 = vsel %vm89, 1, 0
    %v106 = vsel %vm90, 1, 0
    %v107 = vsel %vm91, 1, 0
    %v108 = vsel %vm92, 1, 0
    %v109 = vsel %vm93, 1, 0
    %v110 = vsel %vm94, 1, 0
    %v111 = vsel %vm95, 1, 0
    %v112 = vsel %vm96, 1, 0
    %v113 = vsel %vm97, 1, 0
    %v114 = vsel %vm98, 1, 0
    %v115 = vsel %vm99, 1, 0
    %v116 = vsel %vm100, 1, 0
    %v117 = vsel %vm101, 1, 0
    %v118 = vsel %vm102, 1, 0
    %v119 = vcvt.s32.f32 %v103
    %v120 = vcvt.s32.f32 %v104
    %v121 = vcvt.s32.f32 %v105
    %v122 = vcvt.s32.f32 %v106
    %v123 = vcvt.s32.f32 %v107
    %v124 = vcvt.s32.f32 %v108
    %v125 = vcvt.s32.f32 %v109
    %v126 = vcvt.s32.f32 %v110
    %v127 = vcvt.s32.f32 %v111
    %v128 = vcvt.s32.f32 %v112
    %v129 = vcvt.s32.f32 %v113
    %v130 = vcvt.s32.f32 %v114
    %v131 = vcvt.s32.f32 %v115
    %v132 = vcvt.s32.f32 %v116
    %v133 = vcvt.s32.f32 %v117
    %v134 = vcvt.s32.f32 %v118
    %v135 = vlaneseq
    %v136 = vshrl.u32 %v135, 7
    %v137 = vsub.s32 1, %v136
    %v138 = vrot.slane %v64, %v137
    %vm139 = vcmp.eq.s32.totalorder %v67, %v138
    %vm140 = vcmp.eq.s32.totalorder %v68, %v138
    %vm141 = vcmp.eq.s32.totalorder %v69, %v138
    %vm142 = vcmp.eq.s32.totalorder %v70, %v138
    %vm143 = vcmp.eq.s32.totalorder %v71, %v138
    %vm144 = vcmp.eq.s32.totalorder %v72, %v138
    %vm145 = vcmp.eq.s32.totalorder %v73, %v138
    %vm146 = vcmp.eq.s32.totalorder %v74, %v138
    %vm147 = vcmp.eq.s32.totalorder %v75, %v138
    %vm148 = vcmp.eq.s32.totalorder %v76, %v138
    %vm149 = vcmp.eq.s32.totalorder %v77, %v138
    %vm150 = vcmp.eq.s32.totalorder %v78, %v138
    %vm151 = vcmp.eq.s32.totalorder %v79, %v138
    %vm152 = vcmp.eq.s32.totalorder %v80, %v138
    %vm153 = vcmp.eq.s32.totalorder %v81, %v138
    %vm154 = vcmp.eq.s32.totalorder %v82, %v138
    %v155 = vsel %vm139, 1, 0
    %v156 = vsel %vm140, 1, 0
    %v157 = vsel %vm141, 1, 0
    %v158 = vsel %vm142, 1, 0
    %v159 = vsel %vm143, 1, 0
    %v160 = vsel %vm144, 1, 0
    %v161 = vsel %vm145, 1, 0
    %v162 = vsel %vm146, 1, 0
    %v163 = vsel %vm147, 1, 0
    %v164 = vsel %vm148, 1, 0
    %v165 = vsel %vm149, 1, 0
    %v166 = vsel %vm150, 1, 0
    %v167 = vsel %vm151, 1, 0
    %v168 = vsel %vm152, 1, 0
    %v169 = vsel %vm153, 1, 0
    %v170 = vsel %vm154, 1, 0
    %v171 = vcvt.s32.f32 %v155
    %v172 = vcvt.s32.f32 %v156
    %v173 = vcvt.s32.f32 %v157
    %v174 = vcvt.s32.f32 %v158
    %v175 = vcvt.s32.f32 %v159
    %v176 = vcvt.s32.f32 %v160
    %v177 = vcvt.s32.f32 %v161
    %v178 = vcvt.s32.f32 %v162
    %v179 = vcvt.s32.f32 %v163
    %v180 = vcvt.s32.f32 %v164
    %v181 = vcvt.s32.f32 %v165
    %v182 = vcvt.s32.f32 %v166
    %v183 = vcvt.s32.f32 %v167
    %v184 = vcvt.s32.f32 %v168
    %v185 = vcvt.s32.f32 %v169
    %v186 = vcvt.s32.f32 %v170
    %v187 = vlaneseq
    %v188 = vshrl.u32 %v187, 7
    %v189 = vsub.s32 2, %v188
    %v190 = vrot.slane %v64, %v189
    %vm191 = vcmp.eq.s32.totalorder %v67, %v190
    %vm192 = vcmp.eq.s32.totalorder %v68, %v190
    %vm193 = vcmp.eq.s32.totalorder %v69, %v190
    %vm194 = vcmp.eq.s32.totalorder %v70, %v190
    %vm195 = vcmp.eq.s32.totalorder %v71, %v190
    %vm196 = vcmp.eq.s32.totalorder %v72, %v190
    %vm197 = vcmp.eq.s32.totalorder %v73, %v190
    %vm198 = vcmp.eq.s32.totalorder %v74, %v190
    %vm199 = vcmp.eq.s32.totalorder %v75, %v190
    %vm200 = vcmp.eq.s32.totalorder %v76, %v190
    %vm201 = vcmp.eq.s32.totalorder %v77, %v190
    %vm202 = vcmp.eq.s32.totalorder %v78, %v190
    %vm203 = vcmp.eq.s32.totalorder %v79, %v190
    %vm204 = vcmp.eq.s32.totalorder %v80, %v190
    %vm205 = vcmp.eq.s32.totalorder %v81, %v190
    %vm206 = vcmp.eq.s32.totalorder %v82, %v190
    %v207 = vsel %vm191, 1, 0
    %v208 = vsel %vm192, 1, 0
    %v209 = vsel %vm193, 1, 0
    %v210 = vsel %vm194, 1, 0
    %v211 = vsel %vm195, 1, 0
    %v212 = vsel %vm196, 1, 0
    %v213 = vsel %vm197, 1, 0
    %v214 = vsel %vm198, 1, 0
    %v215 = vsel %vm199, 1, 0
    %v216 = vsel %vm200, 1, 0
    %v217 = vsel %vm201, 1, 0
    %v218 = vsel %vm202, 1, 0
    %v219 = vsel %vm203, 1, 0
    %v220 = vsel %vm204, 1, 0
    %v221 = vsel %vm205, 1, 0
    %v222 = vsel %vm206, 1, 0
    %v223 = vcvt.s32.f32 %v207
    %v224 = vcvt.s32.f32 %v208
    %v225 = vcvt.s32.f32 %v209
    %v226 = vcvt.s32.f32 %v210
    %v227 = vcvt.s32.f32 %v211
    %v228 = vcvt.s32.f32 %v212
    %v229 = vcvt.s32.f32 %v213
    %v230 = vcvt.s32.f32 %v214
    %v231 = vcvt.s32.f32 %v215
    %v232 = vcvt.s32.f32 %v216
    %v233 = vcvt.s32.f32 %v217
    %v234 = vcvt.s32.f32 %v218
    %v235 = vcvt.s32.f32 %v219
    %v236 = vcvt.s32.f32 %v220
    %v237 = vcvt.s32.f32 %v221
    %v238 = vcvt.s32.f32 %v222
    %v239 = vlaneseq
    %v240 = vshrl.u32 %v239, 7
    %v241 = vsub.s32 3, %v240
    %v242 = vrot.slane %v64, %v241
    %vm243 = vcmp.eq.s32.totalorder %v67, %v242
    %vm244 = vcmp.eq.s32.totalorder %v68, %v242
    %vm245 = vcmp.eq.s32.totalorder %v69, %v242
    %vm246 = vcmp.eq.s32.totalorder %v70, %v242
    %vm247 = vcmp.eq.s32.totalorder %v71, %v242
    %vm248 = vcmp.eq.s32.totalorder %v72, %v242
    %vm249 = vcmp.eq.s32.totalorder %v73, %v242
    %vm250 = vcmp.eq.s32.totalorder %v74, %v242
    %vm251 = vcmp.eq.s32.totalorder %v75, %v242
    %vm252 = vcmp.eq.s32.totalorder %v76, %v242
    %vm253 = vcmp.eq.s32.totalorder %v77, %v242
    %vm254 = vcmp.eq.s32.totalorder %v78, %v242
    %vm255 = vcmp.eq.s32.totalorder %v79, %v242
    %vm256 = vcmp.eq.s32.totalorder %v80, %v242
    %vm257 = vcmp.eq.s32.totalorder %v81, %v242
    %vm258 = vcmp.eq.s32.totalorder %v82, %v242
    %v259 = vsel %vm243, 1, 0
    %v260 = vsel %vm244, 1, 0
    %v261 = vsel %vm245, 1, 0
    %v262 = vsel %vm246, 1, 0
    %v263 = vsel %vm247, 1, 0
    %v264 = vsel %vm248, 1, 0
    %v265 = vsel %vm249, 1, 0
    %v266 = vsel %vm250, 1, 0
    %v267 = vsel %vm251, 1, 0
    %v268 = vsel %vm252, 1, 0
    %v269 = vsel %vm253, 1, 0
    %v270 = vsel %vm254, 1, 0
    %v271 = vsel %vm255, 1, 0
    %v272 = vsel %vm256, 1, 0
    %v273 = vsel %vm257, 1, 0
    %v274 = vsel %vm258, 1, 0
    %v275 = vcvt.s32.f32 %v259
    %v276 = vcvt.s32.f32 %v260
    %v277 = vcvt.s32.f32 %v261
    %v278 = vcvt.s32.f32 %v262
    %v279 = vcvt.s32.f32 %v263
    %v280 = vcvt.s32.f32 %v264
    %v281 = vcvt.s32.f32 %v265
    %v282 = vcvt.s32.f32 %v266
    %v283 = vcvt.s32.f32 %v267
    %v284 = vcvt.s32.f32 %v268
    %v285 = vcvt.s32.f32 %v269
    %v286 = vcvt.s32.f32 %v270
    %v287 = vcvt.s32.f32 %v271
    %v288 = vcvt.s32.f32 %v272
    %v289 = vcvt.s32.f32 %v273
    %v290 = vcvt.s32.f32 %v274
    %v291 = vlaneseq
    %v292 = vshrl.u32 %v291, 7
    %v293 = vsub.s32 4, %v292
    %v294 = vrot.slane %v64, %v293
    %vm295 = vcmp.eq.s32.totalorder %v67, %v294
    %vm296 = vcmp.eq.s32.totalorder %v68, %v294
    %vm297 = vcmp.eq.s32.totalorder %v69, %v294
    %vm298 = vcmp.eq.s32.totalorder %v70, %v294
    %vm299 = vcmp.eq.s32.totalorder %v71, %v294
    %vm300 = vcmp.eq.s32.totalorder %v72, %v294
    %vm301 = vcmp.eq.s32.totalorder %v73, %v294
    %vm302 = vcmp.eq.s32.totalorder %v74, %v294
    %vm303 = vcmp.eq.s32.totalorder %v75, %v294
    %vm304 = vcmp.eq.s32.totalorder %v76, %v294
    %vm305 = vcmp.eq.s32.totalorder %v77, %v294
    %vm306 = vcmp.eq.s32.totalorder %v78, %v294
    %vm307 = vcmp.eq.s32.totalorder %v79, %v294
    %vm308 = vcmp.eq.s32.totalorder %v80, %v294
    %vm309 = vcmp.eq.s32.totalorder %v81, %v294
    %vm310 = vcmp.eq.s32.totalorder %v82, %v294
    %v311 = vsel %vm295, 1, 0
    %v312 = vsel %vm296, 1, 0
    %v313 = vsel %vm297, 1, 0
    %v314 = vsel %vm298, 1, 0
    %v315 = vsel %vm299, 1, 0
    %v316 = vsel %vm300, 1, 0
    %v317 = vsel %vm301, 1, 0
    %v318 = vsel %vm302, 1, 0
    %v319 = vsel %vm303, 1, 0
    %v320 = vsel %vm304, 1, 0
    %v321 = vsel %vm305, 1, 0
    %v322 = vsel %vm306, 1, 0
    %v323 = vsel %vm307, 1, 0
    %v324 = vsel %vm308, 1, 0
    %v325 = vsel %vm309, 1, 0
    %v326 = vsel %vm310, 1, 0
    %v327 = vcvt.s32.f32 %v311
    %v328 = vcvt.s32.f32 %v312
    %v329 = vcvt.s32.f32 %v313
    %v330 = vcvt.s32.f32 %v314
    %v331 = vcvt.s32.f32 %v315
    %v332 = vcvt.s32.f32 %v316
    %v333 = vcvt.s32.f32 %v317
    %v334 = vcvt.s32.f32 %v318
    %v335 = vcvt.s32.f32 %v319
    %v336 = vcvt.s32.f32 %v320
    %v337 = vcvt.s32.f32 %v321
    %v338 = vcvt.s32.f32 %v322
    %v339 = vcvt.s32.f32 %v323
    %v340 = vcvt.s32.f32 %v324
    %v341 = vcvt.s32.f32 %v325
    %v342 = vcvt.s32.f32 %v326
    %v343 = vld [vmem:[%s0] sm:$0x1]
    %v344 = vld [vmem:[%s6] sm:$0xff]
    %v345 = vld [vmem:[%s6 + $0x8] sm:$0xff]
    %v346 = vld [vmem:[%s7] sm:$0xff]
    %v347 = vld [vmem:[%s7 + $0x8] sm:$0xff]
    %v348 = vld [vmem:[%s8] sm:$0xff]
    %v349 = vld [vmem:[%s8 + $0x8] sm:$0xff]
    %351 = vset.pattern.permute.xlu0 0
    %352 = vperm.xlu0 %351, %v346
    %v353 = vpop.permute.xlu0 %352
    %356 = vset.pattern.permute.xlu0 0
    %357 = vperm.xlu0 %356, %v347
    %v358 = vpop.permute.xlu0 %357
    %v360 = vlaneseq
    %v361 = vshrl.u32 %v360, 7
    %v362 = vsub.s32 0, %v361
    %v363 = vrot.slane %v63, %v362
    %v364 = vmul.f32 %v353, %v363
    %v365 = vmul.f32 %v358, %v363
    %366 = vset.pattern.permute.xlu0 1
    %367 = vperm.xlu0 %366, %v346
    %v368 = vpop.permute.xlu0 %367
    %370 = vset.pattern.permute.xlu0 1
    %371 = vperm.xlu0 %370, %v347
    %v372 = vpop.permute.xlu0 %371
    %v374 = vlaneseq
    %v375 = vshrl.u32 %v374, 7
    %v376 = vsub.s32 1, %v375
    %v377 = vrot.slane %v63, %v376
    %v378 = vmul.f32 %v368, %v377
    %v379 = vmul.f32 %v372, %v377
    %v380 = vadd.f32 %v364, %v378
    %v381 = vadd.f32 %v365, %v379
    %383 = vset.pattern.permute.xlu0 0
    %384 = vperm.xlu0 %383, %v344
    %v385 = vpop.permute.xlu0 %384
    %388 = vset.pattern.permute.xlu0 0
    %389 = vperm.xlu0 %388, %v345
    %v390 = vpop.permute.xlu0 %389
    %v393 = vlaneseq
    %v394 = vshrl.u32 %v393, 7
    %v395 = vsub.s32 0, %v394
    %v396 = vrot.slane %v343, %v395
    %v398 = vmul.f32 %v385, %v396
    %v399 = vmul.f32 %v390, %v396
    %v400 = vadd.f32 %v398, %v380
    %v401 = vadd.f32 %v399, %v381
    %402 = vmatprep.subr.mxu0 0.0
    %403 = vmatpush1.msra.mxu0 %v119
    %404 = vmatprep.subr.mxu0 0.0
    %405 = vmatpush1.msra.mxu0 %v120
    %406 = vmatprep.subr.mxu0 0.0
    %407 = vmatpush1.msra.mxu0 %v121
    %408 = vmatprep.subr.mxu0 0.0
    %409 = vmatpush1.msra.mxu0 %v122
    %410 = vmatprep.subr.mxu0 0.0
    %411 = vmatpush1.msra.mxu0 %v123
    %412 = vmatprep.subr.mxu0 0.0
    %413 = vmatpush1.msra.mxu0 %v124
    %414 = vmatprep.subr.mxu0 0.0
    %415 = vmatpush1.msra.mxu0 %v125
    %416 = vmatprep.subr.mxu0 0.0
    %417 = vmatpush1.msra.mxu0 %v126
    %418 = vmatprep.subr.mxu0 0.0
    %419 = vmatpush1.msra.mxu0 %v127
    %420 = vmatprep.subr.mxu0 0.0
    %421 = vmatpush1.msra.mxu0 %v128
    %422 = vmatprep.subr.mxu0 0.0
    %423 = vmatpush1.msra.mxu0 %v129
    %424 = vmatprep.subr.mxu0 0.0
    %425 = vmatpush1.msra.mxu0 %v130
    %426 = vmatprep.subr.mxu0 0.0
    %427 = vmatpush1.msra.mxu0 %v131
    %428 = vmatprep.subr.mxu0 0.0
    %429 = vmatpush1.msra.mxu0 %v132
    %430 = vmatprep.subr.mxu0 0.0
    %431 = vmatpush1.msra.mxu0 %v133
    %432 = vmatprep.subr.mxu0 0.0
    %433 = vmatpush1.msra.mxu0 %v134
    %434 = vmatprep.subr.mxu0 0.0
    %435 = vmatpush1.msra.mxu0 0.0
    %436 = vmatprep.subr.mxu0 0.0
    %437 = vmatpush1.msra.mxu0 0.0
    %438 = vmatprep.subr.mxu0 0.0
    %439 = vmatpush1.msra.mxu0 0.0
    %440 = vmatprep.subr.mxu0 0.0
    %441 = vmatpush1.msra.mxu0 0.0
    %442 = vmatprep.subr.mxu0 0.0
    %443 = vmatpush1.msra.mxu0 0.0
    %444 = vmatprep.subr.mxu0 0.0
    %445 = vmatpush1.msra.mxu0 0.0
    %446 = vmatprep.subr.mxu0 0.0
    %447 = vmatpush1.msra.mxu0 0.0
    %448 = vmatprep.subr.mxu0 0.0
    %449 = vmatpush1.msra.mxu0 0.0
    %450 = vmatprep.subr.mxu0 0.0
    %451 = vmatpush1.msra.mxu0 0.0
    %452 = vmatprep.subr.mxu0 0.0
    %453 = vmatpush1.msra.mxu0 0.0
    %454 = vmatprep.subr.mxu0 0.0
    %455 = vmatpush1.msra.mxu0 0.0
    %456 = vmatprep.subr.mxu0 0.0
    %457 = vmatpush1.msra.mxu0 0.0
    %458 = vmatprep.subr.mxu0 0.0
    %459 = vmatpush1.msra.mxu0 0.0
    %460 = vmatprep.subr.mxu0 0.0
    %461 = vmatpush1.msra.mxu0 0.0
    %462 = vmatprep.subr.mxu0 0.0
    %463 = vmatpush1.msra.mxu0 0.0
    %464 = vmatprep.subr.mxu0 0.0
    %465 = vmatpush1.msra.mxu0 0.0
    %466 = vmatprep.mubr.f32.mxu0 0.0
    %467 = vmatmul.mubr.f32.gmra.mrb[0].mxu0 %v400
    %v468 = vpop.f32.mrb[0].mxu0
    %v469 = vadd.f32 0.0, %v468
    %v470 = vpop.f32.mrb[0].mxu0
    %471 = vmatprep.mubr.f32.mxu0 0.0
    %472 = vmatmul.mubr.f32.gmra.mrb[0].mxu0 %v401
    %v473 = vpop.f32.mrb[0].mxu0
    %v474 = vadd.f32 0.0, %v473
    %v475 = vpop.f32.mrb[0].mxu0
    %476 = vdwg.mxu0
    %v477 = vsub.f32 %v469, %v380
    %v478 = vsub.f32 %v474, %v381
    %v479 = vlaneseq
    %v480 = vshrl.u32 %v479, 7
    %v481 = vsub.s32 0, %v480
    %v482 = vrot.slane %v65, %v481
    %v483 = vadd.f32 %v477, %v482
    %v484 = vadd.f32 %v478, %v482
    %485 = vmatprep.subr.mxu0 0.0
    %486 = vmatpush1.msra.mxu0 %v171
    %487 = vmatprep.subr.mxu0 0.0
    %488 = vmatpush1.msra.mxu0 %v172
    %489 = vmatprep.subr.mxu0 0.0
    %490 = vmatpush1.msra.mxu0 %v173
    %491 = vmatprep.subr.mxu0 0.0
    %492 = vmatpush1.msra.mxu0 %v174
    %493 = vmatprep.subr.mxu0 0.0
    %494 = vmatpush1.msra.mxu0 %v175
    %495 = vmatprep.subr.mxu0 0.0
    %496 = vmatpush1.msra.mxu0 %v176
    %497 = vmatprep.subr.mxu0 0.0
    %498 = vmatpush1.msra.mxu0 %v177
    %499 = vmatprep.subr.mxu0 0.0
    %500 = vmatpush1.msra.mxu0 %v178
    %501 = vmatprep.subr.mxu0 0.0
    %502 = vmatpush1.msra.mxu0 %v179
    %503 = vmatprep.subr.mxu0 0.0
    %504 = vmatpush1.msra.mxu0 %v180
    %505 = vmatprep.subr.mxu0 0.0
    %506 = vmatpush1.msra.mxu0 %v181
    %507 = vmatprep.subr.mxu0 0.0
    %508 = vmatpush1.msra.mxu0 %v182
    %509 = vmatprep.subr.mxu0 0.0
    %510 = vmatpush1.msra.mxu0 %v183
    %511 = vmatprep.subr.mxu0 0.0
    %512 = vmatpush1.msra.mxu0 %v184
    %513 = vmatprep.subr.mxu0 0.0
    %514 = vmatpush1.msra.mxu0 %v185
    %515 = vmatprep.subr.mxu0 0.0
    %516 = vmatpush1.msra.mxu0 %v186
    %517 = vmatprep.subr.mxu0 0.0
    %518 = vmatpush1.msra.mxu0 0.0
    %519 = vmatprep.subr.mxu0 0.0
    %520 = vmatpush1.msra.mxu0 0.0
    %521 = vmatprep.subr.mxu0 0.0
    %522 = vmatpush1.msra.mxu0 0.0
    %523 = vmatprep.subr.mxu0 0.0
    %524 = vmatpush1.msra.mxu0 0.0
    %525 = vmatprep.subr.mxu0 0.0
    %526 = vmatpush1.msra.mxu0 0.0
    %527 = vmatprep.subr.mxu0 0.0
    %528 = vmatpush1.msra.mxu0 0.0
    %529 = vmatprep.subr.mxu0 0.0
    %530 = vmatpush1.msra.mxu0 0.0
    %531 = vmatprep.subr.mxu0 0.0
    %532 = vmatpush1.msra.mxu0 0.0
    %533 = vmatprep.subr.mxu0 0.0
    %534 = vmatpush1.msra.mxu0 0.0
    %535 = vmatprep.subr.mxu0 0.0
    %536 = vmatpush1.msra.mxu0 0.0
    %537 = vmatprep.subr.mxu0 0.0
    %538 = vmatpush1.msra.mxu0 0.0
    %539 = vmatprep.subr.mxu0 0.0
    %540 = vmatpush1.msra.mxu0 0.0
    %541 = vmatprep.subr.mxu0 0.0
    %542 = vmatpush1.msra.mxu0 0.0
    %543 = vmatprep.subr.mxu0 0.0
    %544 = vmatpush1.msra.mxu0 0.0
    %545 = vmatprep.subr.mxu0 0.0
    %546 = vmatpush1.msra.mxu0 0.0
    %547 = vmatprep.subr.mxu0 0.0
    %548 = vmatpush1.msra.mxu0 0.0
    %549 = vmatprep.mubr.f32.mxu0 0.0
    %550 = vmatmul.mubr.f32.gmra.mrb[0].mxu0 %v400
    %v551 = vpop.f32.mrb[0].mxu0
    %v552 = vadd.f32 0.0, %v551
    %v553 = vpop.f32.mrb[0].mxu0
    %554 = vmatprep.mubr.f32.mxu0 0.0
    %555 = vmatmul.mubr.f32.gmra.mrb[0].mxu0 %v401
    %v556 = vpop.f32.mrb[0].mxu0
    %v557 = vadd.f32 0.0, %v556
    %v558 = vpop.f32.mrb[0].mxu0
    %559 = vdwg.mxu0
    %v560 = vsub.f32 %v552, %v380
    %v561 = vsub.f32 %v557, %v381
    %v562 = vlaneseq
    %v563 = vshrl.u32 %v562, 7
    %v564 = vsub.s32 1, %v563
    %v565 = vrot.slane %v65, %v564
    %v566 = vadd.f32 %v560, %v565
    %v567 = vadd.f32 %v561, %v565
    %v568 = vmax.f32 %v483, %v566
    %v569 = vmax.f32 %v484, %v567
    %570 = vmatprep.subr.mxu0 0.0
    %571 = vmatpush1.msra.mxu0 %v223
    %572 = vmatprep.subr.mxu0 0.0
    %573 = vmatpush1.msra.mxu0 %v224
    %574 = vmatprep.subr.mxu0 0.0
    %575 = vmatpush1.msra.mxu0 %v225
    %576 = vmatprep.subr.mxu0 0.0
    %577 = vmatpush1.msra.mxu0 %v226
    %578 = vmatprep.subr.mxu0 0.0
    %579 = vmatpush1.msra.mxu0 %v227
    %580 = vmatprep.subr.mxu0 0.0
    %581 = vmatpush1.msra.mxu0 %v228
    %582 = vmatprep.subr.mxu0 0.0
    %583 = vmatpush1.msra.mxu0 %v229
    %584 = vmatprep.subr.mxu0 0.0
    %585 = vmatpush1.msra.mxu0 %v230
    %586 = vmatprep.subr.mxu0 0.0
    %587 = vmatpush1.msra.mxu0 %v231
    %588 = vmatprep.subr.mxu0 0.0
    %589 = vmatpush1.msra.mxu0 %v232
    %590 = vmatprep.subr.mxu0 0.0
    %591 = vmatpush1.msra.mxu0 %v233
    %592 = vmatprep.subr.mxu0 0.0
    %593 = vmatpush1.msra.mxu0 %v234
    %594 = vmatprep.subr.mxu0 0.0
    %595 = vmatpush1.msra.mxu0 %v235
    %596 = vmatprep.subr.mxu0 0.0
    %597 = vmatpush1.msra.mxu0 %v236
    %598 = vmatprep.subr.mxu0 0.0
    %599 = vmatpush1.msra.mxu0 %v237
    %600 = vmatprep.subr.mxu0 0.0
    %601 = vmatpush1.msra.mxu0 %v238
    %602 = vmatprep.subr.mxu0 0.0
    %603 = vmatpush1.msra.mxu0 0.0
    %604 = vmatprep.subr.mxu0 0.0
    %605 = vmatpush1.msra.mxu0 0.0
    %606 = vmatprep.subr.mxu0 0.0
    %607 = vmatpush1.msra.mxu0 0.0
    %608 = vmatprep.subr.mxu0 0.0
    %609 = vmatpush1.msra.mxu0 0.0
    %610 = vmatprep.subr.mxu0 0.0
    %611 = vmatpush1.msra.mxu0 0.0
    %612 = vmatprep.subr.mxu0 0.0
    %613 = vmatpush1.msra.mxu0 0.0
    %614 = vmatprep.subr.mxu0 0.0
    %615 = vmatpush1.msra.mxu0 0.0
    %616 = vmatprep.subr.mxu0 0.0
    %617 = vmatpush1.msra.mxu0 0.0
    %618 = vmatprep.subr.mxu0 0.0
    %619 = vmatpush1.msra.mxu0 0.0
    %620 = vmatprep.subr.mxu0 0.0
    %621 = vmatpush1.msra.mxu0 0.0
    %622 = vmatprep.subr.mxu0 0.0
    %623 = vmatpush1.msra.mxu0 0.0
    %624 = vmatprep.subr.mxu0 0.0
    %625 = vmatpush1.msra.mxu0 0.0
    %626 = vmatprep.subr.mxu0 0.0
    %627 = vmatpush1.msra.mxu0 0.0
    %628 = vmatprep.subr.mxu0 0.0
    %629 = vmatpush1.msra.mxu0 0.0
    %630 = vmatprep.subr.mxu0 0.0
    %631 = vmatpush1.msra.mxu0 0.0
    %632 = vmatprep.subr.mxu0 0.0
    %633 = vmatpush1.msra.mxu0 0.0
    %634 = vmatprep.mubr.f32.mxu0 0.0
    %635 = vmatmul.mubr.f32.gmra.mrb[0].mxu0 %v400
    %v636 = vpop.f32.mrb[0].mxu0
    %v637 = vadd.f32 0.0, %v636
    %v638 = vpop.f32.mrb[0].mxu0
    %639 = vmatprep.mubr.f32.mxu0 0.0
    %640 = vmatmul.mubr.f32.gmra.mrb[0].mxu0 %v401
    %v641 = vpop.f32.mrb[0].mxu0
    %v642 = vadd.f32 0.0, %v641
    %v643 = vpop.f32.mrb[0].mxu0
    %644 = vdwg.mxu0
    %v645 = vsub.f32 %v637, %v380
    %v646 = vsub.f32 %v642, %v381
    %v647 = vlaneseq
    %v648 = vshrl.u32 %v647, 7
    %v649 = vsub.s32 2, %v648
    %v650 = vrot.slane %v65, %v649
    %v651 = vadd.f32 %v645, %v650
    %v652 = vadd.f32 %v646, %v650
    %v653 = vmax.f32 %v568, %v651
    %v654 = vmax.f32 %v569, %v652
    %655 = vmatprep.subr.mxu0 0.0
    %656 = vmatpush1.msra.mxu0 %v275
    %657 = vmatprep.subr.mxu0 0.0
    %658 = vmatpush1.msra.mxu0 %v276
    %659 = vmatprep.subr.mxu0 0.0
    %660 = vmatpush1.msra.mxu0 %v277
    %661 = vmatprep.subr.mxu0 0.0
    %662 = vmatpush1.msra.mxu0 %v278
    %663 = vmatprep.subr.mxu0 0.0
    %664 = vmatpush1.msra.mxu0 %v279
    %665 = vmatprep.subr.mxu0 0.0
    %666 = vmatpush1.msra.mxu0 %v280
    %667 = vmatprep.subr.mxu0 0.0
    %668 = vmatpush1.msra.mxu0 %v281
    %669 = vmatprep.subr.mxu0 0.0
    %670 = vmatpush1.msra.mxu0 %v282
    %671 = vmatprep.subr.mxu0 0.0
    %672 = vmatpush1.msra.mxu0 %v283
    %673 = vmatprep.subr.mxu0 0.0
    %674 = vmatpush1.msra.mxu0 %v284
    %675 = vmatprep.subr.mxu0 0.0
    %676 = vmatpush1.msra.mxu0 %v285
    %677 = vmatprep.subr.mxu0 0.0
    %678 = vmatpush1.msra.mxu0 %v286
    %679 = vmatprep.subr.mxu0 0.0
    %680 = vmatpush1.msra.mxu0 %v287
    %681 = vmatprep.subr.mxu0 0.0
    %682 = vmatpush1.msra.mxu0 %v288
    %683 = vmatprep.subr.mxu0 0.0
    %684 = vmatpush1.msra.mxu0 %v289
    %685 = vmatprep.subr.mxu0 0.0
    %686 = vmatpush1.msra.mxu0 %v290
    %687 = vmatprep.subr.mxu0 0.0
    %688 = vmatpush1.msra.mxu0 0.0
    %689 = vmatprep.subr.mxu0 0.0
    %690 = vmatpush1.msra.mxu0 0.0
    %691 = vmatprep.subr.mxu0 0.0
    %692 = vmatpush1.msra.mxu0 0.0
    %693 = vmatprep.subr.mxu0 0.0
    %694 = vmatpush1.msra.mxu0 0.0
    %695 = vmatprep.subr.mxu0 0.0
    %696 = vmatpush1.msra.mxu0 0.0
    %697 = vmatprep.subr.mxu0 0.0
    %698 = vmatpush1.msra.mxu0 0.0
    %699 = vmatprep.subr.mxu0 0.0
    %700 = vmatpush1.msra.mxu0 0.0
    %701 = vmatprep.subr.mxu0 0.0
    %702 = vmatpush1.msra.mxu0 0.0
    %703 = vmatprep.subr.mxu0 0.0
    %704 = vmatpush1.msra.mxu0 0.0
    %705 = vmatprep.subr.mxu0 0.0
    %706 = vmatpush1.msra.mxu0 0.0
    %707 = vmatprep.subr.mxu0 0.0
    %708 = vmatpush1.msra.mxu0 0.0
    %709 = vmatprep.subr.mxu0 0.0
    %710 = vmatpush1.msra.mxu0 0.0
    %711 = vmatprep.subr.mxu0 0.0
    %712 = vmatpush1.msra.mxu0 0.0
    %713 = vmatprep.subr.mxu0 0.0
    %714 = vmatpush1.msra.mxu0 0.0
    %715 = vmatprep.subr.mxu0 0.0
    %716 = vmatpush1.msra.mxu0 0.0
    %717 = vmatprep.subr.mxu0 0.0
    %718 = vmatpush1.msra.mxu0 0.0
    %719 = vmatprep.mubr.f32.mxu0 0.0
    %720 = vmatmul.mubr.f32.gmra.mrb[0].mxu0 %v400
    %v721 = vpop.f32.mrb[0].mxu0
    %v722 = vadd.f32 0.0, %v721
    %v723 = vpop.f32.mrb[0].mxu0
    %724 = vmatprep.mubr.f32.mxu0 0.0
    %725 = vmatmul.mubr.f32.gmra.mrb[0].mxu0 %v401
    %v726 = vpop.f32.mrb[0].mxu0
    %v727 = vadd.f32 0.0, %v726
    %v728 = vpop.f32.mrb[0].mxu0
    %729 = vdwg.mxu0
    %v730 = vsub.f32 %v722, %v380
    %v731 = vsub.f32 %v727, %v381
    %v732 = vlaneseq
    %v733 = vshrl.u32 %v732, 7
    %v734 = vsub.s32 3, %v733
    %v735 = vrot.slane %v65, %v734
    %v736 = vadd.f32 %v730, %v735
    %v737 = vadd.f32 %v731, %v735
    %v738 = vmax.f32 %v653, %v736
    %v739 = vmax.f32 %v654, %v737
    %740 = vmatprep.subr.mxu0 0.0
    %741 = vmatpush1.msra.mxu0 %v327
    %742 = vmatprep.subr.mxu0 0.0
    %743 = vmatpush1.msra.mxu0 %v328
    %744 = vmatprep.subr.mxu0 0.0
    %745 = vmatpush1.msra.mxu0 %v329
    %746 = vmatprep.subr.mxu0 0.0
    %747 = vmatpush1.msra.mxu0 %v330
    %748 = vmatprep.subr.mxu0 0.0
    %749 = vmatpush1.msra.mxu0 %v331
    %750 = vmatprep.subr.mxu0 0.0
    %751 = vmatpush1.msra.mxu0 %v332
    %752 = vmatprep.subr.mxu0 0.0
    %753 = vmatpush1.msra.mxu0 %v333
    %754 = vmatprep.subr.mxu0 0.0
    %755 = vmatpush1.msra.mxu0 %v334
    %756 = vmatprep.subr.mxu0 0.0
    %757 = vmatpush1.msra.mxu0 %v335
    %758 = vmatprep.subr.mxu0 0.0
    %759 = vmatpush1.msra.mxu0 %v336
    %760 = vmatprep.subr.mxu0 0.0
    %761 = vmatpush1.msra.mxu0 %v337
    %762 = vmatprep.subr.mxu0 0.0
    %763 = vmatpush1.msra.mxu0 %v338
    %764 = vmatprep.subr.mxu0 0.0
    %765 = vmatpush1.msra.mxu0 %v339
    %766 = vmatprep.subr.mxu0 0.0
    %767 = vmatpush1.msra.mxu0 %v340
    %768 = vmatprep.subr.mxu0 0.0
    %769 = vmatpush1.msra.mxu0 %v341
    %770 = vmatprep.subr.mxu0 0.0
    %771 = vmatpush1.msra.mxu0 %v342
    %772 = vmatprep.subr.mxu0 0.0
    %773 = vmatpush1.msra.mxu0 0.0
    %774 = vmatprep.subr.mxu0 0.0
    %775 = vmatpush1.msra.mxu0 0.0
    %776 = vmatprep.subr.mxu0 0.0
    %777 = vmatpush1.msra.mxu0 0.0
    %778 = vmatprep.subr.mxu0 0.0
    %779 = vmatpush1.msra.mxu0 0.0
    %780 = vmatprep.subr.mxu0 0.0
    %781 = vmatpush1.msra.mxu0 0.0
    %782 = vmatprep.subr.mxu0 0.0
    %783 = vmatpush1.msra.mxu0 0.0
    %784 = vmatprep.subr.mxu0 0.0
    %785 = vmatpush1.msra.mxu0 0.0
    %786 = vmatprep.subr.mxu0 0.0
    %787 = vmatpush1.msra.mxu0 0.0
    %788 = vmatprep.subr.mxu0 0.0
    %789 = vmatpush1.msra.mxu0 0.0
    %790 = vmatprep.subr.mxu0 0.0
    %791 = vmatpush1.msra.mxu0 0.0
    %792 = vmatprep.subr.mxu0 0.0
    %793 = vmatpush1.msra.mxu0 0.0
    %794 = vmatprep.subr.mxu0 0.0
    %795 = vmatpush1.msra.mxu0 0.0
    %796 = vmatprep.subr.mxu0 0.0
    %797 = vmatpush1.msra.mxu0 0.0
    %798 = vmatprep.subr.mxu0 0.0
    %799 = vmatpush1.msra.mxu0 0.0
    %800 = vmatprep.subr.mxu0 0.0
    %801 = vmatpush1.msra.mxu0 0.0
    %802 = vmatprep.subr.mxu0 0.0
    %803 = vmatpush1.msra.mxu0 0.0
    %804 = vmatprep.mubr.f32.mxu0 0.0
    %805 = vmatmul.mubr.f32.gmra.mrb[0].mxu0 %v400
    %v806 = vpop.f32.mrb[0].mxu0
    %v807 = vadd.f32 0.0, %v806
    %v808 = vpop.f32.mrb[0].mxu0
    %809 = vmatprep.mubr.f32.mxu0 0.0
    %810 = vmatmul.mubr.f32.gmra.mrb[0].mxu0 %v401
    %v811 = vpop.f32.mrb[0].mxu0
    %v812 = vadd.f32 0.0, %v811
    %v813 = vpop.f32.mrb[0].mxu0
    %814 = vdwg.mxu0
    %v815 = vsub.f32 %v807, %v380
    %v816 = vsub.f32 %v812, %v381
    %v817 = vlaneseq
    %v818 = vshrl.u32 %v817, 7
    %v819 = vsub.s32 4, %v818
    %v820 = vrot.slane %v65, %v819
    %v821 = vadd.f32 %v815, %v820
    %v822 = vadd.f32 %v816, %v820
    %v823 = vmax.f32 %v738, %v821
    %v824 = vmax.f32 %v739, %v822
    %vm825 = vcmp.gt.f32.partialorder %v823, -1e+29
    %vm826 = vcmp.gt.f32.partialorder %v824, -1e+29
    %v827 = vsel %vm825, %v823, 0.0
    %v828 = vsel %vm826, %v824, 0.0
    %830 = vset.pattern.permute.xlu0 0
    %831 = vperm.xlu0 %830, %v348
    %v832 = vpop.permute.xlu0 %831
    %835 = vset.pattern.permute.xlu0 0
    %836 = vperm.xlu0 %835, %v349
    %v837 = vpop.permute.xlu0 %836
    %v839 = vadd.f32 %v827, %v832
    %v840 = vadd.f32 %v828, %v837
    %v841 = vmax.f32 %v839, 0.0
    %v842 = vmax.f32 %v840, 0.0
    %v843 = vld [vmem:[%s9] sm:$0xff]
    %v844 = vld [vmem:[%s9 + $0x8] sm:$0xff]
    %v845 = vld [vmem:[%s9 + $0x10] sm:$0xff]
    %v846 = vld [vmem:[%s9 + $0x18] sm:$0xff]
    %v847 = vld [vmem:[%s10] sm:$0xff]
    %v848 = vld [vmem:[%s10 + $0x8] sm:$0xff]
    %v849 = vld [vmem:[%s10 + $0x10] sm:$0xff]
    %v850 = vld [vmem:[%s10 + $0x18] sm:$0xff]
    %v851 = vld [vmem:[%s11] sm:$0xff]
    %v852 = vld [vmem:[%s11 + $0x8] sm:$0xff]
    %v853 = vld [vmem:[%s11 + $0x10] sm:$0xff]
    %v854 = vld [vmem:[%s11 + $0x18] sm:$0xff]
    %856 = vset.pattern.permute.xlu0 0
    %857 = vperm.xlu0 %856, %v847
    %v858 = vpop.permute.xlu0 %857
    %861 = vset.pattern.permute.xlu0 0
    %862 = vperm.xlu0 %861, %v848
    %v863 = vpop.permute.xlu0 %862
    %866 = vset.pattern.permute.xlu0 0
    %867 = vperm.xlu0 %866, %v849
    %v868 = vpop.permute.xlu0 %867
    %871 = vset.pattern.permute.xlu0 0
    %872 = vperm.xlu0 %871, %v850
    %v873 = vpop.permute.xlu0 %872
    %v875 = vmul.f32 %v858, %v363
    %v876 = vmul.f32 %v863, %v363
    %v877 = vmul.f32 %v868, %v363
    %v878 = vmul.f32 %v873, %v363
    %879 = vset.pattern.permute.xlu0 1
    %880 = vperm.xlu0 %879, %v847
    %v881 = vpop.permute.xlu0 %880
    %883 = vset.pattern.permute.xlu0 1
    %884 = vperm.xlu0 %883, %v848
    %v885 = vpop.permute.xlu0 %884
    %887 = vset.pattern.permute.xlu0 1
    %888 = vperm.xlu0 %887, %v849
    %v889 = vpop.permute.xlu0 %888
    %891 = vset.pattern.permute.xlu0 1
    %892 = vperm.xlu0 %891, %v850
    %v893 = vpop.permute.xlu0 %892
    %v895 = vmul.f32 %v881, %v377
    %v896 = vmul.f32 %v885, %v377
    %v897 = vmul.f32 %v889, %v377
    %v898 = vmul.f32 %v893, %v377
    %v899 = vadd.f32 %v875, %v895
    %v900 = vadd.f32 %v876, %v896
    %v901 = vadd.f32 %v877, %v897
    %v902 = vadd.f32 %v878, %v898
    %vm903 = vcmask 130048
    %v905 = vsel %vm903, %v843, 0
    %v908 = vsel %vm903, %v844, 0
    %v911 = vsel %vm903, %v845, 0
    %v914 = vsel %vm903, %v846, 0
    %916 = vmatprep.subr.mxu0 0.0
    %917 = vmatpush1.msra.mxu0 %v841
    %918 = vmatprep.subr.mxu0 0.0
    %919 = vmatpush1.msra.mxu0 %v842
    %920 = vmatprep.subr.mxu0 0.0
    %921 = vmatpush1.msra.mxu0 0.0
    %922 = vmatprep.subr.mxu0 0.0
    %923 = vmatpush1.msra.mxu0 0.0
    %924 = vmatprep.subr.mxu0 0.0
    %925 = vmatpush1.msra.mxu0 0.0
    %926 = vmatprep.subr.mxu0 0.0
    %927 = vmatpush1.msra.mxu0 0.0
    %928 = vmatprep.subr.mxu0 0.0
    %929 = vmatpush1.msra.mxu0 0.0
    %930 = vmatprep.subr.mxu0 0.0
    %931 = vmatpush1.msra.mxu0 0.0
    %932 = vmatprep.subr.mxu0 0.0
    %933 = vmatpush1.msra.mxu0 0.0
    %934 = vmatprep.subr.mxu0 0.0
    %935 = vmatpush1.msra.mxu0 0.0
    %936 = vmatprep.subr.mxu0 0.0
    %937 = vmatpush1.msra.mxu0 0.0
    %938 = vmatprep.subr.mxu0 0.0
    %939 = vmatpush1.msra.mxu0 0.0
    %940 = vmatprep.subr.mxu0 0.0
    %941 = vmatpush1.msra.mxu0 0.0
    %942 = vmatprep.subr.mxu0 0.0
    %943 = vmatpush1.msra.mxu0 0.0
    %944 = vmatprep.subr.mxu0 0.0
    %945 = vmatpush1.msra.mxu0 0.0
    %946 = vmatprep.subr.mxu0 0.0
    %947 = vmatpush1.msra.mxu0 0.0
    %948 = vmatprep.subr.mxu0 0.0
    %949 = vmatpush1.msra.mxu0 0.0
    %950 = vmatprep.subr.mxu0 0.0
    %951 = vmatpush1.msra.mxu0 0.0
    %952 = vmatprep.subr.mxu0 0.0
    %953 = vmatpush1.msra.mxu0 0.0
    %954 = vmatprep.subr.mxu0 0.0
    %955 = vmatpush1.msra.mxu0 0.0
    %956 = vmatprep.subr.mxu0 0.0
    %957 = vmatpush1.msra.mxu0 0.0
    %958 = vmatprep.subr.mxu0 0.0
    %959 = vmatpush1.msra.mxu0 0.0
    %960 = vmatprep.subr.mxu0 0.0
    %961 = vmatpush1.msra.mxu0 0.0
    %962 = vmatprep.subr.mxu0 0.0
    %963 = vmatpush1.msra.mxu0 0.0
    %964 = vmatprep.subr.mxu0 0.0
    %965 = vmatpush1.msra.mxu0 0.0
    %966 = vmatprep.subr.mxu0 0.0
    %967 = vmatpush1.msra.mxu0 0.0
    %968 = vmatprep.subr.mxu0 0.0
    %969 = vmatpush1.msra.mxu0 0.0
    %970 = vmatprep.subr.mxu0 0.0
    %971 = vmatpush1.msra.mxu0 0.0
    %972 = vmatprep.subr.mxu0 0.0
    %973 = vmatpush1.msra.mxu0 0.0
    %974 = vmatprep.subr.mxu0 0.0
    %975 = vmatpush1.msra.mxu0 0.0
    %976 = vmatprep.subr.mxu0 0.0
    %977 = vmatpush1.msra.mxu0 0.0
    %978 = vmatprep.subr.mxu0 0.0
    %979 = vmatpush1.msra.mxu0 0.0
    %980 = vmatprep.mubr.f32.mxu0 0.0
    %981 = vmatmul.mubr.f32.gmra.mrb[0].mxu0 %v905
    %v982 = vpop.f32.mrb[0].mxu0
    %v983 = vadd.f32 %v899, %v982
    %v984 = vpop.f32.mrb[0].mxu0
    %985 = vmatprep.mubr.f32.mxu0 0.0
    %986 = vmatmul.mubr.f32.gmra.mrb[0].mxu0 %v908
    %v987 = vpop.f32.mrb[0].mxu0
    %v988 = vadd.f32 %v900, %v987
    %v989 = vpop.f32.mrb[0].mxu0
    %990 = vmatprep.mubr.f32.mxu0 0.0
    %991 = vmatmul.mubr.f32.gmra.mrb[0].mxu0 %v911
    %v992 = vpop.f32.mrb[0].mxu0
    %v993 = vadd.f32 %v901, %v992
    %v994 = vpop.f32.mrb[0].mxu0
    %995 = vmatprep.mubr.f32.mxu0 0.0
    %996 = vmatmul.mubr.f32.gmra.mrb[0].mxu0 %v914
    %v997 = vpop.f32.mrb[0].mxu0
    %v998 = vadd.f32 %v902, %v997
    %v999 = vpop.f32.mrb[0].mxu0
    %1000 = vdwg.mxu0
    %1001 = vmatprep.subr.mxu0 0.0
    %1002 = vmatpush1.msra.mxu0 %v119
    %1003 = vmatprep.subr.mxu0 0.0
    %1004 = vmatpush1.msra.mxu0 %v120
    %1005 = vmatprep.subr.mxu0 0.0
    %1006 = vmatpush1.msra.mxu0 %v121
    %1007 = vmatprep.subr.mxu0 0.0
    %1008 = vmatpush1.msra.mxu0 %v122
    %1009 = vmatprep.subr.mxu0 0.0
    %1010 = vmatpush1.msra.mxu0 %v123
    %1011 = vmatprep.subr.mxu0 0.0
    %1012 = vmatpush1.msra.mxu0 %v124
    %1013 = vmatprep.subr.mxu0 0.0
    %1014 = vmatpush1.msra.mxu0 %v125
    %1015 = vmatprep.subr.mxu0 0.0
    %1016 = vmatpush1.msra.mxu0 %v126
    %1017 = vmatprep.subr.mxu0 0.0
    %1018 = vmatpush1.msra.mxu0 %v127
    %1019 = vmatprep.subr.mxu0 0.0
    %1020 = vmatpush1.msra.mxu0 %v128
    %1021 = vmatprep.subr.mxu0 0.0
    %1022 = vmatpush1.msra.mxu0 %v129
    %1023 = vmatprep.subr.mxu0 0.0
    %1024 = vmatpush1.msra.mxu0 %v130
    %1025 = vmatprep.subr.mxu0 0.0
    %1026 = vmatpush1.msra.mxu0 %v131
    %1027 = vmatprep.subr.mxu0 0.0
    %1028 = vmatpush1.msra.mxu0 %v132
    %1029 = vmatprep.subr.mxu0 0.0
    %1030 = vmatpush1.msra.mxu0 %v133
    %1031 = vmatprep.subr.mxu0 0.0
    %1032 = vmatpush1.msra.mxu0 %v134
    %1033 = vmatprep.subr.mxu0 0.0
    %1034 = vmatpush1.msra.mxu0 0.0
    %1035 = vmatprep.subr.mxu0 0.0
    %1036 = vmatpush1.msra.mxu0 0.0
    %1037 = vmatprep.subr.mxu0 0.0
    %1038 = vmatpush1.msra.mxu0 0.0
    %1039 = vmatprep.subr.mxu0 0.0
    %1040 = vmatpush1.msra.mxu0 0.0
    %1041 = vmatprep.subr.mxu0 0.0
    %1042 = vmatpush1.msra.mxu0 0.0
    %1043 = vmatprep.subr.mxu0 0.0
    %1044 = vmatpush1.msra.mxu0 0.0
    %1045 = vmatprep.subr.mxu0 0.0
    %1046 = vmatpush1.msra.mxu0 0.0
    %1047 = vmatprep.subr.mxu0 0.0
    %1048 = vmatpush1.msra.mxu0 0.0
    %1049 = vmatprep.subr.mxu0 0.0
    %1050 = vmatpush1.msra.mxu0 0.0
    %1051 = vmatprep.subr.mxu0 0.0
    %1052 = vmatpush1.msra.mxu0 0.0
    %1053 = vmatprep.subr.mxu0 0.0
    %1054 = vmatpush1.msra.mxu0 0.0
    %1055 = vmatprep.subr.mxu0 0.0
    %1056 = vmatpush1.msra.mxu0 0.0
    %1057 = vmatprep.subr.mxu0 0.0
    %1058 = vmatpush1.msra.mxu0 0.0
    %1059 = vmatprep.subr.mxu0 0.0
    %1060 = vmatpush1.msra.mxu0 0.0
    %1061 = vmatprep.subr.mxu0 0.0
    %1062 = vmatpush1.msra.mxu0 0.0
    %1063 = vmatprep.subr.mxu0 0.0
    %1064 = vmatpush1.msra.mxu0 0.0
    %1065 = vmatprep.mubr.f32.mxu0 0.0
    %1066 = vmatmul.mubr.f32.gmra.mrb[0].mxu0 %v983
    %v1067 = vpop.f32.mrb[0].mxu0
    %v1068 = vadd.f32 0.0, %v1067
    %v1069 = vpop.f32.mrb[0].mxu0
    %1070 = vmatprep.mubr.f32.mxu0 0.0
    %1071 = vmatmul.mubr.f32.gmra.mrb[0].mxu0 %v988
    %v1072 = vpop.f32.mrb[0].mxu0
    %v1073 = vadd.f32 0.0, %v1072
    %v1074 = vpop.f32.mrb[0].mxu0
    %1075 = vmatprep.mubr.f32.mxu0 0.0
    %1076 = vmatmul.mubr.f32.gmra.mrb[0].mxu0 %v993
    %v1077 = vpop.f32.mrb[0].mxu0
    %v1078 = vadd.f32 0.0, %v1077
    %v1079 = vpop.f32.mrb[0].mxu0
    %1080 = vmatprep.mubr.f32.mxu0 0.0
    %1081 = vmatmul.mubr.f32.gmra.mrb[0].mxu0 %v998
    %v1082 = vpop.f32.mrb[0].mxu0
    %v1083 = vadd.f32 0.0, %v1082
    %v1084 = vpop.f32.mrb[0].mxu0
    %1085 = vdwg.mxu0
    %v1086 = vsub.f32 %v1068, %v899
    %v1087 = vsub.f32 %v1073, %v900
    %v1088 = vsub.f32 %v1078, %v901
    %v1089 = vsub.f32 %v1083, %v902
    %v1090 = vadd.f32 %v1086, %v482
    %v1091 = vadd.f32 %v1087, %v482
    %v1092 = vadd.f32 %v1088, %v482
    %v1093 = vadd.f32 %v1089, %v482
    %1094 = vmatprep.subr.mxu0 0.0
    %1095 = vmatpush1.msra.mxu0 %v171
    %1096 = vmatprep.subr.mxu0 0.0
    %1097 = vmatpush1.msra.mxu0 %v172
    %1098 = vmatprep.subr.mxu0 0.0
    %1099 = vmatpush1.msra.mxu0 %v173
    %1100 = vmatprep.subr.mxu0 0.0
    %1101 = vmatpush1.msra.mxu0 %v174
    %1102 = vmatprep.subr.mxu0 0.0
    %1103 = vmatpush1.msra.mxu0 %v175
    %1104 = vmatprep.subr.mxu0 0.0
    %1105 = vmatpush1.msra.mxu0 %v176
    %1106 = vmatprep.subr.mxu0 0.0
    %1107 = vmatpush1.msra.mxu0 %v177
    %1108 = vmatprep.subr.mxu0 0.0
    %1109 = vmatpush1.msra.mxu0 %v178
    %1110 = vmatprep.subr.mxu0 0.0
    %1111 = vmatpush1.msra.mxu0 %v179
    %1112 = vmatprep.subr.mxu0 0.0
    %1113 = vmatpush1.msra.mxu0 %v180
    %1114 = vmatprep.subr.mxu0 0.0
    %1115 = vmatpush1.msra.mxu0 %v181
    %1116 = vmatprep.subr.mxu0 0.0
    %1117 = vmatpush1.msra.mxu0 %v182
    %1118 = vmatprep.subr.mxu0 0.0
    %1119 = vmatpush1.msra.mxu0 %v183
    %1120 = vmatprep.subr.mxu0 0.0
    %1121 = vmatpush1.msra.mxu0 %v184
    %1122 = vmatprep.subr.mxu0 0.0
    %1123 = vmatpush1.msra.mxu0 %v185
    %1124 = vmatprep.subr.mxu0 0.0
    %1125 = vmatpush1.msra.mxu0 %v186
    %1126 = vmatprep.subr.mxu0 0.0
    %1127 = vmatpush1.msra.mxu0 0.0
    %1128 = vmatprep.subr.mxu0 0.0
    %1129 = vmatpush1.msra.mxu0 0.0
    %1130 = vmatprep.subr.mxu0 0.0
    %1131 = vmatpush1.msra.mxu0 0.0
    %1132 = vmatprep.subr.mxu0 0.0
    %1133 = vmatpush1.msra.mxu0 0.0
    %1134 = vmatprep.subr.mxu0 0.0
    %1135 = vmatpush1.msra.mxu0 0.0
    %1136 = vmatprep.subr.mxu0 0.0
    %1137 = vmatpush1.msra.mxu0 0.0
    %1138 = vmatprep.subr.mxu0 0.0
    %1139 = vmatpush1.msra.mxu0 0.0
    %1140 = vmatprep.subr.mxu0 0.0
    %1141 = vmatpush1.msra.mxu0 0.0
    %1142 = vmatprep.subr.mxu0 0.0
    %1143 = vmatpush1.msra.mxu0 0.0
    %1144 = vmatprep.subr.mxu0 0.0
    %1145 = vmatpush1.msra.mxu0 0.0
    %1146 = vmatprep.subr.mxu0 0.0
    %1147 = vmatpush1.msra.mxu0 0.0
    %1148 = vmatprep.subr.mxu0 0.0
    %1149 = vmatpush1.msra.mxu0 0.0
    %1150 = vmatprep.subr.mxu0 0.0
    %1151 = vmatpush1.msra.mxu0 0.0
    %1152 = vmatprep.subr.mxu0 0.0
    %1153 = vmatpush1.msra.mxu0 0.0
    %1154 = vmatprep.subr.mxu0 0.0
    %1155 = vmatpush1.msra.mxu0 0.0
    %1156 = vmatprep.subr.mxu0 0.0
    %1157 = vmatpush1.msra.mxu0 0.0
    %1158 = vmatprep.mubr.f32.mxu0 0.0
    %1159 = vmatmul.mubr.f32.gmra.mrb[0].mxu0 %v983
    %v1160 = vpop.f32.mrb[0].mxu0
    %v1161 = vadd.f32 0.0, %v1160
    %v1162 = vpop.f32.mrb[0].mxu0
    %1163 = vmatprep.mubr.f32.mxu0 0.0
    %1164 = vmatmul.mubr.f32.gmra.mrb[0].mxu0 %v988
    %v1165 = vpop.f32.mrb[0].mxu0
    %v1166 = vadd.f32 0.0, %v1165
    %v1167 = vpop.f32.mrb[0].mxu0
    %1168 = vmatprep.mubr.f32.mxu0 0.0
    %1169 = vmatmul.mubr.f32.gmra.mrb[0].mxu0 %v993
    %v1170 = vpop.f32.mrb[0].mxu0
    %v1171 = vadd.f32 0.0, %v1170
    %v1172 = vpop.f32.mrb[0].mxu0
    %1173 = vmatprep.mubr.f32.mxu0 0.0
    %1174 = vmatmul.mubr.f32.gmra.mrb[0].mxu0 %v998
    %v1175 = vpop.f32.mrb[0].mxu0
    %v1176 = vadd.f32 0.0, %v1175
    %v1177 = vpop.f32.mrb[0].mxu0
    %1178 = vdwg.mxu0
    %v1179 = vsub.f32 %v1161, %v899
    %v1180 = vsub.f32 %v1166, %v900
    %v1181 = vsub.f32 %v1171, %v901
    %v1182 = vsub.f32 %v1176, %v902
    %v1183 = vadd.f32 %v1179, %v565
    %v1184 = vadd.f32 %v1180, %v565
    %v1185 = vadd.f32 %v1181, %v565
    %v1186 = vadd.f32 %v1182, %v565
    %v1187 = vmax.f32 %v1090, %v1183
    %v1188 = vmax.f32 %v1091, %v1184
    %v1189 = vmax.f32 %v1092, %v1185
    %v1190 = vmax.f32 %v1093, %v1186
    %1191 = vmatprep.subr.mxu0 0.0
    %1192 = vmatpush1.msra.mxu0 %v223
    %1193 = vmatprep.subr.mxu0 0.0
    %1194 = vmatpush1.msra.mxu0 %v224
    %1195 = vmatprep.subr.mxu0 0.0
    %1196 = vmatpush1.msra.mxu0 %v225
    %1197 = vmatprep.subr.mxu0 0.0
    %1198 = vmatpush1.msra.mxu0 %v226
    %1199 = vmatprep.subr.mxu0 0.0
    %1200 = vmatpush1.msra.mxu0 %v227
    %1201 = vmatprep.subr.mxu0 0.0
    %1202 = vmatpush1.msra.mxu0 %v228
    %1203 = vmatprep.subr.mxu0 0.0
    %1204 = vmatpush1.msra.mxu0 %v229
    %1205 = vmatprep.subr.mxu0 0.0
    %1206 = vmatpush1.msra.mxu0 %v230
    %1207 = vmatprep.subr.mxu0 0.0
    %1208 = vmatpush1.msra.mxu0 %v231
    %1209 = vmatprep.subr.mxu0 0.0
    %1210 = vmatpush1.msra.mxu0 %v232
    %1211 = vmatprep.subr.mxu0 0.0
    %1212 = vmatpush1.msra.mxu0 %v233
    %1213 = vmatprep.subr.mxu0 0.0
    %1214 = vmatpush1.msra.mxu0 %v234
    %1215 = vmatprep.subr.mxu0 0.0
    %1216 = vmatpush1.msra.mxu0 %v235
    %1217 = vmatprep.subr.mxu0 0.0
    %1218 = vmatpush1.msra.mxu0 %v236
    %1219 = vmatprep.subr.mxu0 0.0
    %1220 = vmatpush1.msra.mxu0 %v237
    %1221 = vmatprep.subr.mxu0 0.0
    %1222 = vmatpush1.msra.mxu0 %v238
    %1223 = vmatprep.subr.mxu0 0.0
    %1224 = vmatpush1.msra.mxu0 0.0
    %1225 = vmatprep.subr.mxu0 0.0
    %1226 = vmatpush1.msra.mxu0 0.0
    %1227 = vmatprep.subr.mxu0 0.0
    %1228 = vmatpush1.msra.mxu0 0.0
    %1229 = vmatprep.subr.mxu0 0.0
    %1230 = vmatpush1.msra.mxu0 0.0
    %1231 = vmatprep.subr.mxu0 0.0
    %1232 = vmatpush1.msra.mxu0 0.0
    %1233 = vmatprep.subr.mxu0 0.0
    %1234 = vmatpush1.msra.mxu0 0.0
    %1235 = vmatprep.subr.mxu0 0.0
    %1236 = vmatpush1.msra.mxu0 0.0
    %1237 = vmatprep.subr.mxu0 0.0
    %1238 = vmatpush1.msra.mxu0 0.0
    %1239 = vmatprep.subr.mxu0 0.0
    %1240 = vmatpush1.msra.mxu0 0.0
    %1241 = vmatprep.subr.mxu0 0.0
    %1242 = vmatpush1.msra.mxu0 0.0
    %1243 = vmatprep.subr.mxu0 0.0
    %1244 = vmatpush1.msra.mxu0 0.0
    %1245 = vmatprep.subr.mxu0 0.0
    %1246 = vmatpush1.msra.mxu0 0.0
    %1247 = vmatprep.subr.mxu0 0.0
    %1248 = vmatpush1.msra.mxu0 0.0
    %1249 = vmatprep.subr.mxu0 0.0
    %1250 = vmatpush1.msra.mxu0 0.0
    %1251 = vmatprep.subr.mxu0 0.0
    %1252 = vmatpush1.msra.mxu0 0.0
    %1253 = vmatprep.subr.mxu0 0.0
    %1254 = vmatpush1.msra.mxu0 0.0
    %1255 = vmatprep.mubr.f32.mxu0 0.0
    %1256 = vmatmul.mubr.f32.gmra.mrb[0].mxu0 %v983
    %v1257 = vpop.f32.mrb[0].mxu0
    %v1258 = vadd.f32 0.0, %v1257
    %v1259 = vpop.f32.mrb[0].mxu0
    %1260 = vmatprep.mubr.f32.mxu0 0.0
    %1261 = vmatmul.mubr.f32.gmra.mrb[0].mxu0 %v988
    %v1262 = vpop.f32.mrb[0].mxu0
    %v1263 = vadd.f32 0.0, %v1262
    %v1264 = vpop.f32.mrb[0].mxu0
    %1265 = vmatprep.mubr.f32.mxu0 0.0
    %1266 = vmatmul.mubr.f32.gmra.mrb[0].mxu0 %v993
    %v1267 = vpop.f32.mrb[0].mxu0
    %v1268 = vadd.f32 0.0, %v1267
    %v1269 = vpop.f32.mrb[0].mxu0
    %1270 = vmatprep.mubr.f32.mxu0 0.0
    %1271 = vmatmul.mubr.f32.gmra.mrb[0].mxu0 %v998
    %v1272 = vpop.f32.mrb[0].mxu0
    %v1273 = vadd.f32 0.0, %v1272
    %v1274 = vpop.f32.mrb[0].mxu0
    %1275 = vdwg.mxu0
    %v1276 = vsub.f32 %v1258, %v899
    %v1277 = vsub.f32 %v1263, %v900
    %v1278 = vsub.f32 %v1268, %v901
    %v1279 = vsub.f32 %v1273, %v902
    %v1280 = vadd.f32 %v1276, %v650
    %v1281 = vadd.f32 %v1277, %v650
    %v1282 = vadd.f32 %v1278, %v650
    %v1283 = vadd.f32 %v1279, %v650
    %v1284 = vmax.f32 %v1187, %v1280
    %v1285 = vmax.f32 %v1188, %v1281
    %v1286 = vmax.f32 %v1189, %v1282
    %v1287 = vmax.f32 %v1190, %v1283
    %1288 = vmatprep.subr.mxu0 0.0
    %1289 = vmatpush1.msra.mxu0 %v275
    %1290 = vmatprep.subr.mxu0 0.0
    %1291 = vmatpush1.msra.mxu0 %v276
    %1292 = vmatprep.subr.mxu0 0.0
    %1293 = vmatpush1.msra.mxu0 %v277
    %1294 = vmatprep.subr.mxu0 0.0
    %1295 = vmatpush1.msra.mxu0 %v278
    %1296 = vmatprep.subr.mxu0 0.0
    %1297 = vmatpush1.msra.mxu0 %v279
    %1298 = vmatprep.subr.mxu0 0.0
    %1299 = vmatpush1.msra.mxu0 %v280
    %1300 = vmatprep.subr.mxu0 0.0
    %1301 = vmatpush1.msra.mxu0 %v281
    %1302 = vmatprep.subr.mxu0 0.0
    %1303 = vmatpush1.msra.mxu0 %v282
    %1304 = vmatprep.subr.mxu0 0.0
    %1305 = vmatpush1.msra.mxu0 %v283
    %1306 = vmatprep.subr.mxu0 0.0
    %1307 = vmatpush1.msra.mxu0 %v284
    %1308 = vmatprep.subr.mxu0 0.0
    %1309 = vmatpush1.msra.mxu0 %v285
    %1310 = vmatprep.subr.mxu0 0.0
    %1311 = vmatpush1.msra.mxu0 %v286
    %1312 = vmatprep.subr.mxu0 0.0
    %1313 = vmatpush1.msra.mxu0 %v287
    %1314 = vmatprep.subr.mxu0 0.0
    %1315 = vmatpush1.msra.mxu0 %v288
    %1316 = vmatprep.subr.mxu0 0.0
    %1317 = vmatpush1.msra.mxu0 %v289
    %1318 = vmatprep.subr.mxu0 0.0
    %1319 = vmatpush1.msra.mxu0 %v290
    %1320 = vmatprep.subr.mxu0 0.0
    %1321 = vmatpush1.msra.mxu0 0.0
    %1322 = vmatprep.subr.mxu0 0.0
    %1323 = vmatpush1.msra.mxu0 0.0
    %1324 = vmatprep.subr.mxu0 0.0
    %1325 = vmatpush1.msra.mxu0 0.0
    %1326 = vmatprep.subr.mxu0 0.0
    %1327 = vmatpush1.msra.mxu0 0.0
    %1328 = vmatprep.subr.mxu0 0.0
    %1329 = vmatpush1.msra.mxu0 0.0
    %1330 = vmatprep.subr.mxu0 0.0
    %1331 = vmatpush1.msra.mxu0 0.0
    %1332 = vmatprep.subr.mxu0 0.0
    %1333 = vmatpush1.msra.mxu0 0.0
    %1334 = vmatprep.subr.mxu0 0.0
    %1335 = vmatpush1.msra.mxu0 0.0
    %1336 = vmatprep.subr.mxu0 0.0
    %1337 = vmatpush1.msra.mxu0 0.0
    %1338 = vmatprep.subr.mxu0 0.0
    %1339 = vmatpush1.msra.mxu0 0.0
    %1340 = vmatprep.subr.mxu0 0.0
    %1341 = vmatpush1.msra.mxu0 0.0
    %1342 = vmatprep.subr.mxu0 0.0
    %1343 = vmatpush1.msra.mxu0 0.0
    %1344 = vmatprep.subr.mxu0 0.0
    %1345 = vmatpush1.msra.mxu0 0.0
    %1346 = vmatprep.subr.mxu0 0.0
    %1347 = vmatpush1.msra.mxu0 0.0
    %1348 = vmatprep.subr.mxu0 0.0
    %1349 = vmatpush1.msra.mxu0 0.0
    %1350 = vmatprep.subr.mxu0 0.0
    %1351 = vmatpush1.msra.mxu0 0.0
    %1352 = vmatprep.mubr.f32.mxu0 0.0
    %1353 = vmatmul.mubr.f32.gmra.mrb[0].mxu0 %v983
    %v1354 = vpop.f32.mrb[0].mxu0
    %v1355 = vadd.f32 0.0, %v1354
    %v1356 = vpop.f32.mrb[0].mxu0
    %1357 = vmatprep.mubr.f32.mxu0 0.0
    %1358 = vmatmul.mubr.f32.gmra.mrb[0].mxu0 %v988
    %v1359 = vpop.f32.mrb[0].mxu0
    %v1360 = vadd.f32 0.0, %v1359
    %v1361 = vpop.f32.mrb[0].mxu0
    %1362 = vmatprep.mubr.f32.mxu0 0.0
    %1363 = vmatmul.mubr.f32.gmra.mrb[0].mxu0 %v993
    %v1364 = vpop.f32.mrb[0].mxu0
    %v1365 = vadd.f32 0.0, %v1364
    %v1366 = vpop.f32.mrb[0].mxu0
    %1367 = vmatprep.mubr.f32.mxu0 0.0
    %1368 = vmatmul.mubr.f32.gmra.mrb[0].mxu0 %v998
    %v1369 = vpop.f32.mrb[0].mxu0
    %v1370 = vadd.f32 0.0, %v1369
    %v1371 = vpop.f32.mrb[0].mxu0
    %1372 = vdwg.mxu0
    %v1373 = vsub.f32 %v1355, %v899
    %v1374 = vsub.f32 %v1360, %v900
    %v1375 = vsub.f32 %v1365, %v901
    %v1376 = vsub.f32 %v1370, %v902
    %v1377 = vadd.f32 %v1373, %v735
    %v1378 = vadd.f32 %v1374, %v735
    %v1379 = vadd.f32 %v1375, %v735
    %v1380 = vadd.f32 %v1376, %v735
    %v1381 = vmax.f32 %v1284, %v1377
    %v1382 = vmax.f32 %v1285, %v1378
    %v1383 = vmax.f32 %v1286, %v1379
    %v1384 = vmax.f32 %v1287, %v1380
    %1385 = vmatprep.subr.mxu0 0.0
    %1386 = vmatpush1.msra.mxu0 %v327
    %1387 = vmatprep.subr.mxu0 0.0
    %1388 = vmatpush1.msra.mxu0 %v328
    %1389 = vmatprep.subr.mxu0 0.0
    %1390 = vmatpush1.msra.mxu0 %v329
    %1391 = vmatprep.subr.mxu0 0.0
    %1392 = vmatpush1.msra.mxu0 %v330
    %1393 = vmatprep.subr.mxu0 0.0
    %1394 = vmatpush1.msra.mxu0 %v331
    %1395 = vmatprep.subr.mxu0 0.0
    %1396 = vmatpush1.msra.mxu0 %v332
    %1397 = vmatprep.subr.mxu0 0.0
    %1398 = vmatpush1.msra.mxu0 %v333
    %1399 = vmatprep.subr.mxu0 0.0
    %1400 = vmatpush1.msra.mxu0 %v334
    %1401 = vmatprep.subr.mxu0 0.0
    %1402 = vmatpush1.msra.mxu0 %v335
    %1403 = vmatprep.subr.mxu0 0.0
    %1404 = vmatpush1.msra.mxu0 %v336
    %1405 = vmatprep.subr.mxu0 0.0
    %1406 = vmatpush1.msra.mxu0 %v337
    %1407 = vmatprep.subr.mxu0 0.0
    %1408 = vmatpush1.msra.mxu0 %v338
    %1409 = vmatprep.subr.mxu0 0.0
    %1410 = vmatpush1.msra.mxu0 %v339
    %1411 = vmatprep.subr.mxu0 0.0
    %1412 = vmatpush1.msra.mxu0 %v340
    %1413 = vmatprep.subr.mxu0 0.0
    %1414 = vmatpush1.msra.mxu0 %v341
    %1415 = vmatprep.subr.mxu0 0.0
    %1416 = vmatpush1.msra.mxu0 %v342
    %1417 = vmatprep.subr.mxu0 0.0
    %1418 = vmatpush1.msra.mxu0 0.0
    %1419 = vmatprep.subr.mxu0 0.0
    %1420 = vmatpush1.msra.mxu0 0.0
    %1421 = vmatprep.subr.mxu0 0.0
    %1422 = vmatpush1.msra.mxu0 0.0
    %1423 = vmatprep.subr.mxu0 0.0
    %1424 = vmatpush1.msra.mxu0 0.0
    %1425 = vmatprep.subr.mxu0 0.0
    %1426 = vmatpush1.msra.mxu0 0.0
    %1427 = vmatprep.subr.mxu0 0.0
    %1428 = vmatpush1.msra.mxu0 0.0
    %1429 = vmatprep.subr.mxu0 0.0
    %1430 = vmatpush1.msra.mxu0 0.0
    %1431 = vmatprep.subr.mxu0 0.0
    %1432 = vmatpush1.msra.mxu0 0.0
    %1433 = vmatprep.subr.mxu0 0.0
    %1434 = vmatpush1.msra.mxu0 0.0
    %1435 = vmatprep.subr.mxu0 0.0
    %1436 = vmatpush1.msra.mxu0 0.0
    %1437 = vmatprep.subr.mxu0 0.0
    %1438 = vmatpush1.msra.mxu0 0.0
    %1439 = vmatprep.subr.mxu0 0.0
    %1440 = vmatpush1.msra.mxu0 0.0
    %1441 = vmatprep.subr.mxu0 0.0
    %1442 = vmatpush1.msra.mxu0 0.0
    %1443 = vmatprep.subr.mxu0 0.0
    %1444 = vmatpush1.msra.mxu0 0.0
    %1445 = vmatprep.subr.mxu0 0.0
    %1446 = vmatpush1.msra.mxu0 0.0
    %1447 = vmatprep.subr.mxu0 0.0
    %1448 = vmatpush1.msra.mxu0 0.0
    %1449 = vmatprep.mubr.f32.mxu0 0.0
    %1450 = vmatmul.mubr.f32.gmra.mrb[0].mxu0 %v983
    %v1451 = vpop.f32.mrb[0].mxu0
    %v1452 = vadd.f32 0.0, %v1451
    %v1453 = vpop.f32.mrb[0].mxu0
    %1454 = vmatprep.mubr.f32.mxu0 0.0
    %1455 = vmatmul.mubr.f32.gmra.mrb[0].mxu0 %v988
    %v1456 = vpop.f32.mrb[0].mxu0
    %v1457 = vadd.f32 0.0, %v1456
    %v1458 = vpop.f32.mrb[0].mxu0
    %1459 = vmatprep.mubr.f32.mxu0 0.0
    %1460 = vmatmul.mubr.f32.gmra.mrb[0].mxu0 %v993
    %v1461 = vpop.f32.mrb[0].mxu0
    %v1462 = vadd.f32 0.0, %v1461
    %v1463 = vpop.f32.mrb[0].mxu0
    %1464 = vmatprep.mubr.f32.mxu0 0.0
    %1465 = vmatmul.mubr.f32.gmra.mrb[0].mxu0 %v998
    %v1466 = vpop.f32.mrb[0].mxu0
    %v1467 = vadd.f32 0.0, %v1466
    %v1468 = vpop.f32.mrb[0].mxu0
    %1469 = vdwg.mxu0
    %v1470 = vsub.f32 %v1452, %v899
    %v1471 = vsub.f32 %v1457, %v900
    %v1472 = vsub.f32 %v1462, %v901
    %v1473 = vsub.f32 %v1467, %v902
    %v1474 = vadd.f32 %v1470, %v820
    %v1475 = vadd.f32 %v1471, %v820
    %v1476 = vadd.f32 %v1472, %v820
    %v1477 = vadd.f32 %v1473, %v820
    %v1478 = vmax.f32 %v1381, %v1474
    %v1479 = vmax.f32 %v1382, %v1475
    %v1480 = vmax.f32 %v1383, %v1476
    %v1481 = vmax.f32 %v1384, %v1477
    %vm1482 = vcmp.gt.f32.partialorder %v1478, -1e+29
    %vm1483 = vcmp.gt.f32.partialorder %v1479, -1e+29
    %vm1484 = vcmp.gt.f32.partialorder %v1480, -1e+29
    %vm1485 = vcmp.gt.f32.partialorder %v1481, -1e+29
    %v1486 = vsel %vm1482, %v1478, 0.0
    %v1487 = vsel %vm1483, %v1479, 0.0
    %v1488 = vsel %vm1484, %v1480, 0.0
    %v1489 = vsel %vm1485, %v1481, 0.0
    %1491 = vset.pattern.permute.xlu0 0
    %1492 = vperm.xlu0 %1491, %v851
    %v1493 = vpop.permute.xlu0 %1492
    %1496 = vset.pattern.permute.xlu0 0
    %1497 = vperm.xlu0 %1496, %v852
    %v1498 = vpop.permute.xlu0 %1497
    %1501 = vset.pattern.permute.xlu0 0
    %1502 = vperm.xlu0 %1501, %v853
    %v1503 = vpop.permute.xlu0 %1502
    %1506 = vset.pattern.permute.xlu0 0
    %1507 = vperm.xlu0 %1506, %v854
    %v1508 = vpop.permute.xlu0 %1507
    %v1510 = vadd.f32 %v1486, %v1493
    %v1511 = vadd.f32 %v1487, %v1498
    %v1512 = vadd.f32 %v1488, %v1503
    %v1513 = vadd.f32 %v1489, %v1508
    %v1514 = vmax.f32 %v1510, 0.0
    %v1515 = vmax.f32 %v1511, 0.0
    %v1516 = vmax.f32 %v1512, 0.0
    %v1517 = vmax.f32 %v1513, 0.0
    %v1518 = vld [vmem:[%s12] sm:$0xff]
    %v1519 = vld [vmem:[%s12 + $0x8] sm:$0xff]
    %v1520 = vld [vmem:[%s12 + $0x10] sm:$0xff]
    %v1521 = vld [vmem:[%s12 + $0x18] sm:$0xff]
    %v1522 = vld [vmem:[%s13] sm:$0xff]
    %v1523 = vld [vmem:[%s13 + $0x8] sm:$0xff]
    %v1524 = vld [vmem:[%s13 + $0x10] sm:$0xff]
    %v1525 = vld [vmem:[%s13 + $0x18] sm:$0xff]
    %v1526 = vld [vmem:[%s14] sm:$0xff]
    %v1527 = vld [vmem:[%s14 + $0x8] sm:$0xff]
    %v1528 = vld [vmem:[%s14 + $0x10] sm:$0xff]
    %v1529 = vld [vmem:[%s14 + $0x18] sm:$0xff]
    %1531 = vset.pattern.permute.xlu0 0
    %1532 = vperm.xlu0 %1531, %v1522
    %v1533 = vpop.permute.xlu0 %1532
    %1536 = vset.pattern.permute.xlu0 0
    %1537 = vperm.xlu0 %1536, %v1523
    %v1538 = vpop.permute.xlu0 %1537
    %1541 = vset.pattern.permute.xlu0 0
    %1542 = vperm.xlu0 %1541, %v1524
    %v1543 = vpop.permute.xlu0 %1542
    %1546 = vset.pattern.permute.xlu0 0
    %1547 = vperm.xlu0 %1546, %v1525
    %v1548 = vpop.permute.xlu0 %1547
    %v1550 = vmul.f32 %v1533, %v363
    %v1551 = vmul.f32 %v1538, %v363
    %v1552 = vmul.f32 %v1543, %v363
    %v1553 = vmul.f32 %v1548, %v363
    %1554 = vset.pattern.permute.xlu0 1
    %1555 = vperm.xlu0 %1554, %v1522
    %v1556 = vpop.permute.xlu0 %1555
    %1558 = vset.pattern.permute.xlu0 1
    %1559 = vperm.xlu0 %1558, %v1523
    %v1560 = vpop.permute.xlu0 %1559
    %1562 = vset.pattern.permute.xlu0 1
    %1563 = vperm.xlu0 %1562, %v1524
    %v1564 = vpop.permute.xlu0 %1563
    %1566 = vset.pattern.permute.xlu0 1
    %1567 = vperm.xlu0 %1566, %v1525
    %v1568 = vpop.permute.xlu0 %1567
    %v1570 = vmul.f32 %v1556, %v377
    %v1571 = vmul.f32 %v1560, %v377
    %v1572 = vmul.f32 %v1564, %v377
    %v1573 = vmul.f32 %v1568, %v377
    %v1574 = vadd.f32 %v1550, %v1570
    %v1575 = vadd.f32 %v1551, %v1571
    %v1576 = vadd.f32 %v1552, %v1572
    %v1577 = vadd.f32 %v1553, %v1573
    %vm1578 = vcmask 261120
    %v1580 = vsel %vm1578, %v1518, 0
    %v1583 = vsel %vm1578, %v1519, 0
    %v1586 = vsel %vm1578, %v1520, 0
    %v1589 = vsel %vm1578, %v1521, 0
    %1591 = vmatprep.subr.mxu0 0.0
    %1592 = vmatpush1.msra.mxu0 %v1514
    %1593 = vmatprep.subr.mxu0 0.0
    %1594 = vmatpush1.msra.mxu0 %v1515
    %1595 = vmatprep.subr.mxu0 0.0
    %1596 = vmatpush1.msra.mxu0 %v1516
    %1597 = vmatprep.subr.mxu0 0.0
    %1598 = vmatpush1.msra.mxu0 %v1517
    %1599 = vmatprep.subr.mxu0 0.0
    %1600 = vmatpush1.msra.mxu0 0.0
    %1601 = vmatprep.subr.mxu0 0.0
    %1602 = vmatpush1.msra.mxu0 0.0
    %1603 = vmatprep.subr.mxu0 0.0
    %1604 = vmatpush1.msra.mxu0 0.0
    %1605 = vmatprep.subr.mxu0 0.0
    %1606 = vmatpush1.msra.mxu0 0.0
    %1607 = vmatprep.subr.mxu0 0.0
    %1608 = vmatpush1.msra.mxu0 0.0
    %1609 = vmatprep.subr.mxu0 0.0
    %1610 = vmatpush1.msra.mxu0 0.0
    %1611 = vmatprep.subr.mxu0 0.0
    %1612 = vmatpush1.msra.mxu0 0.0
    %1613 = vmatprep.subr.mxu0 0.0
    %1614 = vmatpush1.msra.mxu0 0.0
    %1615 = vmatprep.subr.mxu0 0.0
    %1616 = vmatpush1.msra.mxu0 0.0
    %1617 = vmatprep.subr.mxu0 0.0
    %1618 = vmatpush1.msra.mxu0 0.0
    %1619 = vmatprep.subr.mxu0 0.0
    %1620 = vmatpush1.msra.mxu0 0.0
    %1621 = vmatprep.subr.mxu0 0.0
    %1622 = vmatpush1.msra.mxu0 0.0
    %1623 = vmatprep.subr.mxu0 0.0
    %1624 = vmatpush1.msra.mxu0 0.0
    %1625 = vmatprep.subr.mxu0 0.0
    %1626 = vmatpush1.msra.mxu0 0.0
    %1627 = vmatprep.subr.mxu0 0.0
    %1628 = vmatpush1.msra.mxu0 0.0
    %1629 = vmatprep.subr.mxu0 0.0
    %1630 = vmatpush1.msra.mxu0 0.0
    %1631 = vmatprep.subr.mxu0 0.0
    %1632 = vmatpush1.msra.mxu0 0.0
    %1633 = vmatprep.subr.mxu0 0.0
    %1634 = vmatpush1.msra.mxu0 0.0
    %1635 = vmatprep.subr.mxu0 0.0
    %1636 = vmatpush1.msra.mxu0 0.0
    %1637 = vmatprep.subr.mxu0 0.0
    %1638 = vmatpush1.msra.mxu0 0.0
    %1639 = vmatprep.subr.mxu0 0.0
    %1640 = vmatpush1.msra.mxu0 0.0
    %1641 = vmatprep.subr.mxu0 0.0
    %1642 = vmatpush1.msra.mxu0 0.0
    %1643 = vmatprep.subr.mxu0 0.0
    %1644 = vmatpush1.msra.mxu0 0.0
    %1645 = vmatprep.subr.mxu0 0.0
    %1646 = vmatpush1.msra.mxu0 0.0
    %1647 = vmatprep.subr.mxu0 0.0
    %1648 = vmatpush1.msra.mxu0 0.0
    %1649 = vmatprep.subr.mxu0 0.0
    %1650 = vmatpush1.msra.mxu0 0.0
    %1651 = vmatprep.subr.mxu0 0.0
    %1652 = vmatpush1.msra.mxu0 0.0
    %1653 = vmatprep.subr.mxu0 0.0
    %1654 = vmatpush1.msra.mxu0 0.0
    %1655 = vmatprep.mubr.f32.mxu0 0.0
    %1656 = vmatmul.mubr.f32.gmra.mrb[0].mxu0 %v1580
    %v1657 = vpop.f32.mrb[0].mxu0
    %v1658 = vadd.f32 %v1574, %v1657
    %v1659 = vpop.f32.mrb[0].mxu0
    %1660 = vmatprep.mubr.f32.mxu0 0.0
    %1661 = vmatmul.mubr.f32.gmra.mrb[0].mxu0 %v1583
    %v1662 = vpop.f32.mrb[0].mxu0
    %v1663 = vadd.f32 %v1575, %v1662
    %v1664 = vpop.f32.mrb[0].mxu0
    %1665 = vmatprep.mubr.f32.mxu0 0.0
    %1666 = vmatmul.mubr.f32.gmra.mrb[0].mxu0 %v1586
    %v1667 = vpop.f32.mrb[0].mxu0
    %v1668 = vadd.f32 %v1576, %v1667
    %v1669 = vpop.f32.mrb[0].mxu0
    %1670 = vmatprep.mubr.f32.mxu0 0.0
    %1671 = vmatmul.mubr.f32.gmra.mrb[0].mxu0 %v1589
    %v1672 = vpop.f32.mrb[0].mxu0
    %v1673 = vadd.f32 %v1577, %v1672
    %v1674 = vpop.f32.mrb[0].mxu0
    %1675 = vdwg.mxu0
    %1676 = vmatprep.subr.mxu0 0.0
    %1677 = vmatpush1.msra.mxu0 %v119
    %1678 = vmatprep.subr.mxu0 0.0
    %1679 = vmatpush1.msra.mxu0 %v120
    %1680 = vmatprep.subr.mxu0 0.0
    %1681 = vmatpush1.msra.mxu0 %v121
    %1682 = vmatprep.subr.mxu0 0.0
    %1683 = vmatpush1.msra.mxu0 %v122
    %1684 = vmatprep.subr.mxu0 0.0
    %1685 = vmatpush1.msra.mxu0 %v123
    %1686 = vmatprep.subr.mxu0 0.0
    %1687 = vmatpush1.msra.mxu0 %v124
    %1688 = vmatprep.subr.mxu0 0.0
    %1689 = vmatpush1.msra.mxu0 %v125
    %1690 = vmatprep.subr.mxu0 0.0
    %1691 = vmatpush1.msra.mxu0 %v126
    %1692 = vmatprep.subr.mxu0 0.0
    %1693 = vmatpush1.msra.mxu0 %v127
    %1694 = vmatprep.subr.mxu0 0.0
    %1695 = vmatpush1.msra.mxu0 %v128
    %1696 = vmatprep.subr.mxu0 0.0
    %1697 = vmatpush1.msra.mxu0 %v129
    %1698 = vmatprep.subr.mxu0 0.0
    %1699 = vmatpush1.msra.mxu0 %v130
    %1700 = vmatprep.subr.mxu0 0.0
    %1701 = vmatpush1.msra.mxu0 %v131
    %1702 = vmatprep.subr.mxu0 0.0
    %1703 = vmatpush1.msra.mxu0 %v132
    %1704 = vmatprep.subr.mxu0 0.0
    %1705 = vmatpush1.msra.mxu0 %v133
    %1706 = vmatprep.subr.mxu0 0.0
    %1707 = vmatpush1.msra.mxu0 %v134
    %1708 = vmatprep.subr.mxu0 0.0
    %1709 = vmatpush1.msra.mxu0 0.0
    %1710 = vmatprep.subr.mxu0 0.0
    %1711 = vmatpush1.msra.mxu0 0.0
    %1712 = vmatprep.subr.mxu0 0.0
    %1713 = vmatpush1.msra.mxu0 0.0
    %1714 = vmatprep.subr.mxu0 0.0
    %1715 = vmatpush1.msra.mxu0 0.0
    %1716 = vmatprep.subr.mxu0 0.0
    %1717 = vmatpush1.msra.mxu0 0.0
    %1718 = vmatprep.subr.mxu0 0.0
    %1719 = vmatpush1.msra.mxu0 0.0
    %1720 = vmatprep.subr.mxu0 0.0
    %1721 = vmatpush1.msra.mxu0 0.0
    %1722 = vmatprep.subr.mxu0 0.0
    %1723 = vmatpush1.msra.mxu0 0.0
    %1724 = vmatprep.subr.mxu0 0.0
    %1725 = vmatpush1.msra.mxu0 0.0
    %1726 = vmatprep.subr.mxu0 0.0
    %1727 = vmatpush1.msra.mxu0 0.0
    %1728 = vmatprep.subr.mxu0 0.0
    %1729 = vmatpush1.msra.mxu0 0.0
    %1730 = vmatprep.subr.mxu0 0.0
    %1731 = vmatpush1.msra.mxu0 0.0
    %1732 = vmatprep.subr.mxu0 0.0
    %1733 = vmatpush1.msra.mxu0 0.0
    %1734 = vmatprep.subr.mxu0 0.0
    %1735 = vmatpush1.msra.mxu0 0.0
    %1736 = vmatprep.subr.mxu0 0.0
    %1737 = vmatpush1.msra.mxu0 0.0
    %1738 = vmatprep.subr.mxu0 0.0
    %1739 = vmatpush1.msra.mxu0 0.0
    %1740 = vmatprep.mubr.f32.mxu0 0.0
    %1741 = vmatmul.mubr.f32.gmra.mrb[0].mxu0 %v1658
    %v1742 = vpop.f32.mrb[0].mxu0
    %v1743 = vadd.f32 0.0, %v1742
    %v1744 = vpop.f32.mrb[0].mxu0
    %1745 = vmatprep.mubr.f32.mxu0 0.0
    %1746 = vmatmul.mubr.f32.gmra.mrb[0].mxu0 %v1663
    %v1747 = vpop.f32.mrb[0].mxu0
    %v1748 = vadd.f32 0.0, %v1747
    %v1749 = vpop.f32.mrb[0].mxu0
    %1750 = vmatprep.mubr.f32.mxu0 0.0
    %1751 = vmatmul.mubr.f32.gmra.mrb[0].mxu0 %v1668
    %v1752 = vpop.f32.mrb[0].mxu0
    %v1753 = vadd.f32 0.0, %v1752
    %v1754 = vpop.f32.mrb[0].mxu0
    %1755 = vmatprep.mubr.f32.mxu0 0.0
    %1756 = vmatmul.mubr.f32.gmra.mrb[0].mxu0 %v1673
    %v1757 = vpop.f32.mrb[0].mxu0
    %v1758 = vadd.f32 0.0, %v1757
    %v1759 = vpop.f32.mrb[0].mxu0
    %1760 = vdwg.mxu0
    %v1761 = vsub.f32 %v1743, %v1574
    %v1762 = vsub.f32 %v1748, %v1575
    %v1763 = vsub.f32 %v1753, %v1576
    %v1764 = vsub.f32 %v1758, %v1577
    %v1765 = vadd.f32 %v1761, %v482
    %v1766 = vadd.f32 %v1762, %v482
    %v1767 = vadd.f32 %v1763, %v482
    %v1768 = vadd.f32 %v1764, %v482
    %1769 = vmatprep.subr.mxu0 0.0
    %1770 = vmatpush1.msra.mxu0 %v171
    %1771 = vmatprep.subr.mxu0 0.0
    %1772 = vmatpush1.msra.mxu0 %v172
    %1773 = vmatprep.subr.mxu0 0.0
    %1774 = vmatpush1.msra.mxu0 %v173
    %1775 = vmatprep.subr.mxu0 0.0
    %1776 = vmatpush1.msra.mxu0 %v174
    %1777 = vmatprep.subr.mxu0 0.0
    %1778 = vmatpush1.msra.mxu0 %v175
    %1779 = vmatprep.subr.mxu0 0.0
    %1780 = vmatpush1.msra.mxu0 %v176
    %1781 = vmatprep.subr.mxu0 0.0
    %1782 = vmatpush1.msra.mxu0 %v177
    %1783 = vmatprep.subr.mxu0 0.0
    %1784 = vmatpush1.msra.mxu0 %v178
    %1785 = vmatprep.subr.mxu0 0.0
    %1786 = vmatpush1.msra.mxu0 %v179
    %1787 = vmatprep.subr.mxu0 0.0
    %1788 = vmatpush1.msra.mxu0 %v180
    %1789 = vmatprep.subr.mxu0 0.0
    %1790 = vmatpush1.msra.mxu0 %v181
    %1791 = vmatprep.subr.mxu0 0.0
    %1792 = vmatpush1.msra.mxu0 %v182
    %1793 = vmatprep.subr.mxu0 0.0
    %1794 = vmatpush1.msra.mxu0 %v183
    %1795 = vmatprep.subr.mxu0 0.0
    %1796 = vmatpush1.msra.mxu0 %v184
    %1797 = vmatprep.subr.mxu0 0.0
    %1798 = vmatpush1.msra.mxu0 %v185
    %1799 = vmatprep.subr.mxu0 0.0
    %1800 = vmatpush1.msra.mxu0 %v186
    %1801 = vmatprep.subr.mxu0 0.0
    %1802 = vmatpush1.msra.mxu0 0.0
    %1803 = vmatprep.subr.mxu0 0.0
    %1804 = vmatpush1.msra.mxu0 0.0
    %1805 = vmatprep.subr.mxu0 0.0
    %1806 = vmatpush1.msra.mxu0 0.0
    %1807 = vmatprep.subr.mxu0 0.0
    %1808 = vmatpush1.msra.mxu0 0.0
    %1809 = vmatprep.subr.mxu0 0.0
    %1810 = vmatpush1.msra.mxu0 0.0
    %1811 = vmatprep.subr.mxu0 0.0
    %1812 = vmatpush1.msra.mxu0 0.0
    %1813 = vmatprep.subr.mxu0 0.0
    %1814 = vmatpush1.msra.mxu0 0.0
    %1815 = vmatprep.subr.mxu0 0.0
    %1816 = vmatpush1.msra.mxu0 0.0
    %1817 = vmatprep.subr.mxu0 0.0
    %1818 = vmatpush1.msra.mxu0 0.0
    %1819 = vmatprep.subr.mxu0 0.0
    %1820 = vmatpush1.msra.mxu0 0.0
    %1821 = vmatprep.subr.mxu0 0.0
    %1822 = vmatpush1.msra.mxu0 0.0
    %1823 = vmatprep.subr.mxu0 0.0
    %1824 = vmatpush1.msra.mxu0 0.0
    %1825 = vmatprep.subr.mxu0 0.0
    %1826 = vmatpush1.msra.mxu0 0.0
    %1827 = vmatprep.subr.mxu0 0.0
    %1828 = vmatpush1.msra.mxu0 0.0
    %1829 = vmatprep.subr.mxu0 0.0
    %1830 = vmatpush1.msra.mxu0 0.0
    %1831 = vmatprep.subr.mxu0 0.0
    %1832 = vmatpush1.msra.mxu0 0.0
    %1833 = vmatprep.mubr.f32.mxu0 0.0
    %1834 = vmatmul.mubr.f32.gmra.mrb[0].mxu0 %v1658
    %v1835 = vpop.f32.mrb[0].mxu0
    %v1836 = vadd.f32 0.0, %v1835
    %v1837 = vpop.f32.mrb[0].mxu0
    %1838 = vmatprep.mubr.f32.mxu0 0.0
    %1839 = vmatmul.mubr.f32.gmra.mrb[0].mxu0 %v1663
    %v1840 = vpop.f32.mrb[0].mxu0
    %v1841 = vadd.f32 0.0, %v1840
    %v1842 = vpop.f32.mrb[0].mxu0
    %1843 = vmatprep.mubr.f32.mxu0 0.0
    %1844 = vmatmul.mubr.f32.gmra.mrb[0].mxu0 %v1668
    %v1845 = vpop.f32.mrb[0].mxu0
    %v1846 = vadd.f32 0.0, %v1845
    %v1847 = vpop.f32.mrb[0].mxu0
    %1848 = vmatprep.mubr.f32.mxu0 0.0
    %1849 = vmatmul.mubr.f32.gmra.mrb[0].mxu0 %v1673
    %v1850 = vpop.f32.mrb[0].mxu0
    %v1851 = vadd.f32 0.0, %v1850
    %v1852 = vpop.f32.mrb[0].mxu0
    %1853 = vdwg.mxu0
    %v1854 = vsub.f32 %v1836, %v1574
    %v1855 = vsub.f32 %v1841, %v1575
    %v1856 = vsub.f32 %v1846, %v1576
    %v1857 = vsub.f32 %v1851, %v1577
    %v1858 = vadd.f32 %v1854, %v565
    %v1859 = vadd.f32 %v1855, %v565
    %v1860 = vadd.f32 %v1856, %v565
    %v1861 = vadd.f32 %v1857, %v565
    %v1862 = vmax.f32 %v1765, %v1858
    %v1863 = vmax.f32 %v1766, %v1859
    %v1864 = vmax.f32 %v1767, %v1860
    %v1865 = vmax.f32 %v1768, %v1861
    %1866 = vmatprep.subr.mxu0 0.0
    %1867 = vmatpush1.msra.mxu0 %v223
    %1868 = vmatprep.subr.mxu0 0.0
    %1869 = vmatpush1.msra.mxu0 %v224
    %1870 = vmatprep.subr.mxu0 0.0
    %1871 = vmatpush1.msra.mxu0 %v225
    %1872 = vmatprep.subr.mxu0 0.0
    %1873 = vmatpush1.msra.mxu0 %v226
    %1874 = vmatprep.subr.mxu0 0.0
    %1875 = vmatpush1.msra.mxu0 %v227
    %1876 = vmatprep.subr.mxu0 0.0
    %1877 = vmatpush1.msra.mxu0 %v228
    %1878 = vmatprep.subr.mxu0 0.0
    %1879 = vmatpush1.msra.mxu0 %v229
    %1880 = vmatprep.subr.mxu0 0.0
    %1881 = vmatpush1.msra.mxu0 %v230
    %1882 = vmatprep.subr.mxu0 0.0
    %1883 = vmatpush1.msra.mxu0 %v231
    %1884 = vmatprep.subr.mxu0 0.0
    %1885 = vmatpush1.msra.mxu0 %v232
    %1886 = vmatprep.subr.mxu0 0.0
    %1887 = vmatpush1.msra.mxu0 %v233
    %1888 = vmatprep.subr.mxu0 0.0
    %1889 = vmatpush1.msra.mxu0 %v234
    %1890 = vmatprep.subr.mxu0 0.0
    %1891 = vmatpush1.msra.mxu0 %v235
    %1892 = vmatprep.subr.mxu0 0.0
    %1893 = vmatpush1.msra.mxu0 %v236
    %1894 = vmatprep.subr.mxu0 0.0
    %1895 = vmatpush1.msra.mxu0 %v237
    %1896 = vmatprep.subr.mxu0 0.0
    %1897 = vmatpush1.msra.mxu0 %v238
    %1898 = vmatprep.subr.mxu0 0.0
    %1899 = vmatpush1.msra.mxu0 0.0
    %1900 = vmatprep.subr.mxu0 0.0
    %1901 = vmatpush1.msra.mxu0 0.0
    %1902 = vmatprep.subr.mxu0 0.0
    %1903 = vmatpush1.msra.mxu0 0.0
    %1904 = vmatprep.subr.mxu0 0.0
    %1905 = vmatpush1.msra.mxu0 0.0
    %1906 = vmatprep.subr.mxu0 0.0
    %1907 = vmatpush1.msra.mxu0 0.0
    %1908 = vmatprep.subr.mxu0 0.0
    %1909 = vmatpush1.msra.mxu0 0.0
    %1910 = vmatprep.subr.mxu0 0.0
    %1911 = vmatpush1.msra.mxu0 0.0
    %1912 = vmatprep.subr.mxu0 0.0
    %1913 = vmatpush1.msra.mxu0 0.0
    %1914 = vmatprep.subr.mxu0 0.0
    %1915 = vmatpush1.msra.mxu0 0.0
    %1916 = vmatprep.subr.mxu0 0.0
    %1917 = vmatpush1.msra.mxu0 0.0
    %1918 = vmatprep.subr.mxu0 0.0
    %1919 = vmatpush1.msra.mxu0 0.0
    %1920 = vmatprep.subr.mxu0 0.0
    %1921 = vmatpush1.msra.mxu0 0.0
    %1922 = vmatprep.subr.mxu0 0.0
    %1923 = vmatpush1.msra.mxu0 0.0
    %1924 = vmatprep.subr.mxu0 0.0
    %1925 = vmatpush1.msra.mxu0 0.0
    %1926 = vmatprep.subr.mxu0 0.0
    %1927 = vmatpush1.msra.mxu0 0.0
    %1928 = vmatprep.subr.mxu0 0.0
    %1929 = vmatpush1.msra.mxu0 0.0
    %1930 = vmatprep.mubr.f32.mxu0 0.0
    %1931 = vmatmul.mubr.f32.gmra.mrb[0].mxu0 %v1658
    %v1932 = vpop.f32.mrb[0].mxu0
    %v1933 = vadd.f32 0.0, %v1932
    %v1934 = vpop.f32.mrb[0].mxu0
    %1935 = vmatprep.mubr.f32.mxu0 0.0
    %1936 = vmatmul.mubr.f32.gmra.mrb[0].mxu0 %v1663
    %v1937 = vpop.f32.mrb[0].mxu0
    %v1938 = vadd.f32 0.0, %v1937
    %v1939 = vpop.f32.mrb[0].mxu0
    %1940 = vmatprep.mubr.f32.mxu0 0.0
    %1941 = vmatmul.mubr.f32.gmra.mrb[0].mxu0 %v1668
    %v1942 = vpop.f32.mrb[0].mxu0
    %v1943 = vadd.f32 0.0, %v1942
    %v1944 = vpop.f32.mrb[0].mxu0
    %1945 = vmatprep.mubr.f32.mxu0 0.0
    %1946 = vmatmul.mubr.f32.gmra.mrb[0].mxu0 %v1673
    %v1947 = vpop.f32.mrb[0].mxu0
    %v1948 = vadd.f32 0.0, %v1947
    %v1949 = vpop.f32.mrb[0].mxu0
    %1950 = vdwg.mxu0
    %v1951 = vsub.f32 %v1933, %v1574
    %v1952 = vsub.f32 %v1938, %v1575
    %v1953 = vsub.f32 %v1943, %v1576
    %v1954 = vsub.f32 %v1948, %v1577
    %v1955 = vadd.f32 %v1951, %v650
    %v1956 = vadd.f32 %v1952, %v650
    %v1957 = vadd.f32 %v1953, %v650
    %v1958 = vadd.f32 %v1954, %v650
    %v1959 = vmax.f32 %v1862, %v1955
    %v1960 = vmax.f32 %v1863, %v1956
    %v1961 = vmax.f32 %v1864, %v1957
    %v1962 = vmax.f32 %v1865, %v1958
    %1963 = vmatprep.subr.mxu0 0.0
    %1964 = vmatpush1.msra.mxu0 %v275
    %1965 = vmatprep.subr.mxu0 0.0
    %1966 = vmatpush1.msra.mxu0 %v276
    %1967 = vmatprep.subr.mxu0 0.0
    %1968 = vmatpush1.msra.mxu0 %v277
    %1969 = vmatprep.subr.mxu0 0.0
    %1970 = vmatpush1.msra.mxu0 %v278
    %1971 = vmatprep.subr.mxu0 0.0
    %1972 = vmatpush1.msra.mxu0 %v279
    %1973 = vmatprep.subr.mxu0 0.0
    %1974 = vmatpush1.msra.mxu0 %v280
    %1975 = vmatprep.subr.mxu0 0.0
    %1976 = vmatpush1.msra.mxu0 %v281
    %1977 = vmatprep.subr.mxu0 0.0
    %1978 = vmatpush1.msra.mxu0 %v282
    %1979 = vmatprep.subr.mxu0 0.0
    %1980 = vmatpush1.msra.mxu0 %v283
    %1981 = vmatprep.subr.mxu0 0.0
    %1982 = vmatpush1.msra.mxu0 %v284
    %1983 = vmatprep.subr.mxu0 0.0
    %1984 = vmatpush1.msra.mxu0 %v285
    %1985 = vmatprep.subr.mxu0 0.0
    %1986 = vmatpush1.msra.mxu0 %v286
    %1987 = vmatprep.subr.mxu0 0.0
    %1988 = vmatpush1.msra.mxu0 %v287
    %1989 = vmatprep.subr.mxu0 0.0
    %1990 = vmatpush1.msra.mxu0 %v288
    %1991 = vmatprep.subr.mxu0 0.0
    %1992 = vmatpush1.msra.mxu0 %v289
    %1993 = vmatprep.subr.mxu0 0.0
    %1994 = vmatpush1.msra.mxu0 %v290
    %1995 = vmatprep.subr.mxu0 0.0
    %1996 = vmatpush1.msra.mxu0 0.0
    %1997 = vmatprep.subr.mxu0 0.0
    %1998 = vmatpush1.msra.mxu0 0.0
    %1999 = vmatprep.subr.mxu0 0.0
    %2000 = vmatpush1.msra.mxu0 0.0
    %2001 = vmatprep.subr.mxu0 0.0
    %2002 = vmatpush1.msra.mxu0 0.0
    %2003 = vmatprep.subr.mxu0 0.0
    %2004 = vmatpush1.msra.mxu0 0.0
    %2005 = vmatprep.subr.mxu0 0.0
    %2006 = vmatpush1.msra.mxu0 0.0
    %2007 = vmatprep.subr.mxu0 0.0
    %2008 = vmatpush1.msra.mxu0 0.0
    %2009 = vmatprep.subr.mxu0 0.0
    %2010 = vmatpush1.msra.mxu0 0.0
    %2011 = vmatprep.subr.mxu0 0.0
    %2012 = vmatpush1.msra.mxu0 0.0
    %2013 = vmatprep.subr.mxu0 0.0
    %2014 = vmatpush1.msra.mxu0 0.0
    %2015 = vmatprep.subr.mxu0 0.0
    %2016 = vmatpush1.msra.mxu0 0.0
    %2017 = vmatprep.subr.mxu0 0.0
    %2018 = vmatpush1.msra.mxu0 0.0
    %2019 = vmatprep.subr.mxu0 0.0
    %2020 = vmatpush1.msra.mxu0 0.0
    %2021 = vmatprep.subr.mxu0 0.0
    %2022 = vmatpush1.msra.mxu0 0.0
    %2023 = vmatprep.subr.mxu0 0.0
    %2024 = vmatpush1.msra.mxu0 0.0
    %2025 = vmatprep.subr.mxu0 0.0
    %2026 = vmatpush1.msra.mxu0 0.0
    %2027 = vmatprep.mubr.f32.mxu0 0.0
    %2028 = vmatmul.mubr.f32.gmra.mrb[0].mxu0 %v1658
    %v2029 = vpop.f32.mrb[0].mxu0
    %v2030 = vadd.f32 0.0, %v2029
    %v2031 = vpop.f32.mrb[0].mxu0
    %2032 = vmatprep.mubr.f32.mxu0 0.0
    %2033 = vmatmul.mubr.f32.gmra.mrb[0].mxu0 %v1663
    %v2034 = vpop.f32.mrb[0].mxu0
    %v2035 = vadd.f32 0.0, %v2034
    %v2036 = vpop.f32.mrb[0].mxu0
    %2037 = vmatprep.mubr.f32.mxu0 0.0
    %2038 = vmatmul.mubr.f32.gmra.mrb[0].mxu0 %v1668
    %v2039 = vpop.f32.mrb[0].mxu0
    %v2040 = vadd.f32 0.0, %v2039
    %v2041 = vpop.f32.mrb[0].mxu0
    %2042 = vmatprep.mubr.f32.mxu0 0.0
    %2043 = vmatmul.mubr.f32.gmra.mrb[0].mxu0 %v1673
    %v2044 = vpop.f32.mrb[0].mxu0
    %v2045 = vadd.f32 0.0, %v2044
    %v2046 = vpop.f32.mrb[0].mxu0
    %2047 = vdwg.mxu0
    %v2048 = vsub.f32 %v2030, %v1574
    %v2049 = vsub.f32 %v2035, %v1575
    %v2050 = vsub.f32 %v2040, %v1576
    %v2051 = vsub.f32 %v2045, %v1577
    %v2052 = vadd.f32 %v2048, %v735
    %v2053 = vadd.f32 %v2049, %v735
    %v2054 = vadd.f32 %v2050, %v735
    %v2055 = vadd.f32 %v2051, %v735
    %v2056 = vmax.f32 %v1959, %v2052
    %v2057 = vmax.f32 %v1960, %v2053
    %v2058 = vmax.f32 %v1961, %v2054
    %v2059 = vmax.f32 %v1962, %v2055
    %2060 = vmatprep.subr.mxu0 0.0
    %2061 = vmatpush1.msra.mxu0 %v327
    %2062 = vmatprep.subr.mxu0 0.0
    %2063 = vmatpush1.msra.mxu0 %v328
    %2064 = vmatprep.subr.mxu0 0.0
    %2065 = vmatpush1.msra.mxu0 %v329
    %2066 = vmatprep.subr.mxu0 0.0
    %2067 = vmatpush1.msra.mxu0 %v330
    %2068 = vmatprep.subr.mxu0 0.0
    %2069 = vmatpush1.msra.mxu0 %v331
    %2070 = vmatprep.subr.mxu0 0.0
    %2071 = vmatpush1.msra.mxu0 %v332
    %2072 = vmatprep.subr.mxu0 0.0
    %2073 = vmatpush1.msra.mxu0 %v333
    %2074 = vmatprep.subr.mxu0 0.0
    %2075 = vmatpush1.msra.mxu0 %v334
    %2076 = vmatprep.subr.mxu0 0.0
    %2077 = vmatpush1.msra.mxu0 %v335
    %2078 = vmatprep.subr.mxu0 0.0
    %2079 = vmatpush1.msra.mxu0 %v336
    %2080 = vmatprep.subr.mxu0 0.0
    %2081 = vmatpush1.msra.mxu0 %v337
    %2082 = vmatprep.subr.mxu0 0.0
    %2083 = vmatpush1.msra.mxu0 %v338
    %2084 = vmatprep.subr.mxu0 0.0
    %2085 = vmatpush1.msra.mxu0 %v339
    %2086 = vmatprep.subr.mxu0 0.0
    %2087 = vmatpush1.msra.mxu0 %v340
    %2088 = vmatprep.subr.mxu0 0.0
    %2089 = vmatpush1.msra.mxu0 %v341
    %2090 = vmatprep.subr.mxu0 0.0
    %2091 = vmatpush1.msra.mxu0 %v342
    %2092 = vmatprep.subr.mxu0 0.0
    %2093 = vmatpush1.msra.mxu0 0.0
    %2094 = vmatprep.subr.mxu0 0.0
    %2095 = vmatpush1.msra.mxu0 0.0
    %2096 = vmatprep.subr.mxu0 0.0
    %2097 = vmatpush1.msra.mxu0 0.0
    %2098 = vmatprep.subr.mxu0 0.0
    %2099 = vmatpush1.msra.mxu0 0.0
    %2100 = vmatprep.subr.mxu0 0.0
    %2101 = vmatpush1.msra.mxu0 0.0
    %2102 = vmatprep.subr.mxu0 0.0
    %2103 = vmatpush1.msra.mxu0 0.0
    %2104 = vmatprep.subr.mxu0 0.0
    %2105 = vmatpush1.msra.mxu0 0.0
    %2106 = vmatprep.subr.mxu0 0.0
    %2107 = vmatpush1.msra.mxu0 0.0
    %2108 = vmatprep.subr.mxu0 0.0
    %2109 = vmatpush1.msra.mxu0 0.0
    %2110 = vmatprep.subr.mxu0 0.0
    %2111 = vmatpush1.msra.mxu0 0.0
    %2112 = vmatprep.subr.mxu0 0.0
    %2113 = vmatpush1.msra.mxu0 0.0
    %2114 = vmatprep.subr.mxu0 0.0
    %2115 = vmatpush1.msra.mxu0 0.0
    %2116 = vmatprep.subr.mxu0 0.0
    %2117 = vmatpush1.msra.mxu0 0.0
    %2118 = vmatprep.subr.mxu0 0.0
    %2119 = vmatpush1.msra.mxu0 0.0
    %2120 = vmatprep.subr.mxu0 0.0
    %2121 = vmatpush1.msra.mxu0 0.0
    %2122 = vmatprep.subr.mxu0 0.0
    %2123 = vmatpush1.msra.mxu0 0.0
    %2124 = vmatprep.mubr.f32.mxu0 0.0
    %2125 = vmatmul.mubr.f32.gmra.mrb[0].mxu0 %v1658
    %v2126 = vpop.f32.mrb[0].mxu0
    %v2127 = vadd.f32 0.0, %v2126
    %v2128 = vpop.f32.mrb[0].mxu0
    %2129 = vmatprep.mubr.f32.mxu0 0.0
    %2130 = vmatmul.mubr.f32.gmra.mrb[0].mxu0 %v1663
    %v2131 = vpop.f32.mrb[0].mxu0
    %v2132 = vadd.f32 0.0, %v2131
    %v2133 = vpop.f32.mrb[0].mxu0
    %2134 = vmatprep.mubr.f32.mxu0 0.0
    %2135 = vmatmul.mubr.f32.gmra.mrb[0].mxu0 %v1668
    %v2136 = vpop.f32.mrb[0].mxu0
    %v2137 = vadd.f32 0.0, %v2136
    %v2138 = vpop.f32.mrb[0].mxu0
    %2139 = vmatprep.mubr.f32.mxu0 0.0
    %2140 = vmatmul.mubr.f32.gmra.mrb[0].mxu0 %v1673
    %v2141 = vpop.f32.mrb[0].mxu0
    %v2142 = vadd.f32 0.0, %v2141
    %v2143 = vpop.f32.mrb[0].mxu0
    %2144 = vdwg.mxu0
    %v2145 = vsub.f32 %v2127, %v1574
    %v2146 = vsub.f32 %v2132, %v1575
    %v2147 = vsub.f32 %v2137, %v1576
    %v2148 = vsub.f32 %v2142, %v1577
    %v2149 = vadd.f32 %v2145, %v820
    %v2150 = vadd.f32 %v2146, %v820
    %v2151 = vadd.f32 %v2147, %v820
    %v2152 = vadd.f32 %v2148, %v820
    %v2153 = vmax.f32 %v2056, %v2149
    %v2154 = vmax.f32 %v2057, %v2150
    %v2155 = vmax.f32 %v2058, %v2151
    %v2156 = vmax.f32 %v2059, %v2152
    %vm2157 = vcmp.gt.f32.partialorder %v2153, -1e+29
    %vm2158 = vcmp.gt.f32.partialorder %v2154, -1e+29
    %vm2159 = vcmp.gt.f32.partialorder %v2155, -1e+29
    %vm2160 = vcmp.gt.f32.partialorder %v2156, -1e+29
    %v2161 = vsel %vm2157, %v2153, 0.0
    %v2162 = vsel %vm2158, %v2154, 0.0
    %v2163 = vsel %vm2159, %v2155, 0.0
    %v2164 = vsel %vm2160, %v2156, 0.0
    %2166 = vset.pattern.permute.xlu0 0
    %2167 = vperm.xlu0 %2166, %v1526
    %v2168 = vpop.permute.xlu0 %2167
    %2171 = vset.pattern.permute.xlu0 0
    %2172 = vperm.xlu0 %2171, %v1527
    %v2173 = vpop.permute.xlu0 %2172
    %2176 = vset.pattern.permute.xlu0 0
    %2177 = vperm.xlu0 %2176, %v1528
    %v2178 = vpop.permute.xlu0 %2177
    %2181 = vset.pattern.permute.xlu0 0
    %2182 = vperm.xlu0 %2181, %v1529
    %v2183 = vpop.permute.xlu0 %2182
    %v2185 = vadd.f32 %v2161, %v2168
    %v2186 = vadd.f32 %v2162, %v2173
    %v2187 = vadd.f32 %v2163, %v2178
    %v2188 = vadd.f32 %v2164, %v2183
    %v2189 = vmax.f32 %v2185, 0.0
    %v2190 = vmax.f32 %v2186, 0.0
    %v2191 = vmax.f32 %v2187, 0.0
    %v2192 = vmax.f32 %v2188, 0.0
    %v2193 = vld [vmem:[%s15] sm:$0xff]
    %v2194 = vld [vmem:[%s15 + $0x8] sm:$0xff]
    %v2195 = vld [vmem:[%s15 + $0x10] sm:$0xff]
    %v2196 = vld [vmem:[%s15 + $0x18] sm:$0xff]
    %v2197 = vld [vmem:[%s16] sm:$0xff]
    %v2198 = vld [vmem:[%s16 + $0x8] sm:$0xff]
    %v2199 = vld [vmem:[%s16 + $0x10] sm:$0xff]
    %v2200 = vld [vmem:[%s16 + $0x18] sm:$0xff]
    %v2201 = vld [vmem:[%s17] sm:$0xff]
    %v2202 = vld [vmem:[%s17 + $0x8] sm:$0xff]
    %v2203 = vld [vmem:[%s17 + $0x10] sm:$0xff]
    %v2204 = vld [vmem:[%s17 + $0x18] sm:$0xff]
    %2206 = vset.pattern.permute.xlu0 0
    %2207 = vperm.xlu0 %2206, %v2197
    %v2208 = vpop.permute.xlu0 %2207
    %2211 = vset.pattern.permute.xlu0 0
    %2212 = vperm.xlu0 %2211, %v2198
    %v2213 = vpop.permute.xlu0 %2212
    %2216 = vset.pattern.permute.xlu0 0
    %2217 = vperm.xlu0 %2216, %v2199
    %v2218 = vpop.permute.xlu0 %2217
    %2221 = vset.pattern.permute.xlu0 0
    %2222 = vperm.xlu0 %2221, %v2200
    %v2223 = vpop.permute.xlu0 %2222
    %v2225 = vmul.f32 %v2208, %v363
    %v2226 = vmul.f32 %v2213, %v363
    %v2227 = vmul.f32 %v2218, %v363
    %v2228 = vmul.f32 %v2223, %v363
    %2229 = vset.pattern.permute.xlu0 1
    %2230 = vperm.xlu0 %2229, %v2197
    %v2231 = vpop.permute.xlu0 %2230
    %2233 = vset.pattern.permute.xlu0 1
    %2234 = vperm.xlu0 %2233, %v2198
    %v2235 = vpop.permute.xlu0 %2234
    %2237 = vset.pattern.permute.xlu0 1
    %2238 = vperm.xlu0 %2237, %v2199
    %v2239 = vpop.permute.xlu0 %2238
    %2241 = vset.pattern.permute.xlu0 1
    %2242 = vperm.xlu0 %2241, %v2200
    %v2243 = vpop.permute.xlu0 %2242
    %v2245 = vmul.f32 %v2231, %v377
    %v2246 = vmul.f32 %v2235, %v377
    %v2247 = vmul.f32 %v2239, %v377
    %v2248 = vmul.f32 %v2243, %v377
    %v2249 = vadd.f32 %v2225, %v2245
    %v2250 = vadd.f32 %v2226, %v2246
    %v2251 = vadd.f32 %v2227, %v2247
    %v2252 = vadd.f32 %v2228, %v2248
    %v2254 = vsel %vm1578, %v2193, 0
    %v2257 = vsel %vm1578, %v2194, 0
    %v2260 = vsel %vm1578, %v2195, 0
    %v2263 = vsel %vm1578, %v2196, 0
    %2265 = vmatprep.subr.mxu0 0.0
    %2266 = vmatpush1.msra.mxu0 %v2189
    %2267 = vmatprep.subr.mxu0 0.0
    %2268 = vmatpush1.msra.mxu0 %v2190
    %2269 = vmatprep.subr.mxu0 0.0
    %2270 = vmatpush1.msra.mxu0 %v2191
    %2271 = vmatprep.subr.mxu0 0.0
    %2272 = vmatpush1.msra.mxu0 %v2192
    %2273 = vmatprep.subr.mxu0 0.0
    %2274 = vmatpush1.msra.mxu0 0.0
    %2275 = vmatprep.subr.mxu0 0.0
    %2276 = vmatpush1.msra.mxu0 0.0
    %2277 = vmatprep.subr.mxu0 0.0
    %2278 = vmatpush1.msra.mxu0 0.0
    %2279 = vmatprep.subr.mxu0 0.0
    %2280 = vmatpush1.msra.mxu0 0.0
    %2281 = vmatprep.subr.mxu0 0.0
    %2282 = vmatpush1.msra.mxu0 0.0
    %2283 = vmatprep.subr.mxu0 0.0
    %2284 = vmatpush1.msra.mxu0 0.0
    %2285 = vmatprep.subr.mxu0 0.0
    %2286 = vmatpush1.msra.mxu0 0.0
    %2287 = vmatprep.subr.mxu0 0.0
    %2288 = vmatpush1.msra.mxu0 0.0
    %2289 = vmatprep.subr.mxu0 0.0
    %2290 = vmatpush1.msra.mxu0 0.0
    %2291 = vmatprep.subr.mxu0 0.0
    %2292 = vmatpush1.msra.mxu0 0.0
    %2293 = vmatprep.subr.mxu0 0.0
    %2294 = vmatpush1.msra.mxu0 0.0
    %2295 = vmatprep.subr.mxu0 0.0
    %2296 = vmatpush1.msra.mxu0 0.0
    %2297 = vmatprep.subr.mxu0 0.0
    %2298 = vmatpush1.msra.mxu0 0.0
    %2299 = vmatprep.subr.mxu0 0.0
    %2300 = vmatpush1.msra.mxu0 0.0
    %2301 = vmatprep.subr.mxu0 0.0
    %2302 = vmatpush1.msra.mxu0 0.0
    %2303 = vmatprep.subr.mxu0 0.0
    %2304 = vmatpush1.msra.mxu0 0.0
    %2305 = vmatprep.subr.mxu0 0.0
    %2306 = vmatpush1.msra.mxu0 0.0
    %2307 = vmatprep.subr.mxu0 0.0
    %2308 = vmatpush1.msra.mxu0 0.0
    %2309 = vmatprep.subr.mxu0 0.0
    %2310 = vmatpush1.msra.mxu0 0.0
    %2311 = vmatprep.subr.mxu0 0.0
    %2312 = vmatpush1.msra.mxu0 0.0
    %2313 = vmatprep.subr.mxu0 0.0
    %2314 = vmatpush1.msra.mxu0 0.0
    %2315 = vmatprep.subr.mxu0 0.0
    %2316 = vmatpush1.msra.mxu0 0.0
    %2317 = vmatprep.subr.mxu0 0.0
    %2318 = vmatpush1.msra.mxu0 0.0
    %2319 = vmatprep.subr.mxu0 0.0
    %2320 = vmatpush1.msra.mxu0 0.0
    %2321 = vmatprep.subr.mxu0 0.0
    %2322 = vmatpush1.msra.mxu0 0.0
    %2323 = vmatprep.subr.mxu0 0.0
    %2324 = vmatpush1.msra.mxu0 0.0
    %2325 = vmatprep.subr.mxu0 0.0
    %2326 = vmatpush1.msra.mxu0 0.0
    %2327 = vmatprep.subr.mxu0 0.0
    %2328 = vmatpush1.msra.mxu0 0.0
    %2329 = vmatprep.mubr.f32.mxu0 0.0
    %2330 = vmatmul.mubr.f32.gmra.mrb[0].mxu0 %v2254
    %v2331 = vpop.f32.mrb[0].mxu0
    %v2332 = vadd.f32 %v2249, %v2331
    %v2333 = vpop.f32.mrb[0].mxu0
    %2334 = vmatprep.mubr.f32.mxu0 0.0
    %2335 = vmatmul.mubr.f32.gmra.mrb[0].mxu0 %v2257
    %v2336 = vpop.f32.mrb[0].mxu0
    %v2337 = vadd.f32 %v2250, %v2336
    %v2338 = vpop.f32.mrb[0].mxu0
    %2339 = vmatprep.mubr.f32.mxu0 0.0
    %2340 = vmatmul.mubr.f32.gmra.mrb[0].mxu0 %v2260
    %v2341 = vpop.f32.mrb[0].mxu0
    %v2342 = vadd.f32 %v2251, %v2341
    %v2343 = vpop.f32.mrb[0].mxu0
    %2344 = vmatprep.mubr.f32.mxu0 0.0
    %2345 = vmatmul.mubr.f32.gmra.mrb[0].mxu0 %v2263
    %v2346 = vpop.f32.mrb[0].mxu0
    %v2347 = vadd.f32 %v2252, %v2346
    %v2348 = vpop.f32.mrb[0].mxu0
    %2349 = vdwg.mxu0
    %2350 = vmatprep.subr.mxu0 0.0
    %2351 = vmatpush1.msra.mxu0 %v119
    %2352 = vmatprep.subr.mxu0 0.0
    %2353 = vmatpush1.msra.mxu0 %v120
    %2354 = vmatprep.subr.mxu0 0.0
    %2355 = vmatpush1.msra.mxu0 %v121
    %2356 = vmatprep.subr.mxu0 0.0
    %2357 = vmatpush1.msra.mxu0 %v122
    %2358 = vmatprep.subr.mxu0 0.0
    %2359 = vmatpush1.msra.mxu0 %v123
    %2360 = vmatprep.subr.mxu0 0.0
    %2361 = vmatpush1.msra.mxu0 %v124
    %2362 = vmatprep.subr.mxu0 0.0
    %2363 = vmatpush1.msra.mxu0 %v125
    %2364 = vmatprep.subr.mxu0 0.0
    %2365 = vmatpush1.msra.mxu0 %v126
    %2366 = vmatprep.subr.mxu0 0.0
    %2367 = vmatpush1.msra.mxu0 %v127
    %2368 = vmatprep.subr.mxu0 0.0
    %2369 = vmatpush1.msra.mxu0 %v128
    %2370 = vmatprep.subr.mxu0 0.0
    %2371 = vmatpush1.msra.mxu0 %v129
    %2372 = vmatprep.subr.mxu0 0.0
    %2373 = vmatpush1.msra.mxu0 %v130
    %2374 = vmatprep.subr.mxu0 0.0
    %2375 = vmatpush1.msra.mxu0 %v131
    %2376 = vmatprep.subr.mxu0 0.0
    %2377 = vmatpush1.msra.mxu0 %v132
    %2378 = vmatprep.subr.mxu0 0.0
    %2379 = vmatpush1.msra.mxu0 %v133
    %2380 = vmatprep.subr.mxu0 0.0
    %2381 = vmatpush1.msra.mxu0 %v134
    %2382 = vmatprep.subr.mxu0 0.0
    %2383 = vmatpush1.msra.mxu0 0.0
    %2384 = vmatprep.subr.mxu0 0.0
    %2385 = vmatpush1.msra.mxu0 0.0
    %2386 = vmatprep.subr.mxu0 0.0
    %2387 = vmatpush1.msra.mxu0 0.0
    %2388 = vmatprep.subr.mxu0 0.0
    %2389 = vmatpush1.msra.mxu0 0.0
    %2390 = vmatprep.subr.mxu0 0.0
    %2391 = vmatpush1.msra.mxu0 0.0
    %2392 = vmatprep.subr.mxu0 0.0
    %2393 = vmatpush1.msra.mxu0 0.0
    %2394 = vmatprep.subr.mxu0 0.0
    %2395 = vmatpush1.msra.mxu0 0.0
    %2396 = vmatprep.subr.mxu0 0.0
    %2397 = vmatpush1.msra.mxu0 0.0
    %2398 = vmatprep.subr.mxu0 0.0
    %2399 = vmatpush1.msra.mxu0 0.0
    %2400 = vmatprep.subr.mxu0 0.0
    %2401 = vmatpush1.msra.mxu0 0.0
    %2402 = vmatprep.subr.mxu0 0.0
    %2403 = vmatpush1.msra.mxu0 0.0
    %2404 = vmatprep.subr.mxu0 0.0
    %2405 = vmatpush1.msra.mxu0 0.0
    %2406 = vmatprep.subr.mxu0 0.0
    %2407 = vmatpush1.msra.mxu0 0.0
    %2408 = vmatprep.subr.mxu0 0.0
    %2409 = vmatpush1.msra.mxu0 0.0
    %2410 = vmatprep.subr.mxu0 0.0
    %2411 = vmatpush1.msra.mxu0 0.0
    %2412 = vmatprep.subr.mxu0 0.0
    %2413 = vmatpush1.msra.mxu0 0.0
    %2414 = vmatprep.mubr.f32.mxu0 0.0
    %2415 = vmatmul.mubr.f32.gmra.mrb[0].mxu0 %v2332
    %v2416 = vpop.f32.mrb[0].mxu0
    %v2417 = vadd.f32 0.0, %v2416
    %v2418 = vpop.f32.mrb[0].mxu0
    %2419 = vmatprep.mubr.f32.mxu0 0.0
    %2420 = vmatmul.mubr.f32.gmra.mrb[0].mxu0 %v2337
    %v2421 = vpop.f32.mrb[0].mxu0
    %v2422 = vadd.f32 0.0, %v2421
    %v2423 = vpop.f32.mrb[0].mxu0
    %2424 = vmatprep.mubr.f32.mxu0 0.0
    %2425 = vmatmul.mubr.f32.gmra.mrb[0].mxu0 %v2342
    %v2426 = vpop.f32.mrb[0].mxu0
    %v2427 = vadd.f32 0.0, %v2426
    %v2428 = vpop.f32.mrb[0].mxu0
    %2429 = vmatprep.mubr.f32.mxu0 0.0
    %2430 = vmatmul.mubr.f32.gmra.mrb[0].mxu0 %v2347
    %v2431 = vpop.f32.mrb[0].mxu0
    %v2432 = vadd.f32 0.0, %v2431
    %v2433 = vpop.f32.mrb[0].mxu0
    %2434 = vdwg.mxu0
    %v2435 = vsub.f32 %v2417, %v2249
    %v2436 = vsub.f32 %v2422, %v2250
    %v2437 = vsub.f32 %v2427, %v2251
    %v2438 = vsub.f32 %v2432, %v2252
    %v2439 = vadd.f32 %v2435, %v482
    %v2440 = vadd.f32 %v2436, %v482
    %v2441 = vadd.f32 %v2437, %v482
    %v2442 = vadd.f32 %v2438, %v482
    %2443 = vmatprep.subr.mxu0 0.0
    %2444 = vmatpush1.msra.mxu0 %v171
    %2445 = vmatprep.subr.mxu0 0.0
    %2446 = vmatpush1.msra.mxu0 %v172
    %2447 = vmatprep.subr.mxu0 0.0
    %2448 = vmatpush1.msra.mxu0 %v173
    %2449 = vmatprep.subr.mxu0 0.0
    %2450 = vmatpush1.msra.mxu0 %v174
    %2451 = vmatprep.subr.mxu0 0.0
    %2452 = vmatpush1.msra.mxu0 %v175
    %2453 = vmatprep.subr.mxu0 0.0
    %2454 = vmatpush1.msra.mxu0 %v176
    %2455 = vmatprep.subr.mxu0 0.0
    %2456 = vmatpush1.msra.mxu0 %v177
    %2457 = vmatprep.subr.mxu0 0.0
    %2458 = vmatpush1.msra.mxu0 %v178
    %2459 = vmatprep.subr.mxu0 0.0
    %2460 = vmatpush1.msra.mxu0 %v179
    %2461 = vmatprep.subr.mxu0 0.0
    %2462 = vmatpush1.msra.mxu0 %v180
    %2463 = vmatprep.subr.mxu0 0.0
    %2464 = vmatpush1.msra.mxu0 %v181
    %2465 = vmatprep.subr.mxu0 0.0
    %2466 = vmatpush1.msra.mxu0 %v182
    %2467 = vmatprep.subr.mxu0 0.0
    %2468 = vmatpush1.msra.mxu0 %v183
    %2469 = vmatprep.subr.mxu0 0.0
    %2470 = vmatpush1.msra.mxu0 %v184
    %2471 = vmatprep.subr.mxu0 0.0
    %2472 = vmatpush1.msra.mxu0 %v185
    %2473 = vmatprep.subr.mxu0 0.0
    %2474 = vmatpush1.msra.mxu0 %v186
    %2475 = vmatprep.subr.mxu0 0.0
    %2476 = vmatpush1.msra.mxu0 0.0
    %2477 = vmatprep.subr.mxu0 0.0
    %2478 = vmatpush1.msra.mxu0 0.0
    %2479 = vmatprep.subr.mxu0 0.0
    %2480 = vmatpush1.msra.mxu0 0.0
    %2481 = vmatprep.subr.mxu0 0.0
    %2482 = vmatpush1.msra.mxu0 0.0
    %2483 = vmatprep.subr.mxu0 0.0
    %2484 = vmatpush1.msra.mxu0 0.0
    %2485 = vmatprep.subr.mxu0 0.0
    %2486 = vmatpush1.msra.mxu0 0.0
    %2487 = vmatprep.subr.mxu0 0.0
    %2488 = vmatpush1.msra.mxu0 0.0
    %2489 = vmatprep.subr.mxu0 0.0
    %2490 = vmatpush1.msra.mxu0 0.0
    %2491 = vmatprep.subr.mxu0 0.0
    %2492 = vmatpush1.msra.mxu0 0.0
    %2493 = vmatprep.subr.mxu0 0.0
    %2494 = vmatpush1.msra.mxu0 0.0
    %2495 = vmatprep.subr.mxu0 0.0
    %2496 = vmatpush1.msra.mxu0 0.0
    %2497 = vmatprep.subr.mxu0 0.0
    %2498 = vmatpush1.msra.mxu0 0.0
    %2499 = vmatprep.subr.mxu0 0.0
    %2500 = vmatpush1.msra.mxu0 0.0
    %2501 = vmatprep.subr.mxu0 0.0
    %2502 = vmatpush1.msra.mxu0 0.0
    %2503 = vmatprep.subr.mxu0 0.0
    %2504 = vmatpush1.msra.mxu0 0.0
    %2505 = vmatprep.subr.mxu0 0.0
    %2506 = vmatpush1.msra.mxu0 0.0
    %2507 = vmatprep.mubr.f32.mxu0 0.0
    %2508 = vmatmul.mubr.f32.gmra.mrb[0].mxu0 %v2332
    %v2509 = vpop.f32.mrb[0].mxu0
    %v2510 = vadd.f32 0.0, %v2509
    %v2511 = vpop.f32.mrb[0].mxu0
    %2512 = vmatprep.mubr.f32.mxu0 0.0
    %2513 = vmatmul.mubr.f32.gmra.mrb[0].mxu0 %v2337
    %v2514 = vpop.f32.mrb[0].mxu0
    %v2515 = vadd.f32 0.0, %v2514
    %v2516 = vpop.f32.mrb[0].mxu0
    %2517 = vmatprep.mubr.f32.mxu0 0.0
    %2518 = vmatmul.mubr.f32.gmra.mrb[0].mxu0 %v2342
    %v2519 = vpop.f32.mrb[0].mxu0
    %v2520 = vadd.f32 0.0, %v2519
    %v2521 = vpop.f32.mrb[0].mxu0
    %2522 = vmatprep.mubr.f32.mxu0 0.0
    %2523 = vmatmul.mubr.f32.gmra.mrb[0].mxu0 %v2347
    %v2524 = vpop.f32.mrb[0].mxu0
    %v2525 = vadd.f32 0.0, %v2524
    %v2526 = vpop.f32.mrb[0].mxu0
    %2527 = vdwg.mxu0
    %v2528 = vsub.f32 %v2510, %v2249
    %v2529 = vsub.f32 %v2515, %v2250
    %v2530 = vsub.f32 %v2520, %v2251
    %v2531 = vsub.f32 %v2525, %v2252
    %v2532 = vadd.f32 %v2528, %v565
    %v2533 = vadd.f32 %v2529, %v565
    %v2534 = vadd.f32 %v2530, %v565
    %v2535 = vadd.f32 %v2531, %v565
    %v2536 = vmax.f32 %v2439, %v2532
    %v2537 = vmax.f32 %v2440, %v2533
    %v2538 = vmax.f32 %v2441, %v2534
    %v2539 = vmax.f32 %v2442, %v2535
    %2540 = vmatprep.subr.mxu0 0.0
    %2541 = vmatpush1.msra.mxu0 %v223
    %2542 = vmatprep.subr.mxu0 0.0
    %2543 = vmatpush1.msra.mxu0 %v224
    %2544 = vmatprep.subr.mxu0 0.0
    %2545 = vmatpush1.msra.mxu0 %v225
    %2546 = vmatprep.subr.mxu0 0.0
    %2547 = vmatpush1.msra.mxu0 %v226
    %2548 = vmatprep.subr.mxu0 0.0
    %2549 = vmatpush1.msra.mxu0 %v227
    %2550 = vmatprep.subr.mxu0 0.0
    %2551 = vmatpush1.msra.mxu0 %v228
    %2552 = vmatprep.subr.mxu0 0.0
    %2553 = vmatpush1.msra.mxu0 %v229
    %2554 = vmatprep.subr.mxu0 0.0
    %2555 = vmatpush1.msra.mxu0 %v230
    %2556 = vmatprep.subr.mxu0 0.0
    %2557 = vmatpush1.msra.mxu0 %v231
    %2558 = vmatprep.subr.mxu0 0.0
    %2559 = vmatpush1.msra.mxu0 %v232
    %2560 = vmatprep.subr.mxu0 0.0
    %2561 = vmatpush1.msra.mxu0 %v233
    %2562 = vmatprep.subr.mxu0 0.0
    %2563 = vmatpush1.msra.mxu0 %v234
    %2564 = vmatprep.subr.mxu0 0.0
    %2565 = vmatpush1.msra.mxu0 %v235
    %2566 = vmatprep.subr.mxu0 0.0
    %2567 = vmatpush1.msra.mxu0 %v236
    %2568 = vmatprep.subr.mxu0 0.0
    %2569 = vmatpush1.msra.mxu0 %v237
    %2570 = vmatprep.subr.mxu0 0.0
    %2571 = vmatpush1.msra.mxu0 %v238
    %2572 = vmatprep.subr.mxu0 0.0
    %2573 = vmatpush1.msra.mxu0 0.0
    %2574 = vmatprep.subr.mxu0 0.0
    %2575 = vmatpush1.msra.mxu0 0.0
    %2576 = vmatprep.subr.mxu0 0.0
    %2577 = vmatpush1.msra.mxu0 0.0
    %2578 = vmatprep.subr.mxu0 0.0
    %2579 = vmatpush1.msra.mxu0 0.0
    %2580 = vmatprep.subr.mxu0 0.0
    %2581 = vmatpush1.msra.mxu0 0.0
    %2582 = vmatprep.subr.mxu0 0.0
    %2583 = vmatpush1.msra.mxu0 0.0
    %2584 = vmatprep.subr.mxu0 0.0
    %2585 = vmatpush1.msra.mxu0 0.0
    %2586 = vmatprep.subr.mxu0 0.0
    %2587 = vmatpush1.msra.mxu0 0.0
    %2588 = vmatprep.subr.mxu0 0.0
    %2589 = vmatpush1.msra.mxu0 0.0
    %2590 = vmatprep.subr.mxu0 0.0
    %2591 = vmatpush1.msra.mxu0 0.0
    %2592 = vmatprep.subr.mxu0 0.0
    %2593 = vmatpush1.msra.mxu0 0.0
    %2594 = vmatprep.subr.mxu0 0.0
    %2595 = vmatpush1.msra.mxu0 0.0
    %2596 = vmatprep.subr.mxu0 0.0
    %2597 = vmatpush1.msra.mxu0 0.0
    %2598 = vmatprep.subr.mxu0 0.0
    %2599 = vmatpush1.msra.mxu0 0.0
    %2600 = vmatprep.subr.mxu0 0.0
    %2601 = vmatpush1.msra.mxu0 0.0
    %2602 = vmatprep.subr.mxu0 0.0
    %2603 = vmatpush1.msra.mxu0 0.0
    %2604 = vmatprep.mubr.f32.mxu0 0.0
    %2605 = vmatmul.mubr.f32.gmra.mrb[0].mxu0 %v2332
    %v2606 = vpop.f32.mrb[0].mxu0
    %v2607 = vadd.f32 0.0, %v2606
    %v2608 = vpop.f32.mrb[0].mxu0
    %2609 = vmatprep.mubr.f32.mxu0 0.0
    %2610 = vmatmul.mubr.f32.gmra.mrb[0].mxu0 %v2337
    %v2611 = vpop.f32.mrb[0].mxu0
    %v2612 = vadd.f32 0.0, %v2611
    %v2613 = vpop.f32.mrb[0].mxu0
    %2614 = vmatprep.mubr.f32.mxu0 0.0
    %2615 = vmatmul.mubr.f32.gmra.mrb[0].mxu0 %v2342
    %v2616 = vpop.f32.mrb[0].mxu0
    %v2617 = vadd.f32 0.0, %v2616
    %v2618 = vpop.f32.mrb[0].mxu0
    %2619 = vmatprep.mubr.f32.mxu0 0.0
    %2620 = vmatmul.mubr.f32.gmra.mrb[0].mxu0 %v2347
    %v2621 = vpop.f32.mrb[0].mxu0
    %v2622 = vadd.f32 0.0, %v2621
    %v2623 = vpop.f32.mrb[0].mxu0
    %2624 = vdwg.mxu0
    %v2625 = vsub.f32 %v2607, %v2249
    %v2626 = vsub.f32 %v2612, %v2250
    %v2627 = vsub.f32 %v2617, %v2251
    %v2628 = vsub.f32 %v2622, %v2252
    %v2629 = vadd.f32 %v2625, %v650
    %v2630 = vadd.f32 %v2626, %v650
    %v2631 = vadd.f32 %v2627, %v650
    %v2632 = vadd.f32 %v2628, %v650
    %v2633 = vmax.f32 %v2536, %v2629
    %v2634 = vmax.f32 %v2537, %v2630
    %v2635 = vmax.f32 %v2538, %v2631
    %v2636 = vmax.f32 %v2539, %v2632
    %2637 = vmatprep.subr.mxu0 0.0
    %2638 = vmatpush1.msra.mxu0 %v275
    %2639 = vmatprep.subr.mxu0 0.0
    %2640 = vmatpush1.msra.mxu0 %v276
    %2641 = vmatprep.subr.mxu0 0.0
    %2642 = vmatpush1.msra.mxu0 %v277
    %2643 = vmatprep.subr.mxu0 0.0
    %2644 = vmatpush1.msra.mxu0 %v278
    %2645 = vmatprep.subr.mxu0 0.0
    %2646 = vmatpush1.msra.mxu0 %v279
    %2647 = vmatprep.subr.mxu0 0.0
    %2648 = vmatpush1.msra.mxu0 %v280
    %2649 = vmatprep.subr.mxu0 0.0
    %2650 = vmatpush1.msra.mxu0 %v281
    %2651 = vmatprep.subr.mxu0 0.0
    %2652 = vmatpush1.msra.mxu0 %v282
    %2653 = vmatprep.subr.mxu0 0.0
    %2654 = vmatpush1.msra.mxu0 %v283
    %2655 = vmatprep.subr.mxu0 0.0
    %2656 = vmatpush1.msra.mxu0 %v284
    %2657 = vmatprep.subr.mxu0 0.0
    %2658 = vmatpush1.msra.mxu0 %v285
    %2659 = vmatprep.subr.mxu0 0.0
    %2660 = vmatpush1.msra.mxu0 %v286
    %2661 = vmatprep.subr.mxu0 0.0
    %2662 = vmatpush1.msra.mxu0 %v287
    %2663 = vmatprep.subr.mxu0 0.0
    %2664 = vmatpush1.msra.mxu0 %v288
    %2665 = vmatprep.subr.mxu0 0.0
    %2666 = vmatpush1.msra.mxu0 %v289
    %2667 = vmatprep.subr.mxu0 0.0
    %2668 = vmatpush1.msra.mxu0 %v290
    %2669 = vmatprep.subr.mxu0 0.0
    %2670 = vmatpush1.msra.mxu0 0.0
    %2671 = vmatprep.subr.mxu0 0.0
    %2672 = vmatpush1.msra.mxu0 0.0
    %2673 = vmatprep.subr.mxu0 0.0
    %2674 = vmatpush1.msra.mxu0 0.0
    %2675 = vmatprep.subr.mxu0 0.0
    %2676 = vmatpush1.msra.mxu0 0.0
    %2677 = vmatprep.subr.mxu0 0.0
    %2678 = vmatpush1.msra.mxu0 0.0
    %2679 = vmatprep.subr.mxu0 0.0
    %2680 = vmatpush1.msra.mxu0 0.0
    %2681 = vmatprep.subr.mxu0 0.0
    %2682 = vmatpush1.msra.mxu0 0.0
    %2683 = vmatprep.subr.mxu0 0.0
    %2684 = vmatpush1.msra.mxu0 0.0
    %2685 = vmatprep.subr.mxu0 0.0
    %2686 = vmatpush1.msra.mxu0 0.0
    %2687 = vmatprep.subr.mxu0 0.0
    %2688 = vmatpush1.msra.mxu0 0.0
    %2689 = vmatprep.subr.mxu0 0.0
    %2690 = vmatpush1.msra.mxu0 0.0
    %2691 = vmatprep.subr.mxu0 0.0
    %2692 = vmatpush1.msra.mxu0 0.0
    %2693 = vmatprep.subr.mxu0 0.0
    %2694 = vmatpush1.msra.mxu0 0.0
    %2695 = vmatprep.subr.mxu0 0.0
    %2696 = vmatpush1.msra.mxu0 0.0
    %2697 = vmatprep.subr.mxu0 0.0
    %2698 = vmatpush1.msra.mxu0 0.0
    %2699 = vmatprep.subr.mxu0 0.0
    %2700 = vmatpush1.msra.mxu0 0.0
    %2701 = vmatprep.mubr.f32.mxu0 0.0
    %2702 = vmatmul.mubr.f32.gmra.mrb[0].mxu0 %v2332
    %v2703 = vpop.f32.mrb[0].mxu0
    %v2704 = vadd.f32 0.0, %v2703
    %v2705 = vpop.f32.mrb[0].mxu0
    %2706 = vmatprep.mubr.f32.mxu0 0.0
    %2707 = vmatmul.mubr.f32.gmra.mrb[0].mxu0 %v2337
    %v2708 = vpop.f32.mrb[0].mxu0
    %v2709 = vadd.f32 0.0, %v2708
    %v2710 = vpop.f32.mrb[0].mxu0
    %2711 = vmatprep.mubr.f32.mxu0 0.0
    %2712 = vmatmul.mubr.f32.gmra.mrb[0].mxu0 %v2342
    %v2713 = vpop.f32.mrb[0].mxu0
    %v2714 = vadd.f32 0.0, %v2713
    %v2715 = vpop.f32.mrb[0].mxu0
    %2716 = vmatprep.mubr.f32.mxu0 0.0
    %2717 = vmatmul.mubr.f32.gmra.mrb[0].mxu0 %v2347
    %v2718 = vpop.f32.mrb[0].mxu0
    %v2719 = vadd.f32 0.0, %v2718
    %v2720 = vpop.f32.mrb[0].mxu0
    %2721 = vdwg.mxu0
    %v2722 = vsub.f32 %v2704, %v2249
    %v2723 = vsub.f32 %v2709, %v2250
    %v2724 = vsub.f32 %v2714, %v2251
    %v2725 = vsub.f32 %v2719, %v2252
    %v2726 = vadd.f32 %v2722, %v735
    %v2727 = vadd.f32 %v2723, %v735
    %v2728 = vadd.f32 %v2724, %v735
    %v2729 = vadd.f32 %v2725, %v735
    %v2730 = vmax.f32 %v2633, %v2726
    %v2731 = vmax.f32 %v2634, %v2727
    %v2732 = vmax.f32 %v2635, %v2728
    %v2733 = vmax.f32 %v2636, %v2729
    %2734 = vmatprep.subr.mxu0 0.0
    %2735 = vmatpush1.msra.mxu0 %v327
    %2736 = vmatprep.subr.mxu0 0.0
    %2737 = vmatpush1.msra.mxu0 %v328
    %2738 = vmatprep.subr.mxu0 0.0
    %2739 = vmatpush1.msra.mxu0 %v329
    %2740 = vmatprep.subr.mxu0 0.0
    %2741 = vmatpush1.msra.mxu0 %v330
    %2742 = vmatprep.subr.mxu0 0.0
    %2743 = vmatpush1.msra.mxu0 %v331
    %2744 = vmatprep.subr.mxu0 0.0
    %2745 = vmatpush1.msra.mxu0 %v332
    %2746 = vmatprep.subr.mxu0 0.0
    %2747 = vmatpush1.msra.mxu0 %v333
    %2748 = vmatprep.subr.mxu0 0.0
    %2749 = vmatpush1.msra.mxu0 %v334
    %2750 = vmatprep.subr.mxu0 0.0
    %2751 = vmatpush1.msra.mxu0 %v335
    %2752 = vmatprep.subr.mxu0 0.0
    %2753 = vmatpush1.msra.mxu0 %v336
    %2754 = vmatprep.subr.mxu0 0.0
    %2755 = vmatpush1.msra.mxu0 %v337
    %2756 = vmatprep.subr.mxu0 0.0
    %2757 = vmatpush1.msra.mxu0 %v338
    %2758 = vmatprep.subr.mxu0 0.0
    %2759 = vmatpush1.msra.mxu0 %v339
    %2760 = vmatprep.subr.mxu0 0.0
    %2761 = vmatpush1.msra.mxu0 %v340
    %2762 = vmatprep.subr.mxu0 0.0
    %2763 = vmatpush1.msra.mxu0 %v341
    %2764 = vmatprep.subr.mxu0 0.0
    %2765 = vmatpush1.msra.mxu0 %v342
    %2766 = vmatprep.subr.mxu0 0.0
    %2767 = vmatpush1.msra.mxu0 0.0
    %2768 = vmatprep.subr.mxu0 0.0
    %2769 = vmatpush1.msra.mxu0 0.0
    %2770 = vmatprep.subr.mxu0 0.0
    %2771 = vmatpush1.msra.mxu0 0.0
    %2772 = vmatprep.subr.mxu0 0.0
    %2773 = vmatpush1.msra.mxu0 0.0
    %2774 = vmatprep.subr.mxu0 0.0
    %2775 = vmatpush1.msra.mxu0 0.0
    %2776 = vmatprep.subr.mxu0 0.0
    %2777 = vmatpush1.msra.mxu0 0.0
    %2778 = vmatprep.subr.mxu0 0.0
    %2779 = vmatpush1.msra.mxu0 0.0
    %2780 = vmatprep.subr.mxu0 0.0
    %2781 = vmatpush1.msra.mxu0 0.0
    %2782 = vmatprep.subr.mxu0 0.0
    %2783 = vmatpush1.msra.mxu0 0.0
    %2784 = vmatprep.subr.mxu0 0.0
    %2785 = vmatpush1.msra.mxu0 0.0
    %2786 = vmatprep.subr.mxu0 0.0
    %2787 = vmatpush1.msra.mxu0 0.0
    %2788 = vmatprep.subr.mxu0 0.0
    %2789 = vmatpush1.msra.mxu0 0.0
    %2790 = vmatprep.subr.mxu0 0.0
    %2791 = vmatpush1.msra.mxu0 0.0
    %2792 = vmatprep.subr.mxu0 0.0
    %2793 = vmatpush1.msra.mxu0 0.0
    %2794 = vmatprep.subr.mxu0 0.0
    %2795 = vmatpush1.msra.mxu0 0.0
    %2796 = vmatprep.subr.mxu0 0.0
    %2797 = vmatpush1.msra.mxu0 0.0
    %2798 = vmatprep.mubr.f32.mxu0 0.0
    %2799 = vmatmul.mubr.f32.gmra.mrb[0].mxu0 %v2332
    %v2800 = vpop.f32.mrb[0].mxu0
    %v2801 = vadd.f32 0.0, %v2800
    %v2802 = vpop.f32.mrb[0].mxu0
    %2803 = vmatprep.mubr.f32.mxu0 0.0
    %2804 = vmatmul.mubr.f32.gmra.mrb[0].mxu0 %v2337
    %v2805 = vpop.f32.mrb[0].mxu0
    %v2806 = vadd.f32 0.0, %v2805
    %v2807 = vpop.f32.mrb[0].mxu0
    %2808 = vmatprep.mubr.f32.mxu0 0.0
    %2809 = vmatmul.mubr.f32.gmra.mrb[0].mxu0 %v2342
    %v2810 = vpop.f32.mrb[0].mxu0
    %v2811 = vadd.f32 0.0, %v2810
    %v2812 = vpop.f32.mrb[0].mxu0
    %2813 = vmatprep.mubr.f32.mxu0 0.0
    %2814 = vmatmul.mubr.f32.gmra.mrb[0].mxu0 %v2347
    %v2815 = vpop.f32.mrb[0].mxu0
    %v2816 = vadd.f32 0.0, %v2815
    %v2817 = vpop.f32.mrb[0].mxu0
    %2818 = vdwg.mxu0
    %v2819 = vsub.f32 %v2801, %v2249
    %v2820 = vsub.f32 %v2806, %v2250
    %v2821 = vsub.f32 %v2811, %v2251
    %v2822 = vsub.f32 %v2816, %v2252
    %v2823 = vadd.f32 %v2819, %v820
    %v2824 = vadd.f32 %v2820, %v820
    %v2825 = vadd.f32 %v2821, %v820
    %v2826 = vadd.f32 %v2822, %v820
    %v2827 = vmax.f32 %v2730, %v2823
    %v2828 = vmax.f32 %v2731, %v2824
    %v2829 = vmax.f32 %v2732, %v2825
    %v2830 = vmax.f32 %v2733, %v2826
    %vm2831 = vcmp.gt.f32.partialorder %v2827, -1e+29
    %vm2832 = vcmp.gt.f32.partialorder %v2828, -1e+29
    %vm2833 = vcmp.gt.f32.partialorder %v2829, -1e+29
    %vm2834 = vcmp.gt.f32.partialorder %v2830, -1e+29
    %v2835 = vsel %vm2831, %v2827, 0.0
    %v2836 = vsel %vm2832, %v2828, 0.0
    %v2837 = vsel %vm2833, %v2829, 0.0
    %v2838 = vsel %vm2834, %v2830, 0.0
    %2840 = vset.pattern.permute.xlu0 0
    %2841 = vperm.xlu0 %2840, %v2201
    %v2842 = vpop.permute.xlu0 %2841
    %2845 = vset.pattern.permute.xlu0 0
    %2846 = vperm.xlu0 %2845, %v2202
    %v2847 = vpop.permute.xlu0 %2846
    %2850 = vset.pattern.permute.xlu0 0
    %2851 = vperm.xlu0 %2850, %v2203
    %v2852 = vpop.permute.xlu0 %2851
    %2855 = vset.pattern.permute.xlu0 0
    %2856 = vperm.xlu0 %2855, %v2204
    %v2857 = vpop.permute.xlu0 %2856
    %v2859 = vadd.f32 %v2835, %v2842
    %v2860 = vadd.f32 %v2836, %v2847
    %v2861 = vadd.f32 %v2837, %v2852
    %v2862 = vadd.f32 %v2838, %v2857
    %v2863 = vmax.f32 %v2859, 0.0
    %v2864 = vmax.f32 %v2860, 0.0
    %v2865 = vmax.f32 %v2861, 0.0
    %v2866 = vmax.f32 %v2862, 0.0
    %v2867 = vld [vmem:[%s4] sm:$0x1f]
    %v2868 = vld [vmem:[%s4 + $0x8] sm:$0x1f]
    %v2869 = vld [vmem:[%s5] sm:$0x1f]
    %v2870 = vld [vmem:[%s5 + $0x8] sm:$0x1f]
    %v2871 = vlaneseq
    %v2872 = vshrl.u32 %v2871, 7
    %v2873 = vsub.s32 0, %v2872
    %v2874 = vrot.slane %v2867, %v2873
    %v2875 = vlaneseq
    %v2876 = vshrl.u32 %v2875, 7
    %v2877 = vsub.s32 0, %v2876
    %v2878 = vrot.slane %v2868, %v2877
    %vm2879 = vcmp.eq.s32.totalorder %v67, %v2874
    %vm2880 = vcmp.eq.s32.totalorder %v67, %v2878
    %vm2881 = vcmp.eq.s32.totalorder %v68, %v2874
    %vm2882 = vcmp.eq.s32.totalorder %v68, %v2878
    %vm2883 = vcmp.eq.s32.totalorder %v69, %v2874
    %vm2884 = vcmp.eq.s32.totalorder %v69, %v2878
    %vm2885 = vcmp.eq.s32.totalorder %v70, %v2874
    %vm2886 = vcmp.eq.s32.totalorder %v70, %v2878
    %vm2887 = vcmp.eq.s32.totalorder %v71, %v2874
    %vm2888 = vcmp.eq.s32.totalorder %v71, %v2878
    %vm2889 = vcmp.eq.s32.totalorder %v72, %v2874
    %vm2890 = vcmp.eq.s32.totalorder %v72, %v2878
    %vm2891 = vcmp.eq.s32.totalorder %v73, %v2874
    %vm2892 = vcmp.eq.s32.totalorder %v73, %v2878
    %vm2893 = vcmp.eq.s32.totalorder %v74, %v2874
    %vm2894 = vcmp.eq.s32.totalorder %v74, %v2878
    %vm2895 = vcmp.eq.s32.totalorder %v75, %v2874
    %vm2896 = vcmp.eq.s32.totalorder %v75, %v2878
    %vm2897 = vcmp.eq.s32.totalorder %v76, %v2874
    %vm2898 = vcmp.eq.s32.totalorder %v76, %v2878
    %vm2899 = vcmp.eq.s32.totalorder %v77, %v2874
    %vm2900 = vcmp.eq.s32.totalorder %v77, %v2878
    %vm2901 = vcmp.eq.s32.totalorder %v78, %v2874
    %vm2902 = vcmp.eq.s32.totalorder %v78, %v2878
    %vm2903 = vcmp.eq.s32.totalorder %v79, %v2874
    %vm2904 = vcmp.eq.s32.totalorder %v79, %v2878
    %vm2905 = vcmp.eq.s32.totalorder %v80, %v2874
    %vm2906 = vcmp.eq.s32.totalorder %v80, %v2878
    %vm2907 = vcmp.eq.s32.totalorder %v81, %v2874
    %vm2908 = vcmp.eq.s32.totalorder %v81, %v2878
    %vm2909 = vcmp.eq.s32.totalorder %v82, %v2874
    %vm2910 = vcmp.eq.s32.totalorder %v82, %v2878
    %v2911 = vsel %vm2879, 1, 0
    %v2912 = vsel %vm2880, 1, 0
    %v2913 = vsel %vm2881, 1, 0
    %v2914 = vsel %vm2882, 1, 0
    %v2915 = vsel %vm2883, 1, 0
    %v2916 = vsel %vm2884, 1, 0
    %v2917 = vsel %vm2885, 1, 0
    %v2918 = vsel %vm2886, 1, 0
    %v2919 = vsel %vm2887, 1, 0
    %v2920 = vsel %vm2888, 1, 0
    %v2921 = vsel %vm2889, 1, 0
    %v2922 = vsel %vm2890, 1, 0
    %v2923 = vsel %vm2891, 1, 0
    %v2924 = vsel %vm2892, 1, 0
    %v2925 = vsel %vm2893, 1, 0
    %v2926 = vsel %vm2894, 1, 0
    %v2927 = vsel %vm2895, 1, 0
    %v2928 = vsel %vm2896, 1, 0
    %v2929 = vsel %vm2897, 1, 0
    %v2930 = vsel %vm2898, 1, 0
    %v2931 = vsel %vm2899, 1, 0
    %v2932 = vsel %vm2900, 1, 0
    %v2933 = vsel %vm2901, 1, 0
    %v2934 = vsel %vm2902, 1, 0
    %v2935 = vsel %vm2903, 1, 0
    %v2936 = vsel %vm2904, 1, 0
    %v2937 = vsel %vm2905, 1, 0
    %v2938 = vsel %vm2906, 1, 0
    %v2939 = vsel %vm2907, 1, 0
    %v2940 = vsel %vm2908, 1, 0
    %v2941 = vsel %vm2909, 1, 0
    %v2942 = vsel %vm2910, 1, 0
    %v2943 = vcvt.s32.f32 %v2911
    %v2944 = vcvt.s32.f32 %v2912
    %v2945 = vcvt.s32.f32 %v2913
    %v2946 = vcvt.s32.f32 %v2914
    %v2947 = vcvt.s32.f32 %v2915
    %v2948 = vcvt.s32.f32 %v2916
    %v2949 = vcvt.s32.f32 %v2917
    %v2950 = vcvt.s32.f32 %v2918
    %v2951 = vcvt.s32.f32 %v2919
    %v2952 = vcvt.s32.f32 %v2920
    %v2953 = vcvt.s32.f32 %v2921
    %v2954 = vcvt.s32.f32 %v2922
    %v2955 = vcvt.s32.f32 %v2923
    %v2956 = vcvt.s32.f32 %v2924
    %v2957 = vcvt.s32.f32 %v2925
    %v2958 = vcvt.s32.f32 %v2926
    %v2959 = vcvt.s32.f32 %v2927
    %v2960 = vcvt.s32.f32 %v2928
    %v2961 = vcvt.s32.f32 %v2929
    %v2962 = vcvt.s32.f32 %v2930
    %v2963 = vcvt.s32.f32 %v2931
    %v2964 = vcvt.s32.f32 %v2932
    %v2965 = vcvt.s32.f32 %v2933
    %v2966 = vcvt.s32.f32 %v2934
    %v2967 = vcvt.s32.f32 %v2935
    %v2968 = vcvt.s32.f32 %v2936
    %v2969 = vcvt.s32.f32 %v2937
    %v2970 = vcvt.s32.f32 %v2938
    %v2971 = vcvt.s32.f32 %v2939
    %v2972 = vcvt.s32.f32 %v2940
    %v2973 = vcvt.s32.f32 %v2941
    %v2974 = vcvt.s32.f32 %v2942
    %v2975 = vlaneseq
    %v2976 = vshrl.u32 %v2975, 7
    %v2977 = vsub.s32 0, %v2976
    %v2978 = vrot.slane %v2869, %v2977
    %v2979 = vlaneseq
    %v2980 = vshrl.u32 %v2979, 7
    %v2981 = vsub.s32 0, %v2980
    %v2982 = vrot.slane %v2870, %v2981
    %2983 = vmatprep.subr.mxu0 %v2944
    %2984 = vmatpush1.msra.mxu0 %v2943
    %2985 = vmatprep.subr.mxu0 %v2946
    %2986 = vmatpush1.msra.mxu0 %v2945
    %2987 = vmatprep.subr.mxu0 %v2948
    %2988 = vmatpush1.msra.mxu0 %v2947
    %2989 = vmatprep.subr.mxu0 %v2950
    %2990 = vmatpush1.msra.mxu0 %v2949
    %2991 = vmatprep.subr.mxu0 %v2952
    %2992 = vmatpush1.msra.mxu0 %v2951
    %2993 = vmatprep.subr.mxu0 %v2954
    %2994 = vmatpush1.msra.mxu0 %v2953
    %2995 = vmatprep.subr.mxu0 %v2956
    %2996 = vmatpush1.msra.mxu0 %v2955
    %2997 = vmatprep.subr.mxu0 %v2958
    %2998 = vmatpush1.msra.mxu0 %v2957
    %2999 = vmatprep.subr.mxu0 %v2960
    %3000 = vmatpush1.msra.mxu0 %v2959
    %3001 = vmatprep.subr.mxu0 %v2962
    %3002 = vmatpush1.msra.mxu0 %v2961
    %3003 = vmatprep.subr.mxu0 %v2964
    %3004 = vmatpush1.msra.mxu0 %v2963
    %3005 = vmatprep.subr.mxu0 %v2966
    %3006 = vmatpush1.msra.mxu0 %v2965
    %3007 = vmatprep.subr.mxu0 %v2968
    %3008 = vmatpush1.msra.mxu0 %v2967
    %3009 = vmatprep.subr.mxu0 %v2970
    %3010 = vmatpush1.msra.mxu0 %v2969
    %3011 = vmatprep.subr.mxu0 %v2972
    %3012 = vmatpush1.msra.mxu0 %v2971
    %3013 = vmatprep.subr.mxu0 %v2974
    %3014 = vmatpush1.msra.mxu0 %v2973
    %3015 = vmatprep.subr.mxu0 0.0
    %3016 = vmatpush1.msra.mxu0 0.0
    %3017 = vmatprep.subr.mxu0 0.0
    %3018 = vmatpush1.msra.mxu0 0.0
    %3019 = vmatprep.subr.mxu0 0.0
    %3020 = vmatpush1.msra.mxu0 0.0
    %3021 = vmatprep.subr.mxu0 0.0
    %3022 = vmatpush1.msra.mxu0 0.0
    %3023 = vmatprep.subr.mxu0 0.0
    %3024 = vmatpush1.msra.mxu0 0.0
    %3025 = vmatprep.subr.mxu0 0.0
    %3026 = vmatpush1.msra.mxu0 0.0
    %3027 = vmatprep.subr.mxu0 0.0
    %3028 = vmatpush1.msra.mxu0 0.0
    %3029 = vmatprep.subr.mxu0 0.0
    %3030 = vmatpush1.msra.mxu0 0.0
    %3031 = vmatprep.subr.mxu0 0.0
    %3032 = vmatpush1.msra.mxu0 0.0
    %3033 = vmatprep.subr.mxu0 0.0
    %3034 = vmatpush1.msra.mxu0 0.0
    %3035 = vmatprep.subr.mxu0 0.0
    %3036 = vmatpush1.msra.mxu0 0.0
    %3037 = vmatprep.subr.mxu0 0.0
    %3038 = vmatpush1.msra.mxu0 0.0
    %3039 = vmatprep.subr.mxu0 0.0
    %3040 = vmatpush1.msra.mxu0 0.0
    %3041 = vmatprep.subr.mxu0 0.0
    %3042 = vmatpush1.msra.mxu0 0.0
    %3043 = vmatprep.subr.mxu0 0.0
    %3044 = vmatpush1.msra.mxu0 0.0
    %3045 = vmatprep.subr.mxu0 0.0
    %3046 = vmatpush1.msra.mxu0 0.0
    %3047 = vmatprep.mubr.f32.mxu0 0.0
    %3048 = vmatmul.mubr.f32.gmra.mrb[0].mxu0 %v2863
    %v3049 = vpop.f32.mrb[0].mxu0
    %v3050 = vadd.f32 %v2978, %v3049
    %v3051 = vpop.f32.mrb[0].mxu0
    %v3052 = vadd.f32 %v2982, %v3051
    %3053 = vmatprep.mubr.f32.mxu0 0.0
    %3054 = vmatmul.mubr.f32.gmra.mrb[0].mxu0 %v2864
    %v3055 = vpop.f32.mrb[0].mxu0
    %v3056 = vadd.f32 %v2978, %v3055
    %v3057 = vpop.f32.mrb[0].mxu0
    %v3058 = vadd.f32 %v2982, %v3057
    %3059 = vmatprep.mubr.f32.mxu0 0.0
    %3060 = vmatmul.mubr.f32.gmra.mrb[0].mxu0 %v2865
    %v3061 = vpop.f32.mrb[0].mxu0
    %v3062 = vadd.f32 %v2978, %v3061
    %v3063 = vpop.f32.mrb[0].mxu0
    %v3064 = vadd.f32 %v2982, %v3063
    %3065 = vmatprep.mubr.f32.mxu0 0.0
    %3066 = vmatmul.mubr.f32.gmra.mrb[0].mxu0 %v2866
    %v3067 = vpop.f32.mrb[0].mxu0
    %v3068 = vadd.f32 %v2978, %v3067
    %v3069 = vpop.f32.mrb[0].mxu0
    %v3070 = vadd.f32 %v2982, %v3069
    %3071 = vdwg.mxu0
    %v3072 = vlaneseq
    %v3073 = vshrl.u32 %v3072, 7
    %v3074 = vsub.s32 1, %v3073
    %v3075 = vrot.slane %v2867, %v3074
    %v3076 = vlaneseq
    %v3077 = vshrl.u32 %v3076, 7
    %v3078 = vsub.s32 1, %v3077
    %v3079 = vrot.slane %v2868, %v3078
    %vm3080 = vcmp.eq.s32.totalorder %v67, %v3075
    %vm3081 = vcmp.eq.s32.totalorder %v67, %v3079
    %vm3082 = vcmp.eq.s32.totalorder %v68, %v3075
    %vm3083 = vcmp.eq.s32.totalorder %v68, %v3079
    %vm3084 = vcmp.eq.s32.totalorder %v69, %v3075
    %vm3085 = vcmp.eq.s32.totalorder %v69, %v3079
    %vm3086 = vcmp.eq.s32.totalorder %v70, %v3075
    %vm3087 = vcmp.eq.s32.totalorder %v70, %v3079
    %vm3088 = vcmp.eq.s32.totalorder %v71, %v3075
    %vm3089 = vcmp.eq.s32.totalorder %v71, %v3079
    %vm3090 = vcmp.eq.s32.totalorder %v72, %v3075
    %vm3091 = vcmp.eq.s32.totalorder %v72, %v3079
    %vm3092 = vcmp.eq.s32.totalorder %v73, %v3075
    %vm3093 = vcmp.eq.s32.totalorder %v73, %v3079
    %vm3094 = vcmp.eq.s32.totalorder %v74, %v3075
    %vm3095 = vcmp.eq.s32.totalorder %v74, %v3079
    %vm3096 = vcmp.eq.s32.totalorder %v75, %v3075
    %vm3097 = vcmp.eq.s32.totalorder %v75, %v3079
    %vm3098 = vcmp.eq.s32.totalorder %v76, %v3075
    %vm3099 = vcmp.eq.s32.totalorder %v76, %v3079
    %vm3100 = vcmp.eq.s32.totalorder %v77, %v3075
    %vm3101 = vcmp.eq.s32.totalorder %v77, %v3079
    %vm3102 = vcmp.eq.s32.totalorder %v78, %v3075
    %vm3103 = vcmp.eq.s32.totalorder %v78, %v3079
    %vm3104 = vcmp.eq.s32.totalorder %v79, %v3075
    %vm3105 = vcmp.eq.s32.totalorder %v79, %v3079
    %vm3106 = vcmp.eq.s32.totalorder %v80, %v3075
    %vm3107 = vcmp.eq.s32.totalorder %v80, %v3079
    %vm3108 = vcmp.eq.s32.totalorder %v81, %v3075
    %vm3109 = vcmp.eq.s32.totalorder %v81, %v3079
    %vm3110 = vcmp.eq.s32.totalorder %v82, %v3075
    %vm3111 = vcmp.eq.s32.totalorder %v82, %v3079
    %v3112 = vsel %vm3080, 1, 0
    %v3113 = vsel %vm3081, 1, 0
    %v3114 = vsel %vm3082, 1, 0
    %v3115 = vsel %vm3083, 1, 0
    %v3116 = vsel %vm3084, 1, 0
    %v3117 = vsel %vm3085, 1, 0
    %v3118 = vsel %vm3086, 1, 0
    %v3119 = vsel %vm3087, 1, 0
    %v3120 = vsel %vm3088, 1, 0
    %v3121 = vsel %vm3089, 1, 0
    %v3122 = vsel %vm3090, 1, 0
    %v3123 = vsel %vm3091, 1, 0
    %v3124 = vsel %vm3092, 1, 0
    %v3125 = vsel %vm3093, 1, 0
    %v3126 = vsel %vm3094, 1, 0
    %v3127 = vsel %vm3095, 1, 0
    %v3128 = vsel %vm3096, 1, 0
    %v3129 = vsel %vm3097, 1, 0
    %v3130 = vsel %vm3098, 1, 0
    %v3131 = vsel %vm3099, 1, 0
    %v3132 = vsel %vm3100, 1, 0
    %v3133 = vsel %vm3101, 1, 0
    %v3134 = vsel %vm3102, 1, 0
    %v3135 = vsel %vm3103, 1, 0
    %v3136 = vsel %vm3104, 1, 0
    %v3137 = vsel %vm3105, 1, 0
    %v3138 = vsel %vm3106, 1, 0
    %v3139 = vsel %vm3107, 1, 0
    %v3140 = vsel %vm3108, 1, 0
    %v3141 = vsel %vm3109, 1, 0
    %v3142 = vsel %vm3110, 1, 0
    %v3143 = vsel %vm3111, 1, 0
    %v3144 = vcvt.s32.f32 %v3112
    %v3145 = vcvt.s32.f32 %v3113
    %v3146 = vcvt.s32.f32 %v3114
    %v3147 = vcvt.s32.f32 %v3115
    %v3148 = vcvt.s32.f32 %v3116
    %v3149 = vcvt.s32.f32 %v3117
    %v3150 = vcvt.s32.f32 %v3118
    %v3151 = vcvt.s32.f32 %v3119
    %v3152 = vcvt.s32.f32 %v3120
    %v3153 = vcvt.s32.f32 %v3121
    %v3154 = vcvt.s32.f32 %v3122
    %v3155 = vcvt.s32.f32 %v3123
    %v3156 = vcvt.s32.f32 %v3124
    %v3157 = vcvt.s32.f32 %v3125
    %v3158 = vcvt.s32.f32 %v3126
    %v3159 = vcvt.s32.f32 %v3127
    %v3160 = vcvt.s32.f32 %v3128
    %v3161 = vcvt.s32.f32 %v3129
    %v3162 = vcvt.s32.f32 %v3130
    %v3163 = vcvt.s32.f32 %v3131
    %v3164 = vcvt.s32.f32 %v3132
    %v3165 = vcvt.s32.f32 %v3133
    %v3166 = vcvt.s32.f32 %v3134
    %v3167 = vcvt.s32.f32 %v3135
    %v3168 = vcvt.s32.f32 %v3136
    %v3169 = vcvt.s32.f32 %v3137
    %v3170 = vcvt.s32.f32 %v3138
    %v3171 = vcvt.s32.f32 %v3139
    %v3172 = vcvt.s32.f32 %v3140
    %v3173 = vcvt.s32.f32 %v3141
    %v3174 = vcvt.s32.f32 %v3142
    %v3175 = vcvt.s32.f32 %v3143
    %v3176 = vlaneseq
    %v3177 = vshrl.u32 %v3176, 7
    %v3178 = vsub.s32 1, %v3177
    %v3179 = vrot.slane %v2869, %v3178
    %v3180 = vlaneseq
    %v3181 = vshrl.u32 %v3180, 7
    %v3182 = vsub.s32 1, %v3181
    %v3183 = vrot.slane %v2870, %v3182
    %3184 = vmatprep.subr.mxu0 %v3145
    %3185 = vmatpush1.msra.mxu0 %v3144
    %3186 = vmatprep.subr.mxu0 %v3147
    %3187 = vmatpush1.msra.mxu0 %v3146
    %3188 = vmatprep.subr.mxu0 %v3149
    %3189 = vmatpush1.msra.mxu0 %v3148
    %3190 = vmatprep.subr.mxu0 %v3151
    %3191 = vmatpush1.msra.mxu0 %v3150
    %3192 = vmatprep.subr.mxu0 %v3153
    %3193 = vmatpush1.msra.mxu0 %v3152
    %3194 = vmatprep.subr.mxu0 %v3155
    %3195 = vmatpush1.msra.mxu0 %v3154
    %3196 = vmatprep.subr.mxu0 %v3157
    %3197 = vmatpush1.msra.mxu0 %v3156
    %3198 = vmatprep.subr.mxu0 %v3159
    %3199 = vmatpush1.msra.mxu0 %v3158
    %3200 = vmatprep.subr.mxu0 %v3161
    %3201 = vmatpush1.msra.mxu0 %v3160
    %3202 = vmatprep.subr.mxu0 %v3163
    %3203 = vmatpush1.msra.mxu0 %v3162
    %3204 = vmatprep.subr.mxu0 %v3165
    %3205 = vmatpush1.msra.mxu0 %v3164
    %3206 = vmatprep.subr.mxu0 %v3167
    %3207 = vmatpush1.msra.mxu0 %v3166
    %3208 = vmatprep.subr.mxu0 %v3169
    %3209 = vmatpush1.msra.mxu0 %v3168
    %3210 = vmatprep.subr.mxu0 %v3171
    %3211 = vmatpush1.msra.mxu0 %v3170
    %3212 = vmatprep.subr.mxu0 %v3173
    %3213 = vmatpush1.msra.mxu0 %v3172
    %3214 = vmatprep.subr.mxu0 %v3175
    %3215 = vmatpush1.msra.mxu0 %v3174
    %3216 = vmatprep.subr.mxu0 0.0
    %3217 = vmatpush1.msra.mxu0 0.0
    %3218 = vmatprep.subr.mxu0 0.0
    %3219 = vmatpush1.msra.mxu0 0.0
    %3220 = vmatprep.subr.mxu0 0.0
    %3221 = vmatpush1.msra.mxu0 0.0
    %3222 = vmatprep.subr.mxu0 0.0
    %3223 = vmatpush1.msra.mxu0 0.0
    %3224 = vmatprep.subr.mxu0 0.0
    %3225 = vmatpush1.msra.mxu0 0.0
    %3226 = vmatprep.subr.mxu0 0.0
    %3227 = vmatpush1.msra.mxu0 0.0
    %3228 = vmatprep.subr.mxu0 0.0
    %3229 = vmatpush1.msra.mxu0 0.0
    %3230 = vmatprep.subr.mxu0 0.0
    %3231 = vmatpush1.msra.mxu0 0.0
    %3232 = vmatprep.subr.mxu0 0.0
    %3233 = vmatpush1.msra.mxu0 0.0
    %3234 = vmatprep.subr.mxu0 0.0
    %3235 = vmatpush1.msra.mxu0 0.0
    %3236 = vmatprep.subr.mxu0 0.0
    %3237 = vmatpush1.msra.mxu0 0.0
    %3238 = vmatprep.subr.mxu0 0.0
    %3239 = vmatpush1.msra.mxu0 0.0
    %3240 = vmatprep.subr.mxu0 0.0
    %3241 = vmatpush1.msra.mxu0 0.0
    %3242 = vmatprep.subr.mxu0 0.0
    %3243 = vmatpush1.msra.mxu0 0.0
    %3244 = vmatprep.subr.mxu0 0.0
    %3245 = vmatpush1.msra.mxu0 0.0
    %3246 = vmatprep.subr.mxu0 0.0
    %3247 = vmatpush1.msra.mxu0 0.0
    %3248 = vmatprep.mubr.f32.mxu0 0.0
    %3249 = vmatmul.mubr.f32.gmra.mrb[0].mxu0 %v2863
    %v3250 = vpop.f32.mrb[0].mxu0
    %v3251 = vadd.f32 %v3179, %v3250
    %v3252 = vpop.f32.mrb[0].mxu0
    %v3253 = vadd.f32 %v3183, %v3252
    %3254 = vmatprep.mubr.f32.mxu0 0.0
    %3255 = vmatmul.mubr.f32.gmra.mrb[0].mxu0 %v2864
    %v3256 = vpop.f32.mrb[0].mxu0
    %v3257 = vadd.f32 %v3179, %v3256
    %v3258 = vpop.f32.mrb[0].mxu0
    %v3259 = vadd.f32 %v3183, %v3258
    %3260 = vmatprep.mubr.f32.mxu0 0.0
    %3261 = vmatmul.mubr.f32.gmra.mrb[0].mxu0 %v2865
    %v3262 = vpop.f32.mrb[0].mxu0
    %v3263 = vadd.f32 %v3179, %v3262
    %v3264 = vpop.f32.mrb[0].mxu0
    %v3265 = vadd.f32 %v3183, %v3264
    %3266 = vmatprep.mubr.f32.mxu0 0.0
    %3267 = vmatmul.mubr.f32.gmra.mrb[0].mxu0 %v2866
    %v3268 = vpop.f32.mrb[0].mxu0
    %v3269 = vadd.f32 %v3179, %v3268
    %v3270 = vpop.f32.mrb[0].mxu0
    %v3271 = vadd.f32 %v3183, %v3270
    %3272 = vdwg.mxu0
    %v3273 = vmax.f32 %v3050, %v3251
    %v3274 = vmax.f32 %v3052, %v3253
    %v3275 = vmax.f32 %v3056, %v3257
    %v3276 = vmax.f32 %v3058, %v3259
    %v3277 = vmax.f32 %v3062, %v3263
    %v3278 = vmax.f32 %v3064, %v3265
    %v3279 = vmax.f32 %v3068, %v3269
    %v3280 = vmax.f32 %v3070, %v3271
    %v3281 = vlaneseq
    %v3282 = vshrl.u32 %v3281, 7
    %v3283 = vsub.s32 2, %v3282
    %v3284 = vrot.slane %v2867, %v3283
    %v3285 = vlaneseq
    %v3286 = vshrl.u32 %v3285, 7
    %v3287 = vsub.s32 2, %v3286
    %v3288 = vrot.slane %v2868, %v3287
    %vm3289 = vcmp.eq.s32.totalorder %v67, %v3284
    %vm3290 = vcmp.eq.s32.totalorder %v67, %v3288
    %vm3291 = vcmp.eq.s32.totalorder %v68, %v3284
    %vm3292 = vcmp.eq.s32.totalorder %v68, %v3288
    %vm3293 = vcmp.eq.s32.totalorder %v69, %v3284
    %vm3294 = vcmp.eq.s32.totalorder %v69, %v3288
    %vm3295 = vcmp.eq.s32.totalorder %v70, %v3284
    %vm3296 = vcmp.eq.s32.totalorder %v70, %v3288
    %vm3297 = vcmp.eq.s32.totalorder %v71, %v3284
    %vm3298 = vcmp.eq.s32.totalorder %v71, %v3288
    %vm3299 = vcmp.eq.s32.totalorder %v72, %v3284
    %vm3300 = vcmp.eq.s32.totalorder %v72, %v3288
    %vm3301 = vcmp.eq.s32.totalorder %v73, %v3284
    %vm3302 = vcmp.eq.s32.totalorder %v73, %v3288
    %vm3303 = vcmp.eq.s32.totalorder %v74, %v3284
    %vm3304 = vcmp.eq.s32.totalorder %v74, %v3288
    %vm3305 = vcmp.eq.s32.totalorder %v75, %v3284
    %vm3306 = vcmp.eq.s32.totalorder %v75, %v3288
    %vm3307 = vcmp.eq.s32.totalorder %v76, %v3284
    %vm3308 = vcmp.eq.s32.totalorder %v76, %v3288
    %vm3309 = vcmp.eq.s32.totalorder %v77, %v3284
    %vm3310 = vcmp.eq.s32.totalorder %v77, %v3288
    %vm3311 = vcmp.eq.s32.totalorder %v78, %v3284
    %vm3312 = vcmp.eq.s32.totalorder %v78, %v3288
    %vm3313 = vcmp.eq.s32.totalorder %v79, %v3284
    %vm3314 = vcmp.eq.s32.totalorder %v79, %v3288
    %vm3315 = vcmp.eq.s32.totalorder %v80, %v3284
    %vm3316 = vcmp.eq.s32.totalorder %v80, %v3288
    %vm3317 = vcmp.eq.s32.totalorder %v81, %v3284
    %vm3318 = vcmp.eq.s32.totalorder %v81, %v3288
    %vm3319 = vcmp.eq.s32.totalorder %v82, %v3284
    %vm3320 = vcmp.eq.s32.totalorder %v82, %v3288
    %v3321 = vsel %vm3289, 1, 0
    %v3322 = vsel %vm3290, 1, 0
    %v3323 = vsel %vm3291, 1, 0
    %v3324 = vsel %vm3292, 1, 0
    %v3325 = vsel %vm3293, 1, 0
    %v3326 = vsel %vm3294, 1, 0
    %v3327 = vsel %vm3295, 1, 0
    %v3328 = vsel %vm3296, 1, 0
    %v3329 = vsel %vm3297, 1, 0
    %v3330 = vsel %vm3298, 1, 0
    %v3331 = vsel %vm3299, 1, 0
    %v3332 = vsel %vm3300, 1, 0
    %v3333 = vsel %vm3301, 1, 0
    %v3334 = vsel %vm3302, 1, 0
    %v3335 = vsel %vm3303, 1, 0
    %v3336 = vsel %vm3304, 1, 0
    %v3337 = vsel %vm3305, 1, 0
    %v3338 = vsel %vm3306, 1, 0
    %v3339 = vsel %vm3307, 1, 0
    %v3340 = vsel %vm3308, 1, 0
    %v3341 = vsel %vm3309, 1, 0
    %v3342 = vsel %vm3310, 1, 0
    %v3343 = vsel %vm3311, 1, 0
    %v3344 = vsel %vm3312, 1, 0
    %v3345 = vsel %vm3313, 1, 0
    %v3346 = vsel %vm3314, 1, 0
    %v3347 = vsel %vm3315, 1, 0
    %v3348 = vsel %vm3316, 1, 0
    %v3349 = vsel %vm3317, 1, 0
    %v3350 = vsel %vm3318, 1, 0
    %v3351 = vsel %vm3319, 1, 0
    %v3352 = vsel %vm3320, 1, 0
    %v3353 = vcvt.s32.f32 %v3321
    %v3354 = vcvt.s32.f32 %v3322
    %v3355 = vcvt.s32.f32 %v3323
    %v3356 = vcvt.s32.f32 %v3324
    %v3357 = vcvt.s32.f32 %v3325
    %v3358 = vcvt.s32.f32 %v3326
    %v3359 = vcvt.s32.f32 %v3327
    %v3360 = vcvt.s32.f32 %v3328
    %v3361 = vcvt.s32.f32 %v3329
    %v3362 = vcvt.s32.f32 %v3330
    %v3363 = vcvt.s32.f32 %v3331
    %v3364 = vcvt.s32.f32 %v3332
    %v3365 = vcvt.s32.f32 %v3333
    %v3366 = vcvt.s32.f32 %v3334
    %v3367 = vcvt.s32.f32 %v3335
    %v3368 = vcvt.s32.f32 %v3336
    %v3369 = vcvt.s32.f32 %v3337
    %v3370 = vcvt.s32.f32 %v3338
    %v3371 = vcvt.s32.f32 %v3339
    %v3372 = vcvt.s32.f32 %v3340
    %v3373 = vcvt.s32.f32 %v3341
    %v3374 = vcvt.s32.f32 %v3342
    %v3375 = vcvt.s32.f32 %v3343
    %v3376 = vcvt.s32.f32 %v3344
    %v3377 = vcvt.s32.f32 %v3345
    %v3378 = vcvt.s32.f32 %v3346
    %v3379 = vcvt.s32.f32 %v3347
    %v3380 = vcvt.s32.f32 %v3348
    %v3381 = vcvt.s32.f32 %v3349
    %v3382 = vcvt.s32.f32 %v3350
    %v3383 = vcvt.s32.f32 %v3351
    %v3384 = vcvt.s32.f32 %v3352
    %v3385 = vlaneseq
    %v3386 = vshrl.u32 %v3385, 7
    %v3387 = vsub.s32 2, %v3386
    %v3388 = vrot.slane %v2869, %v3387
    %v3389 = vlaneseq
    %v3390 = vshrl.u32 %v3389, 7
    %v3391 = vsub.s32 2, %v3390
    %v3392 = vrot.slane %v2870, %v3391
    %3393 = vmatprep.subr.mxu0 %v3354
    %3394 = vmatpush1.msra.mxu0 %v3353
    %3395 = vmatprep.subr.mxu0 %v3356
    %3396 = vmatpush1.msra.mxu0 %v3355
    %3397 = vmatprep.subr.mxu0 %v3358
    %3398 = vmatpush1.msra.mxu0 %v3357
    %3399 = vmatprep.subr.mxu0 %v3360
    %3400 = vmatpush1.msra.mxu0 %v3359
    %3401 = vmatprep.subr.mxu0 %v3362
    %3402 = vmatpush1.msra.mxu0 %v3361
    %3403 = vmatprep.subr.mxu0 %v3364
    %3404 = vmatpush1.msra.mxu0 %v3363
    %3405 = vmatprep.subr.mxu0 %v3366
    %3406 = vmatpush1.msra.mxu0 %v3365
    %3407 = vmatprep.subr.mxu0 %v3368
    %3408 = vmatpush1.msra.mxu0 %v3367
    %3409 = vmatprep.subr.mxu0 %v3370
    %3410 = vmatpush1.msra.mxu0 %v3369
    %3411 = vmatprep.subr.mxu0 %v3372
    %3412 = vmatpush1.msra.mxu0 %v3371
    %3413 = vmatprep.subr.mxu0 %v3374
    %3414 = vmatpush1.msra.mxu0 %v3373
    %3415 = vmatprep.subr.mxu0 %v3376
    %3416 = vmatpush1.msra.mxu0 %v3375
    %3417 = vmatprep.subr.mxu0 %v3378
    %3418 = vmatpush1.msra.mxu0 %v3377
    %3419 = vmatprep.subr.mxu0 %v3380
    %3420 = vmatpush1.msra.mxu0 %v3379
    %3421 = vmatprep.subr.mxu0 %v3382
    %3422 = vmatpush1.msra.mxu0 %v3381
    %3423 = vmatprep.subr.mxu0 %v3384
    %3424 = vmatpush1.msra.mxu0 %v3383
    %3425 = vmatprep.subr.mxu0 0.0
    %3426 = vmatpush1.msra.mxu0 0.0
    %3427 = vmatprep.subr.mxu0 0.0
    %3428 = vmatpush1.msra.mxu0 0.0
    %3429 = vmatprep.subr.mxu0 0.0
    %3430 = vmatpush1.msra.mxu0 0.0
    %3431 = vmatprep.subr.mxu0 0.0
    %3432 = vmatpush1.msra.mxu0 0.0
    %3433 = vmatprep.subr.mxu0 0.0
    %3434 = vmatpush1.msra.mxu0 0.0
    %3435 = vmatprep.subr.mxu0 0.0
    %3436 = vmatpush1.msra.mxu0 0.0
    %3437 = vmatprep.subr.mxu0 0.0
    %3438 = vmatpush1.msra.mxu0 0.0
    %3439 = vmatprep.subr.mxu0 0.0
    %3440 = vmatpush1.msra.mxu0 0.0
    %3441 = vmatprep.subr.mxu0 0.0
    %3442 = vmatpush1.msra.mxu0 0.0
    %3443 = vmatprep.subr.mxu0 0.0
    %3444 = vmatpush1.msra.mxu0 0.0
    %3445 = vmatprep.subr.mxu0 0.0
    %3446 = vmatpush1.msra.mxu0 0.0
    %3447 = vmatprep.subr.mxu0 0.0
    %3448 = vmatpush1.msra.mxu0 0.0
    %3449 = vmatprep.subr.mxu0 0.0
    %3450 = vmatpush1.msra.mxu0 0.0
    %3451 = vmatprep.subr.mxu0 0.0
    %3452 = vmatpush1.msra.mxu0 0.0
    %3453 = vmatprep.subr.mxu0 0.0
    %3454 = vmatpush1.msra.mxu0 0.0
    %3455 = vmatprep.subr.mxu0 0.0
    %3456 = vmatpush1.msra.mxu0 0.0
    %3457 = vmatprep.mubr.f32.mxu0 0.0
    %3458 = vmatmul.mubr.f32.gmra.mrb[0].mxu0 %v2863
    %v3459 = vpop.f32.mrb[0].mxu0
    %v3460 = vadd.f32 %v3388, %v3459
    %v3461 = vpop.f32.mrb[0].mxu0
    %v3462 = vadd.f32 %v3392, %v3461
    %3463 = vmatprep.mubr.f32.mxu0 0.0
    %3464 = vmatmul.mubr.f32.gmra.mrb[0].mxu0 %v2864
    %v3465 = vpop.f32.mrb[0].mxu0
    %v3466 = vadd.f32 %v3388, %v3465
    %v3467 = vpop.f32.mrb[0].mxu0
    %v3468 = vadd.f32 %v3392, %v3467
    %3469 = vmatprep.mubr.f32.mxu0 0.0
    %3470 = vmatmul.mubr.f32.gmra.mrb[0].mxu0 %v2865
    %v3471 = vpop.f32.mrb[0].mxu0
    %v3472 = vadd.f32 %v3388, %v3471
    %v3473 = vpop.f32.mrb[0].mxu0
    %v3474 = vadd.f32 %v3392, %v3473
    %3475 = vmatprep.mubr.f32.mxu0 0.0
    %3476 = vmatmul.mubr.f32.gmra.mrb[0].mxu0 %v2866
    %v3477 = vpop.f32.mrb[0].mxu0
    %v3478 = vadd.f32 %v3388, %v3477
    %v3479 = vpop.f32.mrb[0].mxu0
    %v3480 = vadd.f32 %v3392, %v3479
    %3481 = vdwg.mxu0
    %v3482 = vmax.f32 %v3273, %v3460
    %v3483 = vmax.f32 %v3274, %v3462
    %v3484 = vmax.f32 %v3275, %v3466
    %v3485 = vmax.f32 %v3276, %v3468
    %v3486 = vmax.f32 %v3277, %v3472
    %v3487 = vmax.f32 %v3278, %v3474
    %v3488 = vmax.f32 %v3279, %v3478
    %v3489 = vmax.f32 %v3280, %v3480
    %v3490 = vlaneseq
    %v3491 = vshrl.u32 %v3490, 7
    %v3492 = vsub.s32 3, %v3491
    %v3493 = vrot.slane %v2867, %v3492
    %v3494 = vlaneseq
    %v3495 = vshrl.u32 %v3494, 7
    %v3496 = vsub.s32 3, %v3495
    %v3497 = vrot.slane %v2868, %v3496
    %vm3498 = vcmp.eq.s32.totalorder %v67, %v3493
    %vm3499 = vcmp.eq.s32.totalorder %v67, %v3497
    %vm3500 = vcmp.eq.s32.totalorder %v68, %v3493
    %vm3501 = vcmp.eq.s32.totalorder %v68, %v3497
    %vm3502 = vcmp.eq.s32.totalorder %v69, %v3493
    %vm3503 = vcmp.eq.s32.totalorder %v69, %v3497
    %vm3504 = vcmp.eq.s32.totalorder %v70, %v3493
    %vm3505 = vcmp.eq.s32.totalorder %v70, %v3497
    %vm3506 = vcmp.eq.s32.totalorder %v71, %v3493
    %vm3507 = vcmp.eq.s32.totalorder %v71, %v3497
    %vm3508 = vcmp.eq.s32.totalorder %v72, %v3493
    %vm3509 = vcmp.eq.s32.totalorder %v72, %v3497
    %vm3510 = vcmp.eq.s32.totalorder %v73, %v3493
    %vm3511 = vcmp.eq.s32.totalorder %v73, %v3497
    %vm3512 = vcmp.eq.s32.totalorder %v74, %v3493
    %vm3513 = vcmp.eq.s32.totalorder %v74, %v3497
    %vm3514 = vcmp.eq.s32.totalorder %v75, %v3493
    %vm3515 = vcmp.eq.s32.totalorder %v75, %v3497
    %vm3516 = vcmp.eq.s32.totalorder %v76, %v3493
    %vm3517 = vcmp.eq.s32.totalorder %v76, %v3497
    %vm3518 = vcmp.eq.s32.totalorder %v77, %v3493
    %vm3519 = vcmp.eq.s32.totalorder %v77, %v3497
    %vm3520 = vcmp.eq.s32.totalorder %v78, %v3493
    %vm3521 = vcmp.eq.s32.totalorder %v78, %v3497
    %vm3522 = vcmp.eq.s32.totalorder %v79, %v3493
    %vm3523 = vcmp.eq.s32.totalorder %v79, %v3497
    %vm3524 = vcmp.eq.s32.totalorder %v80, %v3493
    %vm3525 = vcmp.eq.s32.totalorder %v80, %v3497
    %vm3526 = vcmp.eq.s32.totalorder %v81, %v3493
    %vm3527 = vcmp.eq.s32.totalorder %v81, %v3497
    %vm3528 = vcmp.eq.s32.totalorder %v82, %v3493
    %vm3529 = vcmp.eq.s32.totalorder %v82, %v3497
    %v3530 = vsel %vm3498, 1, 0
    %v3531 = vsel %vm3499, 1, 0
    %v3532 = vsel %vm3500, 1, 0
    %v3533 = vsel %vm3501, 1, 0
    %v3534 = vsel %vm3502, 1, 0
    %v3535 = vsel %vm3503, 1, 0
    %v3536 = vsel %vm3504, 1, 0
    %v3537 = vsel %vm3505, 1, 0
    %v3538 = vsel %vm3506, 1, 0
    %v3539 = vsel %vm3507, 1, 0
    %v3540 = vsel %vm3508, 1, 0
    %v3541 = vsel %vm3509, 1, 0
    %v3542 = vsel %vm3510, 1, 0
    %v3543 = vsel %vm3511, 1, 0
    %v3544 = vsel %vm3512, 1, 0
    %v3545 = vsel %vm3513, 1, 0
    %v3546 = vsel %vm3514, 1, 0
    %v3547 = vsel %vm3515, 1, 0
    %v3548 = vsel %vm3516, 1, 0
    %v3549 = vsel %vm3517, 1, 0
    %v3550 = vsel %vm3518, 1, 0
    %v3551 = vsel %vm3519, 1, 0
    %v3552 = vsel %vm3520, 1, 0
    %v3553 = vsel %vm3521, 1, 0
    %v3554 = vsel %vm3522, 1, 0
    %v3555 = vsel %vm3523, 1, 0
    %v3556 = vsel %vm3524, 1, 0
    %v3557 = vsel %vm3525, 1, 0
    %v3558 = vsel %vm3526, 1, 0
    %v3559 = vsel %vm3527, 1, 0
    %v3560 = vsel %vm3528, 1, 0
    %v3561 = vsel %vm3529, 1, 0
    %v3562 = vcvt.s32.f32 %v3530
    %v3563 = vcvt.s32.f32 %v3531
    %v3564 = vcvt.s32.f32 %v3532
    %v3565 = vcvt.s32.f32 %v3533
    %v3566 = vcvt.s32.f32 %v3534
    %v3567 = vcvt.s32.f32 %v3535
    %v3568 = vcvt.s32.f32 %v3536
    %v3569 = vcvt.s32.f32 %v3537
    %v3570 = vcvt.s32.f32 %v3538
    %v3571 = vcvt.s32.f32 %v3539
    %v3572 = vcvt.s32.f32 %v3540
    %v3573 = vcvt.s32.f32 %v3541
    %v3574 = vcvt.s32.f32 %v3542
    %v3575 = vcvt.s32.f32 %v3543
    %v3576 = vcvt.s32.f32 %v3544
    %v3577 = vcvt.s32.f32 %v3545
    %v3578 = vcvt.s32.f32 %v3546
    %v3579 = vcvt.s32.f32 %v3547
    %v3580 = vcvt.s32.f32 %v3548
    %v3581 = vcvt.s32.f32 %v3549
    %v3582 = vcvt.s32.f32 %v3550
    %v3583 = vcvt.s32.f32 %v3551
    %v3584 = vcvt.s32.f32 %v3552
    %v3585 = vcvt.s32.f32 %v3553
    %v3586 = vcvt.s32.f32 %v3554
    %v3587 = vcvt.s32.f32 %v3555
    %v3588 = vcvt.s32.f32 %v3556
    %v3589 = vcvt.s32.f32 %v3557
    %v3590 = vcvt.s32.f32 %v3558
    %v3591 = vcvt.s32.f32 %v3559
    %v3592 = vcvt.s32.f32 %v3560
    %v3593 = vcvt.s32.f32 %v3561
    %v3594 = vlaneseq
    %v3595 = vshrl.u32 %v3594, 7
    %v3596 = vsub.s32 3, %v3595
    %v3597 = vrot.slane %v2869, %v3596
    %v3598 = vlaneseq
    %v3599 = vshrl.u32 %v3598, 7
    %v3600 = vsub.s32 3, %v3599
    %v3601 = vrot.slane %v2870, %v3600
    %3602 = vmatprep.subr.mxu0 %v3563
    %3603 = vmatpush1.msra.mxu0 %v3562
    %3604 = vmatprep.subr.mxu0 %v3565
    %3605 = vmatpush1.msra.mxu0 %v3564
    %3606 = vmatprep.subr.mxu0 %v3567
    %3607 = vmatpush1.msra.mxu0 %v3566
    %3608 = vmatprep.subr.mxu0 %v3569
    %3609 = vmatpush1.msra.mxu0 %v3568
    %3610 = vmatprep.subr.mxu0 %v3571
    %3611 = vmatpush1.msra.mxu0 %v3570
    %3612 = vmatprep.subr.mxu0 %v3573
    %3613 = vmatpush1.msra.mxu0 %v3572
    %3614 = vmatprep.subr.mxu0 %v3575
    %3615 = vmatpush1.msra.mxu0 %v3574
    %3616 = vmatprep.subr.mxu0 %v3577
    %3617 = vmatpush1.msra.mxu0 %v3576
    %3618 = vmatprep.subr.mxu0 %v3579
    %3619 = vmatpush1.msra.mxu0 %v3578
    %3620 = vmatprep.subr.mxu0 %v3581
    %3621 = vmatpush1.msra.mxu0 %v3580
    %3622 = vmatprep.subr.mxu0 %v3583
    %3623 = vmatpush1.msra.mxu0 %v3582
    %3624 = vmatprep.subr.mxu0 %v3585
    %3625 = vmatpush1.msra.mxu0 %v3584
    %3626 = vmatprep.subr.mxu0 %v3587
    %3627 = vmatpush1.msra.mxu0 %v3586
    %3628 = vmatprep.subr.mxu0 %v3589
    %3629 = vmatpush1.msra.mxu0 %v3588
    %3630 = vmatprep.subr.mxu0 %v3591
    %3631 = vmatpush1.msra.mxu0 %v3590
    %3632 = vmatprep.subr.mxu0 %v3593
    %3633 = vmatpush1.msra.mxu0 %v3592
    %3634 = vmatprep.subr.mxu0 0.0
    %3635 = vmatpush1.msra.mxu0 0.0
    %3636 = vmatprep.subr.mxu0 0.0
    %3637 = vmatpush1.msra.mxu0 0.0
    %3638 = vmatprep.subr.mxu0 0.0
    %3639 = vmatpush1.msra.mxu0 0.0
    %3640 = vmatprep.subr.mxu0 0.0
    %3641 = vmatpush1.msra.mxu0 0.0
    %3642 = vmatprep.subr.mxu0 0.0
    %3643 = vmatpush1.msra.mxu0 0.0
    %3644 = vmatprep.subr.mxu0 0.0
    %3645 = vmatpush1.msra.mxu0 0.0
    %3646 = vmatprep.subr.mxu0 0.0
    %3647 = vmatpush1.msra.mxu0 0.0
    %3648 = vmatprep.subr.mxu0 0.0
    %3649 = vmatpush1.msra.mxu0 0.0
    %3650 = vmatprep.subr.mxu0 0.0
    %3651 = vmatpush1.msra.mxu0 0.0
    %3652 = vmatprep.subr.mxu0 0.0
    %3653 = vmatpush1.msra.mxu0 0.0
    %3654 = vmatprep.subr.mxu0 0.0
    %3655 = vmatpush1.msra.mxu0 0.0
    %3656 = vmatprep.subr.mxu0 0.0
    %3657 = vmatpush1.msra.mxu0 0.0
    %3658 = vmatprep.subr.mxu0 0.0
    %3659 = vmatpush1.msra.mxu0 0.0
    %3660 = vmatprep.subr.mxu0 0.0
    %3661 = vmatpush1.msra.mxu0 0.0
    %3662 = vmatprep.subr.mxu0 0.0
    %3663 = vmatpush1.msra.mxu0 0.0
    %3664 = vmatprep.subr.mxu0 0.0
    %3665 = vmatpush1.msra.mxu0 0.0
    %3666 = vmatprep.mubr.f32.mxu0 0.0
    %3667 = vmatmul.mubr.f32.gmra.mrb[0].mxu0 %v2863
    %v3668 = vpop.f32.mrb[0].mxu0
    %v3669 = vadd.f32 %v3597, %v3668
    %v3670 = vpop.f32.mrb[0].mxu0
    %v3671 = vadd.f32 %v3601, %v3670
    %3672 = vmatprep.mubr.f32.mxu0 0.0
    %3673 = vmatmul.mubr.f32.gmra.mrb[0].mxu0 %v2864
    %v3674 = vpop.f32.mrb[0].mxu0
    %v3675 = vadd.f32 %v3597, %v3674
    %v3676 = vpop.f32.mrb[0].mxu0
    %v3677 = vadd.f32 %v3601, %v3676
    %3678 = vmatprep.mubr.f32.mxu0 0.0
    %3679 = vmatmul.mubr.f32.gmra.mrb[0].mxu0 %v2865
    %v3680 = vpop.f32.mrb[0].mxu0
    %v3681 = vadd.f32 %v3597, %v3680
    %v3682 = vpop.f32.mrb[0].mxu0
    %v3683 = vadd.f32 %v3601, %v3682
    %3684 = vmatprep.mubr.f32.mxu0 0.0
    %3685 = vmatmul.mubr.f32.gmra.mrb[0].mxu0 %v2866
    %v3686 = vpop.f32.mrb[0].mxu0
    %v3687 = vadd.f32 %v3597, %v3686
    %v3688 = vpop.f32.mrb[0].mxu0
    %v3689 = vadd.f32 %v3601, %v3688
    %3690 = vdwg.mxu0
    %v3691 = vmax.f32 %v3482, %v3669
    %v3692 = vmax.f32 %v3483, %v3671
    %v3693 = vmax.f32 %v3484, %v3675
    %v3694 = vmax.f32 %v3485, %v3677
    %v3695 = vmax.f32 %v3486, %v3681
    %v3696 = vmax.f32 %v3487, %v3683
    %v3697 = vmax.f32 %v3488, %v3687
    %v3698 = vmax.f32 %v3489, %v3689
    %v3699 = vlaneseq
    %v3700 = vshrl.u32 %v3699, 7
    %v3701 = vsub.s32 4, %v3700
    %v3702 = vrot.slane %v2867, %v3701
    %v3703 = vlaneseq
    %v3704 = vshrl.u32 %v3703, 7
    %v3705 = vsub.s32 4, %v3704
    %v3706 = vrot.slane %v2868, %v3705
    %vm3707 = vcmp.eq.s32.totalorder %v67, %v3702
    %vm3708 = vcmp.eq.s32.totalorder %v67, %v3706
    %vm3709 = vcmp.eq.s32.totalorder %v68, %v3702
    %vm3710 = vcmp.eq.s32.totalorder %v68, %v3706
    %vm3711 = vcmp.eq.s32.totalorder %v69, %v3702
    %vm3712 = vcmp.eq.s32.totalorder %v69, %v3706
    %vm3713 = vcmp.eq.s32.totalorder %v70, %v3702
    %vm3714 = vcmp.eq.s32.totalorder %v70, %v3706
    %vm3715 = vcmp.eq.s32.totalorder %v71, %v3702
    %vm3716 = vcmp.eq.s32.totalorder %v71, %v3706
    %vm3717 = vcmp.eq.s32.totalorder %v72, %v3702
    %vm3718 = vcmp.eq.s32.totalorder %v72, %v3706
    %vm3719 = vcmp.eq.s32.totalorder %v73, %v3702
    %vm3720 = vcmp.eq.s32.totalorder %v73, %v3706
    %vm3721 = vcmp.eq.s32.totalorder %v74, %v3702
    %vm3722 = vcmp.eq.s32.totalorder %v74, %v3706
    %vm3723 = vcmp.eq.s32.totalorder %v75, %v3702
    %vm3724 = vcmp.eq.s32.totalorder %v75, %v3706
    %vm3725 = vcmp.eq.s32.totalorder %v76, %v3702
    %vm3726 = vcmp.eq.s32.totalorder %v76, %v3706
    %vm3727 = vcmp.eq.s32.totalorder %v77, %v3702
    %vm3728 = vcmp.eq.s32.totalorder %v77, %v3706
    %vm3729 = vcmp.eq.s32.totalorder %v78, %v3702
    %vm3730 = vcmp.eq.s32.totalorder %v78, %v3706
    %vm3731 = vcmp.eq.s32.totalorder %v79, %v3702
    %vm3732 = vcmp.eq.s32.totalorder %v79, %v3706
    %vm3733 = vcmp.eq.s32.totalorder %v80, %v3702
    %vm3734 = vcmp.eq.s32.totalorder %v80, %v3706
    %vm3735 = vcmp.eq.s32.totalorder %v81, %v3702
    %vm3736 = vcmp.eq.s32.totalorder %v81, %v3706
    %vm3737 = vcmp.eq.s32.totalorder %v82, %v3702
    %vm3738 = vcmp.eq.s32.totalorder %v82, %v3706
    %v3739 = vsel %vm3707, 1, 0
    %v3740 = vsel %vm3708, 1, 0
    %v3741 = vsel %vm3709, 1, 0
    %v3742 = vsel %vm3710, 1, 0
    %v3743 = vsel %vm3711, 1, 0
    %v3744 = vsel %vm3712, 1, 0
    %v3745 = vsel %vm3713, 1, 0
    %v3746 = vsel %vm3714, 1, 0
    %v3747 = vsel %vm3715, 1, 0
    %v3748 = vsel %vm3716, 1, 0
    %v3749 = vsel %vm3717, 1, 0
    %v3750 = vsel %vm3718, 1, 0
    %v3751 = vsel %vm3719, 1, 0
    %v3752 = vsel %vm3720, 1, 0
    %v3753 = vsel %vm3721, 1, 0
    %v3754 = vsel %vm3722, 1, 0
    %v3755 = vsel %vm3723, 1, 0
    %v3756 = vsel %vm3724, 1, 0
    %v3757 = vsel %vm3725, 1, 0
    %v3758 = vsel %vm3726, 1, 0
    %v3759 = vsel %vm3727, 1, 0
    %v3760 = vsel %vm3728, 1, 0
    %v3761 = vsel %vm3729, 1, 0
    %v3762 = vsel %vm3730, 1, 0
    %v3763 = vsel %vm3731, 1, 0
    %v3764 = vsel %vm3732, 1, 0
    %v3765 = vsel %vm3733, 1, 0
    %v3766 = vsel %vm3734, 1, 0
    %v3767 = vsel %vm3735, 1, 0
    %v3768 = vsel %vm3736, 1, 0
    %v3769 = vsel %vm3737, 1, 0
    %v3770 = vsel %vm3738, 1, 0
    %v3771 = vcvt.s32.f32 %v3739
    %v3772 = vcvt.s32.f32 %v3740
    %v3773 = vcvt.s32.f32 %v3741
    %v3774 = vcvt.s32.f32 %v3742
    %v3775 = vcvt.s32.f32 %v3743
    %v3776 = vcvt.s32.f32 %v3744
    %v3777 = vcvt.s32.f32 %v3745
    %v3778 = vcvt.s32.f32 %v3746
    %v3779 = vcvt.s32.f32 %v3747
    %v3780 = vcvt.s32.f32 %v3748
    %v3781 = vcvt.s32.f32 %v3749
    %v3782 = vcvt.s32.f32 %v3750
    %v3783 = vcvt.s32.f32 %v3751
    %v3784 = vcvt.s32.f32 %v3752
    %v3785 = vcvt.s32.f32 %v3753
    %v3786 = vcvt.s32.f32 %v3754
    %v3787 = vcvt.s32.f32 %v3755
    %v3788 = vcvt.s32.f32 %v3756
    %v3789 = vcvt.s32.f32 %v3757
    %v3790 = vcvt.s32.f32 %v3758
    %v3791 = vcvt.s32.f32 %v3759
    %v3792 = vcvt.s32.f32 %v3760
    %v3793 = vcvt.s32.f32 %v3761
    %v3794 = vcvt.s32.f32 %v3762
    %v3795 = vcvt.s32.f32 %v3763
    %v3796 = vcvt.s32.f32 %v3764
    %v3797 = vcvt.s32.f32 %v3765
    %v3798 = vcvt.s32.f32 %v3766
    %v3799 = vcvt.s32.f32 %v3767
    %v3800 = vcvt.s32.f32 %v3768
    %v3801 = vcvt.s32.f32 %v3769
    %v3802 = vcvt.s32.f32 %v3770
    %v3803 = vlaneseq
    %v3804 = vshrl.u32 %v3803, 7
    %v3805 = vsub.s32 4, %v3804
    %v3806 = vrot.slane %v2869, %v3805
    %v3807 = vlaneseq
    %v3808 = vshrl.u32 %v3807, 7
    %v3809 = vsub.s32 4, %v3808
    %v3810 = vrot.slane %v2870, %v3809
    %3811 = vmatprep.subr.mxu0 %v3772
    %3812 = vmatpush1.msra.mxu0 %v3771
    %3813 = vmatprep.subr.mxu0 %v3774
    %3814 = vmatpush1.msra.mxu0 %v3773
    %3815 = vmatprep.subr.mxu0 %v3776
    %3816 = vmatpush1.msra.mxu0 %v3775
    %3817 = vmatprep.subr.mxu0 %v3778
    %3818 = vmatpush1.msra.mxu0 %v3777
    %3819 = vmatprep.subr.mxu0 %v3780
    %3820 = vmatpush1.msra.mxu0 %v3779
    %3821 = vmatprep.subr.mxu0 %v3782
    %3822 = vmatpush1.msra.mxu0 %v3781
    %3823 = vmatprep.subr.mxu0 %v3784
    %3824 = vmatpush1.msra.mxu0 %v3783
    %3825 = vmatprep.subr.mxu0 %v3786
    %3826 = vmatpush1.msra.mxu0 %v3785
    %3827 = vmatprep.subr.mxu0 %v3788
    %3828 = vmatpush1.msra.mxu0 %v3787
    %3829 = vmatprep.subr.mxu0 %v3790
    %3830 = vmatpush1.msra.mxu0 %v3789
    %3831 = vmatprep.subr.mxu0 %v3792
    %3832 = vmatpush1.msra.mxu0 %v3791
    %3833 = vmatprep.subr.mxu0 %v3794
    %3834 = vmatpush1.msra.mxu0 %v3793
    %3835 = vmatprep.subr.mxu0 %v3796
    %3836 = vmatpush1.msra.mxu0 %v3795
    %3837 = vmatprep.subr.mxu0 %v3798
    %3838 = vmatpush1.msra.mxu0 %v3797
    %3839 = vmatprep.subr.mxu0 %v3800
    %3840 = vmatpush1.msra.mxu0 %v3799
    %3841 = vmatprep.subr.mxu0 %v3802
    %3842 = vmatpush1.msra.mxu0 %v3801
    %3843 = vmatprep.subr.mxu0 0.0
    %3844 = vmatpush1.msra.mxu0 0.0
    %3845 = vmatprep.subr.mxu0 0.0
    %3846 = vmatpush1.msra.mxu0 0.0
    %3847 = vmatprep.subr.mxu0 0.0
    %3848 = vmatpush1.msra.mxu0 0.0
    %3849 = vmatprep.subr.mxu0 0.0
    %3850 = vmatpush1.msra.mxu0 0.0
    %3851 = vmatprep.subr.mxu0 0.0
    %3852 = vmatpush1.msra.mxu0 0.0
    %3853 = vmatprep.subr.mxu0 0.0
    %3854 = vmatpush1.msra.mxu0 0.0
    %3855 = vmatprep.subr.mxu0 0.0
    %3856 = vmatpush1.msra.mxu0 0.0
    %3857 = vmatprep.subr.mxu0 0.0
    %3858 = vmatpush1.msra.mxu0 0.0
    %3859 = vmatprep.subr.mxu0 0.0
    %3860 = vmatpush1.msra.mxu0 0.0
    %3861 = vmatprep.subr.mxu0 0.0
    %3862 = vmatpush1.msra.mxu0 0.0
    %3863 = vmatprep.subr.mxu0 0.0
    %3864 = vmatpush1.msra.mxu0 0.0
    %3865 = vmatprep.subr.mxu0 0.0
    %3866 = vmatpush1.msra.mxu0 0.0
    %3867 = vmatprep.subr.mxu0 0.0
    %3868 = vmatpush1.msra.mxu0 0.0
    %3869 = vmatprep.subr.mxu0 0.0
    %3870 = vmatpush1.msra.mxu0 0.0
    %3871 = vmatprep.subr.mxu0 0.0
    %3872 = vmatpush1.msra.mxu0 0.0
    %3873 = vmatprep.subr.mxu0 0.0
    %3874 = vmatpush1.msra.mxu0 0.0
    %3875 = vmatprep.mubr.f32.mxu0 0.0
    %3876 = vmatmul.mubr.f32.gmra.mrb[0].mxu0 %v2863
    %v3877 = vpop.f32.mrb[0].mxu0
    %v3878 = vadd.f32 %v3806, %v3877
    %v3879 = vpop.f32.mrb[0].mxu0
    %v3880 = vadd.f32 %v3810, %v3879
    %3881 = vmatprep.mubr.f32.mxu0 0.0
    %3882 = vmatmul.mubr.f32.gmra.mrb[0].mxu0 %v2864
    %v3883 = vpop.f32.mrb[0].mxu0
    %v3884 = vadd.f32 %v3806, %v3883
    %v3885 = vpop.f32.mrb[0].mxu0
    %v3886 = vadd.f32 %v3810, %v3885
    %3887 = vmatprep.mubr.f32.mxu0 0.0
    %3888 = vmatmul.mubr.f32.gmra.mrb[0].mxu0 %v2865
    %v3889 = vpop.f32.mrb[0].mxu0
    %v3890 = vadd.f32 %v3806, %v3889
    %v3891 = vpop.f32.mrb[0].mxu0
    %v3892 = vadd.f32 %v3810, %v3891
    %3893 = vmatprep.mubr.f32.mxu0 0.0
    %3894 = vmatmul.mubr.f32.gmra.mrb[0].mxu0 %v2866
    %v3895 = vpop.f32.mrb[0].mxu0
    %v3896 = vadd.f32 %v3806, %v3895
    %v3897 = vpop.f32.mrb[0].mxu0
    %v3898 = vadd.f32 %v3810, %v3897
    %3899 = vdwg.mxu0
    %v3900 = vmax.f32 %v3691, %v3878
    %v3901 = vmax.f32 %v3692, %v3880
    %v3902 = vmax.f32 %v3693, %v3884
    %v3903 = vmax.f32 %v3694, %v3886
    %v3904 = vmax.f32 %v3695, %v3890
    %v3905 = vmax.f32 %v3696, %v3892
    %v3906 = vmax.f32 %v3697, %v3896
    %v3907 = vmax.f32 %v3698, %v3898
    %vm3908 = vcmp.gt.f32.partialorder %v3900, -1e+29
    %vm3909 = vcmp.gt.f32.partialorder %v3901, -1e+29
    %vm3910 = vcmp.gt.f32.partialorder %v3902, -1e+29
    %vm3911 = vcmp.gt.f32.partialorder %v3903, -1e+29
    %vm3912 = vcmp.gt.f32.partialorder %v3904, -1e+29
    %vm3913 = vcmp.gt.f32.partialorder %v3905, -1e+29
    %vm3914 = vcmp.gt.f32.partialorder %v3906, -1e+29
    %vm3915 = vcmp.gt.f32.partialorder %v3907, -1e+29
    %v3916 = vsel %vm3908, %v3900, 0.0
    %v3917 = vsel %vm3909, %v3901, 0.0
    %v3918 = vsel %vm3910, %v3902, 0.0
    %v3919 = vsel %vm3911, %v3903, 0.0
    %v3920 = vsel %vm3912, %v3904, 0.0
    %v3921 = vsel %vm3913, %v3905, 0.0
    %v3922 = vsel %vm3914, %v3906, 0.0
    %v3923 = vsel %vm3915, %v3907, 0.0
    %v3924 = vld [vmem:[%s18] sm:$0xff]
    %v3925 = vld [vmem:[%s18 + $0x8] sm:$0xff]
    %v3926 = vld [vmem:[%s18 + $0x10] sm:$0xff]
    %v3927 = vld [vmem:[%s18 + $0x18] sm:$0xff]
    %v3928 = vld [vmem:[%s18 + $0x20] sm:$0xff]
    %v3929 = vld [vmem:[%s18 + $0x28] sm:$0xff]
    %v3930 = vld [vmem:[%s18 + $0x30] sm:$0xff]
    %v3931 = vld [vmem:[%s18 + $0x38] sm:$0xff]
    %v3932 = vld [vmem:[%s18 + $0x40] sm:$0xff]
    %v3933 = vld [vmem:[%s18 + $0x48] sm:$0xff]
    %v3934 = vld [vmem:[%s18 + $0x50] sm:$0xff]
    %v3935 = vld [vmem:[%s18 + $0x58] sm:$0xff]
    %v3936 = vld [vmem:[%s18 + $0x60] sm:$0xff]
    %v3937 = vld [vmem:[%s18 + $0x68] sm:$0xff]
    %v3938 = vld [vmem:[%s18 + $0x70] sm:$0xff]
    %v3939 = vld [vmem:[%s18 + $0x78] sm:$0xff]
    %v3940 = vlaneseq
    %v3941 = vand.u32 %v3940, 127
    %v3942 = vmul.f32 %v3916, %v3924
    %v3943 = vmul.f32 %v3917, %v3925
    %v3944 = vmul.f32 %v3918, %v3926
    %v3945 = vmul.f32 %v3919, %v3927
    %v3946 = vmul.f32 %v3920, %v3928
    %v3947 = vmul.f32 %v3921, %v3929
    %v3948 = vmul.f32 %v3922, %v3930
    %v3949 = vmul.f32 %v3923, %v3931
    %3950 = vadd.xlane.f32.xlu0 %v3942
    %v3951 = vpop.xlane.xlu0 %3950
    %3952 = vadd.xlane.f32.xlu0 %v3944
    %v3953 = vpop.xlane.xlu0 %3952
    %3954 = vadd.xlane.f32.xlu0 %v3946
    %v3955 = vpop.xlane.xlu0 %3954
    %3956 = vadd.xlane.f32.xlu0 %v3948
    %v3957 = vpop.xlane.xlu0 %3956
    %v3958 = vadd.f32 %v3951, %v3953
    %v3959 = vadd.f32 %v3958, %v3955
    %v3960 = vadd.f32 %v3959, %v3957
    %v3961 = vrot.slane %v3960, 4
    %v3962 = vadd.f32 %v3960, %v3961
    %v3963 = vrot.slane %v3962, 2
    %v3964 = vadd.f32 %v3962, %v3963
    %v3965 = vrot.slane %v3964, 1
    %v3966 = vadd.f32 %v3964, %v3965
    %vm3967 = vcmp.eq.s32.totalorder %v67, 0
    %vm3968 = vcmp.eq.s32.totalorder %v3941, 0
    %vm3969 = vmand %vm3967, %vm3968
    %v3970 = vsel %vm3969, %v3966, 0.0
    %3971 = vadd.xlane.f32.xlu0 %v3943
    %v3972 = vpop.xlane.xlu0 %3971
    %3973 = vadd.xlane.f32.xlu0 %v3945
    %v3974 = vpop.xlane.xlu0 %3973
    %3975 = vadd.xlane.f32.xlu0 %v3947
    %v3976 = vpop.xlane.xlu0 %3975
    %3977 = vadd.xlane.f32.xlu0 %v3949
    %v3978 = vpop.xlane.xlu0 %3977
    %v3979 = vadd.f32 %v3972, %v3974
    %v3980 = vadd.f32 %v3979, %v3976
    %v3981 = vadd.f32 %v3980, %v3978
    %v3982 = vrot.slane %v3981, 4
    %v3983 = vadd.f32 %v3981, %v3982
    %v3984 = vrot.slane %v3983, 2
    %v3985 = vadd.f32 %v3983, %v3984
    %v3986 = vrot.slane %v3985, 1
    %v3987 = vadd.f32 %v3985, %v3986
    %vm3988 = vcmp.eq.s32.totalorder %v67, 1
    %vm3989 = vmand %vm3988, %vm3968
    %v3990 = vsel %vm3989, %v3987, %v3970
    %v3991 = vmul.f32 %v3916, %v3932
    %v3992 = vmul.f32 %v3917, %v3933
    %v3993 = vmul.f32 %v3918, %v3934
    %v3994 = vmul.f32 %v3919, %v3935
    %v3995 = vmul.f32 %v3920, %v3936
    %v3996 = vmul.f32 %v3921, %v3937
    %v3997 = vmul.f32 %v3922, %v3938
    %v3998 = vmul.f32 %v3923, %v3939
    %3999 = vadd.xlane.f32.xlu0 %v3991
    %v4000 = vpop.xlane.xlu0 %3999
    %4001 = vadd.xlane.f32.xlu0 %v3993
    %v4002 = vpop.xlane.xlu0 %4001
    %4003 = vadd.xlane.f32.xlu0 %v3995
    %v4004 = vpop.xlane.xlu0 %4003
    %4005 = vadd.xlane.f32.xlu0 %v3997
    %v4006 = vpop.xlane.xlu0 %4005
    %v4007 = vadd.f32 %v4000, %v4002
    %v4008 = vadd.f32 %v4007, %v4004
    %v4009 = vadd.f32 %v4008, %v4006
    %v4010 = vrot.slane %v4009, 4
    %v4011 = vadd.f32 %v4009, %v4010
    %v4012 = vrot.slane %v4011, 2
    %v4013 = vadd.f32 %v4011, %v4012
    %v4014 = vrot.slane %v4013, 1
    %v4015 = vadd.f32 %v4013, %v4014
    %vm4016 = vcmp.eq.s32.totalorder %v3941, 1
    %vm4017 = vmand %vm3967, %vm4016
    %v4018 = vsel %vm4017, %v4015, %v3990
    %4019 = vadd.xlane.f32.xlu0 %v3992
    %v4020 = vpop.xlane.xlu0 %4019
    %4021 = vadd.xlane.f32.xlu0 %v3994
    %v4022 = vpop.xlane.xlu0 %4021
    %4023 = vadd.xlane.f32.xlu0 %v3996
    %v4024 = vpop.xlane.xlu0 %4023
    %4025 = vadd.xlane.f32.xlu0 %v3998
    %v4026 = vpop.xlane.xlu0 %4025
    %v4027 = vadd.f32 %v4020, %v4022
    %v4028 = vadd.f32 %v4027, %v4024
    %v4029 = vadd.f32 %v4028, %v4026
    %v4030 = vrot.slane %v4029, 4
    %v4031 = vadd.f32 %v4029, %v4030
    %v4032 = vrot.slane %v4031, 2
    %v4033 = vadd.f32 %v4031, %v4032
    %v4034 = vrot.slane %v4033, 1
    %v4035 = vadd.f32 %v4033, %v4034
    %vm4036 = vmand %vm3988, %vm4016
    %v4037 = vsel %vm4036, %v4035, %v4018
    %vm4038 = vcmask 9216
    %4039 = vst.msk [vmem:[#allocation2] sm:$0x3] %vm4038, %v4037
    // Predicated region
    $region78: #{graph_res_forward.1} parent=1 // pred_check
      _
    $region79: #{graph_res_forward.1} parent=1 // pred_check_branch
      %4041 = sbr.rel (0) target = $region81
    $region80: #{graph_res_forward.1} parent=1 // pred_region
      %s4043 = ssub.s32 32, 32
      %4044 = vsyncadd [#allocation3], %s4043
      %s4046 = sshll.u32 [#allocation2], 4
      %s4047 = int_to_ptr.vmem [resolvable:$true] %s4046
      %4049 = dma.vmem_to_hbm [thread:$0]  %s4047, 32, %s19, [#allocation3]
    $region81: #{graph_res_forward.1} parent=1 // pred_fallthru
      _
    // Predicated region
    $region82: #{graph_res_forward.1} parent=1 // pred_check
      _
    $region83: #{graph_res_forward.1} parent=1 // pred_check_branch
      %4051 = sbr.rel (0) target = $region85
    $region84: #{graph_res_forward.1} parent=1 // pred_region
      %4052 = dma.done [#allocation3], 32
    $region85: #{graph_res_forward.1} parent=1 // pred_fallthru
      _
    %4053 = vsyncpa [#allocation3], 1

</llo_original>
